<compile_context>
chip_gen: v7x
topology: tpu7x:2x2x1
jax: 0.10.0
libtpu: 0.0.40
codegen_flags: <defaults>
</compile_context>

<pallas_src>
import jax
import jax.numpy as jnp
from jax.experimental import pallas as pl
from jax.experimental.pallas import tpu as pltpu

# ----- small synthetic config -----
B, T, S = 2, 8, 8            # batch, decoder seq len, encoder seq len
D, H, DK = 32, 4, 8          # d_model, heads, head dim (H*DK == D)
F, V, L = 64, 128, 2         # ffn dim, vocab, decoder layers
EPS = 1e-6
NEG = -1e9


# ----- in-kernel helpers (trace-time) -----
def _rmsnorm(x2d, w_row):
    var = jnp.mean(x2d * x2d, axis=-1, keepdims=True)
    return x2d * jax.lax.rsqrt(var + EPS) * w_row


def _softmax(scores):
    m = jnp.max(scores, axis=-1, keepdims=True)
    e = jnp.exp(scores - m)
    return e * pl.reciprocal(jnp.sum(e, axis=-1, keepdims=True), approx=True)


def _split_heads(x2d):
    # [rows, H*DK] -> [H, rows, DK] using lane slices + leading-dim stack
    return jnp.stack([x2d[:, h * DK:(h + 1) * DK] for h in range(H)], axis=0)


def _merge_heads(ctx):
    # [H, rows, DK] -> [rows, H*DK]
    return jnp.concatenate([ctx[h] for h in range(H)], axis=-1)


def _attend(q2d, k2d, v2d, bias):
    # q2d: [T, D]; k2d/v2d: [S_kv, D]; bias broadcastable to [H, T, S_kv]
    qh, kh, vh = _split_heads(q2d), _split_heads(k2d), _split_heads(v2d)
    scores = jnp.einsum('htd,hsd->hts', qh, kh,
                        preferred_element_type=jnp.float32) + bias
    probs = _softmax(scores)
    ctx = jnp.einsum('hts,hsd->htd', probs, vh,
                     preferred_element_type=jnp.float32)
    return _merge_heads(ctx)


# ----- fully fused decoder-init kernel (one grid step = one batch element) -----
def fused_decoder_kernel(
    mask_ref, hid_ref, enc_ref,
    ln_ref, wqkv1_ref, wo1_ref, wq2_ref, wkv2_ref, wo2_ref, wi_ref, wof_ref,
    lnf_ref, embT_ref,
    logits_ref, kv_ref,
):
    b = pl.program_id(0)

    x = hid_ref[...]                                  # [T, D] f32
    enc = enc_ref[...]                                # [S, D] f32

    # additive masks built in-kernel (iota + compare is free VPU filler)
    rows = jax.lax.broadcasted_iota(jnp.int32, (T, T), 0)
    cols = jax.lax.broadcasted_iota(jnp.int32, (T, T), 1)
    causal = jnp.where(rows >= cols, 0.0, NEG).astype(jnp.float32)   # [T, T]
    enc_bias = (1.0 - mask_ref[pl.ds(b, 1), :]) * NEG                # [1, S]

    enc_bf = enc.astype(jnp.bfloat16)

    for l in range(L):                                # L is tiny -> unrolled
        lnw = ln_ref[l]                               # [3, D]

        # ---------- self attention (fused QKV projection) ----------
        n1 = _rmsnorm(x, lnw[0:1, :])
        qkv = jnp.dot(n1.astype(jnp.bfloat16), wqkv1_ref[l],
                      preferred_element_type=jnp.float32)            # [T, 3D]
        q, k, v = qkv[:, :D], qkv[:, D:2 * D], qkv[:, 2 * D:]
        ctx = _attend(q, k, v, causal[None, :, :])                   # [T, D]
        x = x + jnp.dot(ctx.astype(jnp.bfloat16), wo1_ref[l],
                        preferred_element_type=jnp.float32)

        # ---------- cross attention (fused KV projection on encoder states) ----------
        n2 = _rmsnorm(x, lnw[1:2, :])
        q2 = jnp.dot(n2.astype(jnp.bfloat16), wq2_ref[l],
                     preferred_element_type=jnp.float32)             # [T, D]
        kvc = jnp.dot(enc_bf, wkv2_ref[l],
                      preferred_element_type=jnp.float32)            # [S, 2D]
        kc, vc = kvc[:, :D], kvc[:, D:]
        ctx2 = _attend(q2, kc, vc, enc_bias[None, :, :])             # [T, D]
        x = x + jnp.dot(ctx2.astype(jnp.bfloat16), wo2_ref[l],
                        preferred_element_type=jnp.float32)

        # ---------- feed forward ----------
        n3 = _rmsnorm(x, lnw[2:3, :])
        hmid = jnp.maximum(
            jnp.dot(n3.astype(jnp.bfloat16), wi_ref[l],
                    preferred_element_type=jnp.float32), 0.0)
        x = x + jnp.dot(hmid.astype(jnp.bfloat16), wof_ref[l],
                        preferred_element_type=jnp.float32)

        # ---------- lane-dense KV-cache writeback: [T, 4*D] = [8, 128] ----------
        kv_ref[l] = jnp.concatenate([k, v, kc, vc], axis=-1)

    # ---------- final RMSNorm + tied LM head ----------
    # (tied-embedding d_model^-0.5 scale is pre-folded into embT at init time)
    xf = _rmsnorm(x, lnf_ref[...])
    logits_ref[...] = jnp.dot(xf.astype(jnp.bfloat16), embT_ref[...],
                              preferred_element_type=jnp.float32)


# ----- pallas_call wrapper + glue (mirrors T5DecoderInit.forward outputs) -----
def _full(shape):
    return pl.BlockSpec(shape, lambda b, _s=shape: (0,) * len(_s))


@jax.jit
def t5_decoder_init(input_ids, encoder_attention_mask, encoder_hidden_states, params):
    hid2d = params["embedding"][input_ids].reshape(B * T, D)          # embedding gather (glue)
    enc2d = encoder_hidden_states.astype(jnp.float32).reshape(B * S, D)
    mask_f = encoder_attention_mask.astype(jnp.float32)               # [B, S]

    in_specs = [
        _full((B, S)),                                 # mask (row selected in-kernel)
        pl.BlockSpec((T, D), lambda b: (b, 0)),        # decoder hidden, per batch
        pl.BlockSpec((S, D), lambda b: (b, 0)),        # encoder hidden, per batch
        _full((L, 3, D)),                              # ln1/ln2/ln3 per layer
        _full((L, D, 3 * D)),                          # fused Wq|Wk|Wv (self)
        _full((L, D, D)),                              # Wo (self)
        _full((L, D, D)),                              # Wq (cross)
        _full((L, D, 2 * D)),                          # fused Wk|Wv (cross)
        _full((L, D, D)),                              # Wo (cross)
        _full((L, D, F)),                              # Wi (ffn)
        _full((L, F, D)),                              # Wo (ffn)
        _full((1, D)),                                 # final RMSNorm weight
        _full((D, V)),                                 # tied LM head (emb^T, pre-scaled)
    ]
    out_specs = (
        pl.BlockSpec((T, V), lambda b: (b, 0)),            # logits, lane-dense (V=128)
        pl.BlockSpec((L, T, 4 * D), lambda b: (0, b, 0)),  # packed KV, lane-dense (4D=128)
    )
    out_shape = (
        jax.ShapeDtypeStruct((B * T, V), jnp.float32),
        jax.ShapeDtypeStruct((L, B * T, 4 * D), jnp.float32),
    )

    logits2d, kv_all = pl.pallas_call(
        fused_decoder_kernel,
        grid=(B,),
        in_specs=in_specs,
        out_specs=out_specs,
        out_shape=out_shape,
        compiler_params=pltpu.CompilerParams(
            dimension_semantics=("parallel",)),   # batch grid -> both TCs on v7x
    )(mask_f, hid2d, enc2d,
      params["ln_all"], params["wqkv1"], params["wo1"], params["wq2"],
      params["wkv2"], params["wo2"], params["wi"], params["wof"],
      params["final_ln"], params["emb_T"])

    logits = logits2d.reshape(B, T, V)

    past = []
    for l in range(L):
        r = kv_all[l].reshape(B, T, 4, H, DK)          # rows (b,t); cols k|v|kc|vc x (h,dk)
        sk = r[:, :, 0].transpose(0, 2, 1, 3)          # [B, H, T, DK]
        sv = r[:, :, 1].transpose(0, 2, 1, 3)
        ck = r[:, :, 2].transpose(0, 2, 1, 3)          # [B, H, S, DK]  (S == T)
        cv = r[:, :, 3].transpose(0, 2, 1, 3)
        past.append((sk, sv, ck, cv))
    return logits, tuple(past)


# ----- deterministic parameter init (weights fused/stacked, bf16 for matmuls) -----
def init_params(key):
    keys = jax.random.split(key, 1 + 12 * L)
    it = iter(keys)

    def w(shape, scale=0.02):
        return jax.random.normal(next(it), shape, jnp.float32) * scale

    emb = w((V, D), 1.0)
    ln_all, wqkv1, wo1, wq2, wkv2, wo2, wi, wof = [], [], [], [], [], [], [], []
    for _ in range(L):
        ln_all.append(jnp.ones((3, D), jnp.float32))
        wqkv1.append(jnp.concatenate([w((D, D)), w((D, D)), w((D, D))], axis=-1))
        wo1.append(w((D, D)))
        wq2.append(w((D, D)))
        wkv2.append(jnp.concatenate([w((D, D)), w((D, D))], axis=-1))
        wo2.append(w((D, D)))
        wi.append(w((D, F)))
        wof.append(w((F, D)))

    def stack_bf16(xs):
        return jnp.stack(xs, axis=0).astype(jnp.bfloat16)

    return dict(
        embedding=emb,                                        # f32 for the XLA gather
        # tied LM head with T5's d_model^-0.5 scaling folded in (saves a VPU mul in-kernel)
        emb_T=(jnp.transpose(emb) * (D ** -0.5)).astype(jnp.bfloat16),
        final_ln=jnp.ones((1, D), jnp.float32),
        ln_all=jnp.stack(ln_all, axis=0),                     # f32 (elementwise path)
        wqkv1=stack_bf16(wqkv1),
        wo1=stack_bf16(wo1),
        wq2=stack_bf16(wq2),
        wkv2=stack_bf16(wkv2),
        wo2=stack_bf16(wo2),
        wi=stack_bf16(wi),
        wof=stack_bf16(wof),
    )


if __name__ == "__main__":
    root = jax.random.PRNGKey(0)
    pkey, ikey, ekey = jax.random.split(root, 3)
    params = init_params(pkey)

    input_ids = jax.random.randint(ikey, (B, T), 0, V, dtype=jnp.int32)
    encoder_attention_mask = jnp.ones((B, S), jnp.int32).at[:, S - 2:].set(0)
    encoder_hidden_states = jax.random.normal(ekey, (B, S, D), jnp.float32)

    logits, past_key_values = t5_decoder_init(
        input_ids, encoder_attention_mask, encoder_hidden_states, params)
    jax.block_until_ready((logits, past_key_values))

    assert logits.shape == (B, T, V) and logits.dtype == jnp.float32
    assert len(past_key_values) == L
    for layer_pkv in past_key_values:
        assert len(layer_pkv) == 4
        assert layer_pkv[0].shape == (B, H, T, DK)   # self K
        assert layer_pkv[1].shape == (B, H, T, DK)   # self V
        assert layer_pkv[2].shape == (B, H, S, DK)   # cross K
        assert layer_pkv[3].shape == (B, H, S, DK)   # cross V
    assert bool(jnp.all(jnp.isfinite(logits)))
    print("KERNEL_OK")
</pallas_src>

<mosaic_0001>
module attributes {stable_mosaic.version = 11 : i64} {
  func.func @fused_decoder_kernel(%arg0: i32, %arg1: memref<2x8xf32, #tpu.memory_space<vmem>>, %arg2: memref<8x32xf32, #tpu.memory_space<vmem>>, %arg3: memref<8x32xf32, #tpu.memory_space<vmem>>, %arg4: memref<2x3x32xf32, #tpu.memory_space<vmem>>, %arg5: memref<2x32x96xbf16, #tpu.memory_space<vmem>>, %arg6: memref<2x32x32xbf16, #tpu.memory_space<vmem>>, %arg7: memref<2x32x32xbf16, #tpu.memory_space<vmem>>, %arg8: memref<2x32x64xbf16, #tpu.memory_space<vmem>>, %arg9: memref<2x32x32xbf16, #tpu.memory_space<vmem>>, %arg10: memref<2x32x64xbf16, #tpu.memory_space<vmem>>, %arg11: memref<2x64x32xbf16, #tpu.memory_space<vmem>>, %arg12: memref<1x32xf32, #tpu.memory_space<vmem>>, %arg13: memref<32x128xbf16, #tpu.memory_space<vmem>>, %arg14: memref<8x128xf32, #tpu.memory_space<vmem>>, %arg15: memref<2x8x128xf32, #tpu.memory_space<vmem>>) attributes {dimension_semantics = [#tpu.dimension_semantics<parallel>], iteration_bounds = array<i64: 2>, scalar_prefetch = 0 : i64, scratch_operands = 0 : i64, tpu.core_type = #tpu.core_type<tc>, window_params = [{pipeline_mode = #tpu.pipeline_mode<synchronous>, transform_indices = @transform_0, window_bounds = array<i64: 2, 8>}, {transform_indices = @transform_1, window_bounds = array<i64: 8, 32>}, {transform_indices = @transform_2, window_bounds = array<i64: 8, 32>}, {pipeline_mode = #tpu.pipeline_mode<synchronous>, transform_indices = @transform_3, window_bounds = array<i64: 2, 3, 32>}, {pipeline_mode = #tpu.pipeline_mode<synchronous>, transform_indices = @transform_4, window_bounds = array<i64: 2, 32, 96>}, {pipeline_mode = #tpu.pipeline_mode<synchronous>, transform_indices = @transform_5, window_bounds = array<i64: 2, 32, 32>}, {pipeline_mode = #tpu.pipeline_mode<synchronous>, transform_indices = @transform_6, window_bounds = array<i64: 2, 32, 32>}, {pipeline_mode = #tpu.pipeline_mode<synchronous>, transform_indices = @transform_7, window_bounds = array<i64: 2, 32, 64>}, {pipeline_mode = #tpu.pipeline_mode<synchronous>, transform_indices = @transform_8, window_bounds = array<i64: 2, 32, 32>}, {pipeline_mode = #tpu.pipeline_mode<synchronous>, transform_indices = @transform_9, window_bounds = array<i64: 2, 32, 64>}, {pipeline_mode = #tpu.pipeline_mode<synchronous>, transform_indices = @transform_10, window_bounds = array<i64: 2, 64, 32>}, {pipeline_mode = #tpu.pipeline_mode<synchronous>, transform_indices = @transform_11, window_bounds = array<i64: 1, 32>}, {pipeline_mode = #tpu.pipeline_mode<synchronous>, transform_indices = @transform_12, window_bounds = array<i64: 32, 128>}, {transform_indices = @transform_13, window_bounds = array<i64: 8, 128>}, {transform_indices = @transform_14, window_bounds = array<i64: 2, 8, 128>}]} {
    %c0 = arith.constant 0 : index
    %c0_0 = arith.constant 0 : index
    %0 = vector.load %arg2[%c0, %c0_0] : memref<8x32xf32, #tpu.memory_space<vmem>>, vector<8x32xf32>
    %c0_1 = arith.constant 0 : index
    %c0_2 = arith.constant 0 : index
    %1 = vector.load %arg3[%c0_1, %c0_2] : memref<8x32xf32, #tpu.memory_space<vmem>>, vector<8x32xf32>
    %2 = tpu.iota {dimensions = array<i32: 0>} : vector<8x8xi32>
    %3 = tpu.iota {dimensions = array<i32: 1>} : vector<8x8xi32>
    %4 = arith.cmpi sge, %2, %3 : vector<8x8xi32>
    %cst = arith.constant 0.000000e+00 : f32
    %cst_3 = arith.constant -1.000000e+09 : f32
    %5 = vector.broadcast %cst : f32 to vector<8x8xf32>
    %6 = vector.broadcast %cst_3 : f32 to vector<8x8xf32>
    %7 = arith.select %4, %5, %6 : vector<8x8xi1>, vector<8x8xf32>
    %8 = arith.index_cast %arg0 : i32 to index
    %c0_4 = arith.constant 0 : index
    %9 = vector.load %arg1[%8, %c0_4] : memref<2x8xf32, #tpu.memory_space<vmem>>, vector<1x8xf32>
    %cst_5 = arith.constant 1.000000e+00 : f32
    %10 = vector.broadcast %cst_5 : f32 to vector<1x8xf32>
    %11 = arith.subf %10, %9 : vector<1x8xf32>
    %cst_6 = arith.constant -1.000000e+09 : f32
    %12 = vector.broadcast %cst_6 : f32 to vector<1x8xf32>
    %13 = arith.mulf %11, %12 : vector<1x8xf32>
    %14 = arith.truncf %1 : vector<8x32xf32> to vector<8x32xbf16>
    %c0_7 = arith.constant 0 : index
    %c0_8 = arith.constant 0 : index
    %c0_9 = arith.constant 0 : index
    %15 = vector.load %arg4[%c0_7, %c0_8, %c0_9] : memref<2x3x32xf32, #tpu.memory_space<vmem>>, vector<1x3x32xf32>
    %16 = vector.shape_cast %15 : vector<1x3x32xf32> to vector<3x32xf32>
    %17 = vector.extract_strided_slice %16 {offsets = [0, 0], sizes = [1, 32], strides = [1, 1]} : vector<3x32xf32> to vector<1x32xf32>
    %18 = arith.mulf %0, %0 : vector<8x32xf32>
    %cst_10 = arith.constant dense<0.000000e+00> : vector<8xf32>
    %19 = vector.multi_reduction <add>, %18, %cst_10 [1] : vector<8x32xf32> to vector<8xf32>
    %20 = vector.shape_cast %19 : vector<8xf32> to vector<8x1xf32>
    %cst_11 = arith.constant 3.200000e+01 : f32
    %21 = vector.broadcast %cst_11 : f32 to vector<8x1xf32>
    %22 = arith.divf %20, %21 : vector<8x1xf32>
    %cst_12 = arith.constant 9.99999997E-7 : f32
    %23 = vector.broadcast %cst_12 : f32 to vector<8x1xf32>
    %24 = arith.addf %22, %23 : vector<8x1xf32>
    %25 = math.rsqrt %24 : vector<8x1xf32>
    %26 = vector.broadcast %25 : vector<8x1xf32> to vector<8x32xf32>
    %27 = arith.mulf %0, %26 : vector<8x32xf32>
    %28 = vector.broadcast %17 : vector<1x32xf32> to vector<8x32xf32>
    %29 = arith.mulf %27, %28 : vector<8x32xf32>
    %30 = arith.truncf %29 : vector<8x32xf32> to vector<8x32xbf16>
    %c0_13 = arith.constant 0 : index
    %c0_14 = arith.constant 0 : index
    %c0_15 = arith.constant 0 : index
    %31 = vector.load %arg5[%c0_13, %c0_14, %c0_15] : memref<2x32x96xbf16, #tpu.memory_space<vmem>>, vector<1x32x96xbf16>
    %32 = vector.shape_cast %31 : vector<1x32x96xbf16> to vector<32x96xbf16>
    %cst_16 = arith.constant dense<0.000000e+00> : vector<8x96xf32>
    %33 = tpu.matmul %30, %32, %cst_16 {dimension_numbers = #tpu.dot_dimension_numbers<[1], [0], [0], [1], [0, 0, 1, 1], [], []>} : vector<8x32xbf16>, vector<32x96xbf16>, vector<8x96xf32> -> vector<8x96xf32>
    %34 = vector.extract_strided_slice %33 {offsets = [0, 0], sizes = [8, 32], strides = [1, 1]} : vector<8x96xf32> to vector<8x32xf32>
    %35 = vector.extract_strided_slice %33 {offsets = [0, 32], sizes = [8, 32], strides = [1, 1]} : vector<8x96xf32> to vector<8x32xf32>
    %36 = vector.extract_strided_slice %33 {offsets = [0, 64], sizes = [8, 32], strides = [1, 1]} : vector<8x96xf32> to vector<8x32xf32>
    %37 = vector.shape_cast %7 : vector<8x8xf32> to vector<1x8x8xf32>
    %38 = vector.extract_strided_slice %34 {offsets = [0, 0], sizes = [8, 8], strides = [1, 1]} : vector<8x32xf32> to vector<8x8xf32>
    %39 = vector.extract_strided_slice %34 {offsets = [0, 8], sizes = [8, 8], strides = [1, 1]} : vector<8x32xf32> to vector<8x8xf32>
    %40 = vector.extract_strided_slice %34 {offsets = [0, 16], sizes = [8, 8], strides = [1, 1]} : vector<8x32xf32> to vector<8x8xf32>
    %41 = vector.extract_strided_slice %34 {offsets = [0, 24], sizes = [8, 8], strides = [1, 1]} : vector<8x32xf32> to vector<8x8xf32>
    %42 = vector.shape_cast %38 : vector<8x8xf32> to vector<1x8x8xf32>
    %43 = vector.shape_cast %39 : vector<8x8xf32> to vector<1x8x8xf32>
    %44 = vector.shape_cast %40 : vector<8x8xf32> to vector<1x8x8xf32>
    %45 = vector.shape_cast %41 : vector<8x8xf32> to vector<1x8x8xf32>
    %46 = tpu.concatenate %42, %43, %44, %45 in 0 : vector<1x8x8xf32>, vector<1x8x8xf32>, vector<1x8x8xf32>, vector<1x8x8xf32> -> vector<4x8x8xf32>
    %47 = vector.extract_strided_slice %35 {offsets = [0, 0], sizes = [8, 8], strides = [1, 1]} : vector<8x32xf32> to vector<8x8xf32>
    %48 = vector.extract_strided_slice %35 {offsets = [0, 8], sizes = [8, 8], strides = [1, 1]} : vector<8x32xf32> to vector<8x8xf32>
    %49 = vector.extract_strided_slice %35 {offsets = [0, 16], sizes = [8, 8], strides = [1, 1]} : vector<8x32xf32> to vector<8x8xf32>
    %50 = vector.extract_strided_slice %35 {offsets = [0, 24], sizes = [8, 8], strides = [1, 1]} : vector<8x32xf32> to vector<8x8xf32>
    %51 = vector.shape_cast %47 : vector<8x8xf32> to vector<1x8x8xf32>
    %52 = vector.shape_cast %48 : vector<8x8xf32> to vector<1x8x8xf32>
    %53 = vector.shape_cast %49 : vector<8x8xf32> to vector<1x8x8xf32>
    %54 = vector.shape_cast %50 : vector<8x8xf32> to vector<1x8x8xf32>
    %55 = tpu.concatenate %51, %52, %53, %54 in 0 : vector<1x8x8xf32>, vector<1x8x8xf32>, vector<1x8x8xf32>, vector<1x8x8xf32> -> vector<4x8x8xf32>
    %56 = vector.extract_strided_slice %36 {offsets = [0, 0], sizes = [8, 8], strides = [1, 1]} : vector<8x32xf32> to vector<8x8xf32>
    %57 = vector.extract_strided_slice %36 {offsets = [0, 8], sizes = [8, 8], strides = [1, 1]} : vector<8x32xf32> to vector<8x8xf32>
    %58 = vector.extract_strided_slice %36 {offsets = [0, 16], sizes = [8, 8], strides = [1, 1]} : vector<8x32xf32> to vector<8x8xf32>
    %59 = vector.extract_strided_slice %36 {offsets = [0, 24], sizes = [8, 8], strides = [1, 1]} : vector<8x32xf32> to vector<8x8xf32>
    %60 = vector.shape_cast %56 : vector<8x8xf32> to vector<1x8x8xf32>
    %61 = vector.shape_cast %57 : vector<8x8xf32> to vector<1x8x8xf32>
    %62 = vector.shape_cast %58 : vector<8x8xf32> to vector<1x8x8xf32>
    %63 = vector.shape_cast %59 : vector<8x8xf32> to vector<1x8x8xf32>
    %64 = tpu.concatenate %60, %61, %62, %63 in 0 : vector<1x8x8xf32>, vector<1x8x8xf32>, vector<1x8x8xf32>, vector<1x8x8xf32> -> vector<4x8x8xf32>
    "tpu.trace_start"() <{level = 10 : i32, message = "htd,hsd->hts"}> : () -> ()
    %cst_17 = arith.constant dense<0.000000e+00> : vector<4x8x8xf32>
    %65 = tpu.matmul %46, %55, %cst_17 {dimension_numbers = #tpu.dot_dimension_numbers<[2], [2], [1], [1], [0, 0, 0, 1, 1, 1], [0], [0]>} : vector<4x8x8xf32>, vector<4x8x8xf32>, vector<4x8x8xf32> -> vector<4x8x8xf32>
    "tpu.trace_stop"() : () -> ()
    %66 = vector.broadcast %37 : vector<1x8x8xf32> to vector<4x8x8xf32>
    %67 = arith.addf %65, %66 : vector<4x8x8xf32>
    %cst_18 = arith.constant dense<0xFF800000> : vector<4x8xf32>
    %68 = vector.multi_reduction <maximumf>, %67, %cst_18 [2] : vector<4x8x8xf32> to vector<4x8xf32>
    %69 = vector.shape_cast %68 : vector<4x8xf32> to vector<4x8x1xf32>
    %70 = vector.broadcast %69 : vector<4x8x1xf32> to vector<4x8x8xf32>
    %71 = arith.subf %67, %70 : vector<4x8x8xf32>
    %72 = math.exp %71 : vector<4x8x8xf32>
    %cst_19 = arith.constant dense<0.000000e+00> : vector<4x8xf32>
    %73 = vector.multi_reduction <add>, %72, %cst_19 [2] : vector<4x8x8xf32> to vector<4x8xf32>
    %74 = vector.shape_cast %73 : vector<4x8xf32> to vector<4x8x1xf32>
    %75 = tpu.reciprocal %74 {approx = true} : vector<4x8x1xf32> -> vector<4x8x1xf32>
    %76 = vector.broadcast %75 : vector<4x8x1xf32> to vector<4x8x8xf32>
    %77 = arith.mulf %72, %76 : vector<4x8x8xf32>
    "tpu.trace_start"() <{level = 10 : i32, message = "hts,hsd->htd"}> : () -> ()
    %cst_20 = arith.constant dense<0.000000e+00> : vector<4x8x8xf32>
    %78 = tpu.matmul %77, %64, %cst_20 {dimension_numbers = #tpu.dot_dimension_numbers<[2], [1], [1], [2], [0, 0, 0, 1, 1, 2], [0], [0]>} : vector<4x8x8xf32>, vector<4x8x8xf32>, vector<4x8x8xf32> -> vector<4x8x8xf32>
    "tpu.trace_stop"() : () -> ()
    %79 = vector.extract_strided_slice %78 {offsets = [0, 0, 0], sizes = [1, 8, 8], strides = [1, 1, 1]} : vector<4x8x8xf32> to vector<1x8x8xf32>
    %80 = vector.shape_cast %79 : vector<1x8x8xf32> to vector<8x8xf32>
    %81 = vector.extract_strided_slice %78 {offsets = [1, 0, 0], sizes = [1, 8, 8], strides = [1, 1, 1]} : vector<4x8x8xf32> to vector<1x8x8xf32>
    %82 = vector.shape_cast %81 : vector<1x8x8xf32> to vector<8x8xf32>
    %83 = vector.extract_strided_slice %78 {offsets = [2, 0, 0], sizes = [1, 8, 8], strides = [1, 1, 1]} : vector<4x8x8xf32> to vector<1x8x8xf32>
    %84 = vector.shape_cast %83 : vector<1x8x8xf32> to vector<8x8xf32>
    %85 = vector.extract_strided_slice %78 {offsets = [3, 0, 0], sizes = [1, 8, 8], strides = [1, 1, 1]} : vector<4x8x8xf32> to vector<1x8x8xf32>
    %86 = vector.shape_cast %85 : vector<1x8x8xf32> to vector<8x8xf32>
    %87 = tpu.concatenate %80, %82, %84, %86 in 1 : vector<8x8xf32>, vector<8x8xf32>, vector<8x8xf32>, vector<8x8xf32> -> vector<8x32xf32>
    %88 = arith.truncf %87 : vector<8x32xf32> to vector<8x32xbf16>
    %c0_21 = arith.constant 0 : index
    %c0_22 = arith.constant 0 : index
    %c0_23 = arith.constant 0 : index
    %89 = vector.load %arg6[%c0_21, %c0_22, %c0_23] : memref<2x32x32xbf16, #tpu.memory_space<vmem>>, vector<1x32x32xbf16>
    %90 = vector.shape_cast %89 : vector<1x32x32xbf16> to vector<32x32xbf16>
    %cst_24 = arith.constant dense<0.000000e+00> : vector<8x32xf32>
    %91 = tpu.matmul %88, %90, %cst_24 {dimension_numbers = #tpu.dot_dimension_numbers<[1], [0], [0], [1], [0, 0, 1, 1], [], []>} : vector<8x32xbf16>, vector<32x32xbf16>, vector<8x32xf32> -> vector<8x32xf32>
    %92 = arith.addf %0, %91 : vector<8x32xf32>
    %93 = vector.extract_strided_slice %16 {offsets = [1, 0], sizes = [1, 32], strides = [1, 1]} : vector<3x32xf32> to vector<1x32xf32>
    %94 = arith.mulf %92, %92 : vector<8x32xf32>
    %cst_25 = arith.constant dense<0.000000e+00> : vector<8xf32>
    %95 = vector.multi_reduction <add>, %94, %cst_25 [1] : vector<8x32xf32> to vector<8xf32>
    %96 = vector.shape_cast %95 : vector<8xf32> to vector<8x1xf32>
    %cst_26 = arith.constant 3.200000e+01 : f32
    %97 = vector.broadcast %cst_26 : f32 to vector<8x1xf32>
    %98 = arith.divf %96, %97 : vector<8x1xf32>
    %cst_27 = arith.constant 9.99999997E-7 : f32
    %99 = vector.broadcast %cst_27 : f32 to vector<8x1xf32>
    %100 = arith.addf %98, %99 : vector<8x1xf32>
    %101 = math.rsqrt %100 : vector<8x1xf32>
    %102 = vector.broadcast %101 : vector<8x1xf32> to vector<8x32xf32>
    %103 = arith.mulf %92, %102 : vector<8x32xf32>
    %104 = vector.broadcast %93 : vector<1x32xf32> to vector<8x32xf32>
    %105 = arith.mulf %103, %104 : vector<8x32xf32>
    %106 = arith.truncf %105 : vector<8x32xf32> to vector<8x32xbf16>
    %c0_28 = arith.constant 0 : index
    %c0_29 = arith.constant 0 : index
    %c0_30 = arith.constant 0 : index
    %107 = vector.load %arg7[%c0_28, %c0_29, %c0_30] : memref<2x32x32xbf16, #tpu.memory_space<vmem>>, vector<1x32x32xbf16>
    %108 = vector.shape_cast %107 : vector<1x32x32xbf16> to vector<32x32xbf16>
    %cst_31 = arith.constant dense<0.000000e+00> : vector<8x32xf32>
    %109 = tpu.matmul %106, %108, %cst_31 {dimension_numbers = #tpu.dot_dimension_numbers<[1], [0], [0], [1], [0, 0, 1, 1], [], []>} : vector<8x32xbf16>, vector<32x32xbf16>, vector<8x32xf32> -> vector<8x32xf32>
    %c0_32 = arith.constant 0 : index
    %c0_33 = arith.constant 0 : index
    %c0_34 = arith.constant 0 : index
    %110 = vector.load %arg8[%c0_32, %c0_33, %c0_34] : memref<2x32x64xbf16, #tpu.memory_space<vmem>>, vector<1x32x64xbf16>
    %111 = vector.shape_cast %110 : vector<1x32x64xbf16> to vector<32x64xbf16>
    %cst_35 = arith.constant dense<0.000000e+00> : vector<8x64xf32>
    %112 = tpu.matmul %14, %111, %cst_35 {dimension_numbers = #tpu.dot_dimension_numbers<[1], [0], [0], [1], [0, 0, 1, 1], [], []>} : vector<8x32xbf16>, vector<32x64xbf16>, vector<8x64xf32> -> vector<8x64xf32>
    %113 = vector.extract_strided_slice %112 {offsets = [0, 0], sizes = [8, 32], strides = [1, 1]} : vector<8x64xf32> to vector<8x32xf32>
    %114 = vector.extract_strided_slice %112 {offsets = [0, 32], sizes = [8, 32], strides = [1, 1]} : vector<8x64xf32> to vector<8x32xf32>
    %115 = vector.shape_cast %13 : vector<1x8xf32> to vector<1x1x8xf32>
    %116 = vector.extract_strided_slice %109 {offsets = [0, 0], sizes = [8, 8], strides = [1, 1]} : vector<8x32xf32> to vector<8x8xf32>
    %117 = vector.extract_strided_slice %109 {offsets = [0, 8], sizes = [8, 8], strides = [1, 1]} : vector<8x32xf32> to vector<8x8xf32>
    %118 = vector.extract_strided_slice %109 {offsets = [0, 16], sizes = [8, 8], strides = [1, 1]} : vector<8x32xf32> to vector<8x8xf32>
    %119 = vector.extract_strided_slice %109 {offsets = [0, 24], sizes = [8, 8], strides = [1, 1]} : vector<8x32xf32> to vector<8x8xf32>
    %120 = vector.shape_cast %116 : vector<8x8xf32> to vector<1x8x8xf32>
    %121 = vector.shape_cast %117 : vector<8x8xf32> to vector<1x8x8xf32>
    %122 = vector.shape_cast %118 : vector<8x8xf32> to vector<1x8x8xf32>
    %123 = vector.shape_cast %119 : vector<8x8xf32> to vector<1x8x8xf32>
    %124 = tpu.concatenate %120, %121, %122, %123 in 0 : vector<1x8x8xf32>, vector<1x8x8xf32>, vector<1x8x8xf32>, vector<1x8x8xf32> -> vector<4x8x8xf32>
    %125 = vector.extract_strided_slice %113 {offsets = [0, 0], sizes = [8, 8], strides = [1, 1]} : vector<8x32xf32> to vector<8x8xf32>
    %126 = vector.extract_strided_slice %113 {offsets = [0, 8], sizes = [8, 8], strides = [1, 1]} : vector<8x32xf32> to vector<8x8xf32>
    %127 = vector.extract_strided_slice %113 {offsets = [0, 16], sizes = [8, 8], strides = [1, 1]} : vector<8x32xf32> to vector<8x8xf32>
    %128 = vector.extract_strided_slice %113 {offsets = [0, 24], sizes = [8, 8], strides = [1, 1]} : vector<8x32xf32> to vector<8x8xf32>
    %129 = vector.shape_cast %125 : vector<8x8xf32> to vector<1x8x8xf32>
    %130 = vector.shape_cast %126 : vector<8x8xf32> to vector<1x8x8xf32>
    %131 = vector.shape_cast %127 : vector<8x8xf32> to vector<1x8x8xf32>
    %132 = vector.shape_cast %128 : vector<8x8xf32> to vector<1x8x8xf32>
    %133 = tpu.concatenate %129, %130, %131, %132 in 0 : vector<1x8x8xf32>, vector<1x8x8xf32>, vector<1x8x8xf32>, vector<1x8x8xf32> -> vector<4x8x8xf32>
    %134 = vector.extract_strided_slice %114 {offsets = [0, 0], sizes = [8, 8], strides = [1, 1]} : vector<8x32xf32> to vector<8x8xf32>
    %135 = vector.extract_strided_slice %114 {offsets = [0, 8], sizes = [8, 8], strides = [1, 1]} : vector<8x32xf32> to vector<8x8xf32>
    %136 = vector.extract_strided_slice %114 {offsets = [0, 16], sizes = [8, 8], strides = [1, 1]} : vector<8x32xf32> to vector<8x8xf32>
    %137 = vector.extract_strided_slice %114 {offsets = [0, 24], sizes = [8, 8], strides = [1, 1]} : vector<8x32xf32> to vector<8x8xf32>
    %138 = vector.shape_cast %134 : vector<8x8xf32> to vector<1x8x8xf32>
    %139 = vector.shape_cast %135 : vector<8x8xf32> to vector<1x8x8xf32>
    %140 = vector.shape_cast %136 : vector<8x8xf32> to vector<1x8x8xf32>
    %141 = vector.shape_cast %137 : vector<8x8xf32> to vector<1x8x8xf32>
    %142 = tpu.concatenate %138, %139, %140, %141 in 0 : vector<1x8x8xf32>, vector<1x8x8xf32>, vector<1x8x8xf32>, vector<1x8x8xf32> -> vector<4x8x8xf32>
    "tpu.trace_start"() <{level = 10 : i32, message = "htd,hsd->hts"}> : () -> ()
    %cst_36 = arith.constant dense<0.000000e+00> : vector<4x8x8xf32>
    %143 = tpu.matmul %124, %133, %cst_36 {dimension_numbers = #tpu.dot_dimension_numbers<[2], [2], [1], [1], [0, 0, 0, 1, 1, 1], [0], [0]>} : vector<4x8x8xf32>, vector<4x8x8xf32>, vector<4x8x8xf32> -> vector<4x8x8xf32>
    "tpu.trace_stop"() : () -> ()
    %144 = vector.broadcast %115 : vector<1x1x8xf32> to vector<4x8x8xf32>
    %145 = arith.addf %143, %144 : vector<4x8x8xf32>
    %cst_37 = arith.constant dense<0xFF800000> : vector<4x8xf32>
    %146 = vector.multi_reduction <maximumf>, %145, %cst_37 [2] : vector<4x8x8xf32> to vector<4x8xf32>
    %147 = vector.shape_cast %146 : vector<4x8xf32> to vector<4x8x1xf32>
    %148 = vector.broadcast %147 : vector<4x8x1xf32> to vector<4x8x8xf32>
    %149 = arith.subf %145, %148 : vector<4x8x8xf32>
    %150 = math.exp %149 : vector<4x8x8xf32>
    %cst_38 = arith.constant dense<0.000000e+00> : vector<4x8xf32>
    %151 = vector.multi_reduction <add>, %150, %cst_38 [2] : vector<4x8x8xf32> to vector<4x8xf32>
    %152 = vector.shape_cast %151 : vector<4x8xf32> to vector<4x8x1xf32>
    %153 = tpu.reciprocal %152 {approx = true} : vector<4x8x1xf32> -> vector<4x8x1xf32>
    %154 = vector.broadcast %153 : vector<4x8x1xf32> to vector<4x8x8xf32>
    %155 = arith.mulf %150, %154 : vector<4x8x8xf32>
    "tpu.trace_start"() <{level = 10 : i32, message = "hts,hsd->htd"}> : () -> ()
    %cst_39 = arith.constant dense<0.000000e+00> : vector<4x8x8xf32>
    %156 = tpu.matmul %155, %142, %cst_39 {dimension_numbers = #tpu.dot_dimension_numbers<[2], [1], [1], [2], [0, 0, 0, 1, 1, 2], [0], [0]>} : vector<4x8x8xf32>, vector<4x8x8xf32>, vector<4x8x8xf32> -> vector<4x8x8xf32>
    "tpu.trace_stop"() : () -> ()
    %157 = vector.extract_strided_slice %156 {offsets = [0, 0, 0], sizes = [1, 8, 8], strides = [1, 1, 1]} : vector<4x8x8xf32> to vector<1x8x8xf32>
    %158 = vector.shape_cast %157 : vector<1x8x8xf32> to vector<8x8xf32>
    %159 = vector.extract_strided_slice %156 {offsets = [1, 0, 0], sizes = [1, 8, 8], strides = [1, 1, 1]} : vector<4x8x8xf32> to vector<1x8x8xf32>
    %160 = vector.shape_cast %159 : vector<1x8x8xf32> to vector<8x8xf32>
    %161 = vector.extract_strided_slice %156 {offsets = [2, 0, 0], sizes = [1, 8, 8], strides = [1, 1, 1]} : vector<4x8x8xf32> to vector<1x8x8xf32>
    %162 = vector.shape_cast %161 : vector<1x8x8xf32> to vector<8x8xf32>
    %163 = vector.extract_strided_slice %156 {offsets = [3, 0, 0], sizes = [1, 8, 8], strides = [1, 1, 1]} : vector<4x8x8xf32> to vector<1x8x8xf32>
    %164 = vector.shape_cast %163 : vector<1x8x8xf32> to vector<8x8xf32>
    %165 = tpu.concatenate %158, %160, %162, %164 in 1 : vector<8x8xf32>, vector<8x8xf32>, vector<8x8xf32>, vector<8x8xf32> -> vector<8x32xf32>
    %166 = arith.truncf %165 : vector<8x32xf32> to vector<8x32xbf16>
    %c0_40 = arith.constant 0 : index
    %c0_41 = arith.constant 0 : index
    %c0_42 = arith.constant 0 : index
    %167 = vector.load %arg9[%c0_40, %c0_41, %c0_42] : memref<2x32x32xbf16, #tpu.memory_space<vmem>>, vector<1x32x32xbf16>
    %168 = vector.shape_cast %167 : vector<1x32x32xbf16> to vector<32x32xbf16>
    %cst_43 = arith.constant dense<0.000000e+00> : vector<8x32xf32>
    %169 = tpu.matmul %166, %168, %cst_43 {dimension_numbers = #tpu.dot_dimension_numbers<[1], [0], [0], [1], [0, 0, 1, 1], [], []>} : vector<8x32xbf16>, vector<32x32xbf16>, vector<8x32xf32> -> vector<8x32xf32>
    %170 = arith.addf %92, %169 : vector<8x32xf32>
    %171 = vector.extract_strided_slice %16 {offsets = [2, 0], sizes = [1, 32], strides = [1, 1]} : vector<3x32xf32> to vector<1x32xf32>
    %172 = arith.mulf %170, %170 : vector<8x32xf32>
    %cst_44 = arith.constant dense<0.000000e+00> : vector<8xf32>
    %173 = vector.multi_reduction <add>, %172, %cst_44 [1] : vector<8x32xf32> to vector<8xf32>
    %174 = vector.shape_cast %173 : vector<8xf32> to vector<8x1xf32>
    %cst_45 = arith.constant 3.200000e+01 : f32
    %175 = vector.broadcast %cst_45 : f32 to vector<8x1xf32>
    %176 = arith.divf %174, %175 : vector<8x1xf32>
    %cst_46 = arith.constant 9.99999997E-7 : f32
    %177 = vector.broadcast %cst_46 : f32 to vector<8x1xf32>
    %178 = arith.addf %176, %177 : vector<8x1xf32>
    %179 = math.rsqrt %178 : vector<8x1xf32>
    %180 = vector.broadcast %179 : vector<8x1xf32> to vector<8x32xf32>
    %181 = arith.mulf %170, %180 : vector<8x32xf32>
    %182 = vector.broadcast %171 : vector<1x32xf32> to vector<8x32xf32>
    %183 = arith.mulf %181, %182 : vector<8x32xf32>
    %184 = arith.truncf %183 : vector<8x32xf32> to vector<8x32xbf16>
    %c0_47 = arith.constant 0 : index
    %c0_48 = arith.constant 0 : index
    %c0_49 = arith.constant 0 : index
    %185 = vector.load %arg10[%c0_47, %c0_48, %c0_49] : memref<2x32x64xbf16, #tpu.memory_space<vmem>>, vector<1x32x64xbf16>
    %186 = vector.shape_cast %185 : vector<1x32x64xbf16> to vector<32x64xbf16>
    %cst_50 = arith.constant dense<0.000000e+00> : vector<8x64xf32>
    %187 = tpu.matmul %184, %186, %cst_50 {dimension_numbers = #tpu.dot_dimension_numbers<[1], [0], [0], [1], [0, 0, 1, 1], [], []>} : vector<8x32xbf16>, vector<32x64xbf16>, vector<8x64xf32> -> vector<8x64xf32>
    %cst_51 = arith.constant 0.000000e+00 : f32
    %188 = vector.broadcast %cst_51 : f32 to vector<8x64xf32>
    %189 = arith.maximumf %187, %188 : vector<8x64xf32>
    %190 = arith.truncf %189 : vector<8x64xf32> to vector<8x64xbf16>
    %c0_52 = arith.constant 0 : index
    %c0_53 = arith.constant 0 : index
    %c0_54 = arith.constant 0 : index
    %191 = vector.load %arg11[%c0_52, %c0_53, %c0_54] : memref<2x64x32xbf16, #tpu.memory_space<vmem>>, vector<1x64x32xbf16>
    %192 = vector.shape_cast %191 : vector<1x64x32xbf16> to vector<64x32xbf16>
    %cst_55 = arith.constant dense<0.000000e+00> : vector<8x32xf32>
    %193 = tpu.matmul %190, %192, %cst_55 {dimension_numbers = #tpu.dot_dimension_numbers<[1], [0], [0], [1], [0, 0, 1, 1], [], []>} : vector<8x64xbf16>, vector<64x32xbf16>, vector<8x32xf32> -> vector<8x32xf32>
    %194 = arith.addf %170, %193 : vector<8x32xf32>
    %195 = tpu.concatenate %35, %36, %113, %114 in 1 : vector<8x32xf32>, vector<8x32xf32>, vector<8x32xf32>, vector<8x32xf32> -> vector<8x128xf32>
    %c0_56 = arith.constant 0 : index
    %c0_57 = arith.constant 0 : index
    %c0_58 = arith.constant 0 : index
    %196 = vector.load %arg15[%c0_56, %c0_57, %c0_58] : memref<2x8x128xf32, #tpu.memory_space<vmem>>, vector<1x8x128xf32>
    %197 = vector.shape_cast %196 : vector<1x8x128xf32> to vector<8x128xf32>
    %198 = vector.shape_cast %195 : vector<8x128xf32> to vector<1x8x128xf32>
    tpu.vector_store %arg15[%c0_56, %c0_57, %c0_58], %198 {strides = array<i32>} : memref<2x8x128xf32, #tpu.memory_space<vmem>>, vector<1x8x128xf32>,
    %c1 = arith.constant 1 : index
    %c0_59 = arith.constant 0 : index
    %c0_60 = arith.constant 0 : index
    %199 = vector.load %arg4[%c1, %c0_59, %c0_60] : memref<2x3x32xf32, #tpu.memory_space<vmem>>, vector<1x3x32xf32>
    %200 = vector.shape_cast %199 : vector<1x3x32xf32> to vector<3x32xf32>
    %201 = vector.extract_strided_slice %200 {offsets = [0, 0], sizes = [1, 32], strides = [1, 1]} : vector<3x32xf32> to vector<1x32xf32>
    %202 = arith.mulf %194, %194 : vector<8x32xf32>
    %cst_61 = arith.constant dense<0.000000e+00> : vector<8xf32>
    %203 = vector.multi_reduction <add>, %202, %cst_61 [1] : vector<8x32xf32> to vector<8xf32>
    %204 = vector.shape_cast %203 : vector<8xf32> to vector<8x1xf32>
    %cst_62 = arith.constant 3.200000e+01 : f32
    %205 = vector.broadcast %cst_62 : f32 to vector<8x1xf32>
    %206 = arith.divf %204, %205 : vector<8x1xf32>
    %cst_63 = arith.constant 9.99999997E-7 : f32
    %207 = vector.broadcast %cst_63 : f32 to vector<8x1xf32>
    %208 = arith.addf %206, %207 : vector<8x1xf32>
    %209 = math.rsqrt %208 : vector<8x1xf32>
    %210 = vector.broadcast %209 : vector<8x1xf32> to vector<8x32xf32>
    %211 = arith.mulf %194, %210 : vector<8x32xf32>
    %212 = vector.broadcast %201 : vector<1x32xf32> to vector<8x32xf32>
    %213 = arith.mulf %211, %212 : vector<8x32xf32>
    %214 = arith.truncf %213 : vector<8x32xf32> to vector<8x32xbf16>
    %c1_64 = arith.constant 1 : index
    %c0_65 = arith.constant 0 : index
    %c0_66 = arith.constant 0 : index
    %215 = vector.load %arg5[%c1_64, %c0_65, %c0_66] : memref<2x32x96xbf16, #tpu.memory_space<vmem>>, vector<1x32x96xbf16>
    %216 = vector.shape_cast %215 : vector<1x32x96xbf16> to vector<32x96xbf16>
    %cst_67 = arith.constant dense<0.000000e+00> : vector<8x96xf32>
    %217 = tpu.matmul %214, %216, %cst_67 {dimension_numbers = #tpu.dot_dimension_numbers<[1], [0], [0], [1], [0, 0, 1, 1], [], []>} : vector<8x32xbf16>, vector<32x96xbf16>, vector<8x96xf32> -> vector<8x96xf32>
    %218 = vector.extract_strided_slice %217 {offsets = [0, 0], sizes = [8, 32], strides = [1, 1]} : vector<8x96xf32> to vector<8x32xf32>
    %219 = vector.extract_strided_slice %217 {offsets = [0, 32], sizes = [8, 32], strides = [1, 1]} : vector<8x96xf32> to vector<8x32xf32>
    %220 = vector.extract_strided_slice %217 {offsets = [0, 64], sizes = [8, 32], strides = [1, 1]} : vector<8x96xf32> to vector<8x32xf32>
    %221 = vector.shape_cast %7 : vector<8x8xf32> to vector<1x8x8xf32>
    %222 = vector.extract_strided_slice %218 {offsets = [0, 0], sizes = [8, 8], strides = [1, 1]} : vector<8x32xf32> to vector<8x8xf32>
    %223 = vector.extract_strided_slice %218 {offsets = [0, 8], sizes = [8, 8], strides = [1, 1]} : vector<8x32xf32> to vector<8x8xf32>
    %224 = vector.extract_strided_slice %218 {offsets = [0, 16], sizes = [8, 8], strides = [1, 1]} : vector<8x32xf32> to vector<8x8xf32>
    %225 = vector.extract_strided_slice %218 {offsets = [0, 24], sizes = [8, 8], strides = [1, 1]} : vector<8x32xf32> to vector<8x8xf32>
    %226 = vector.shape_cast %222 : vector<8x8xf32> to vector<1x8x8xf32>
    %227 = vector.shape_cast %223 : vector<8x8xf32> to vector<1x8x8xf32>
    %228 = vector.shape_cast %224 : vector<8x8xf32> to vector<1x8x8xf32>
    %229 = vector.shape_cast %225 : vector<8x8xf32> to vector<1x8x8xf32>
    %230 = tpu.concatenate %226, %227, %228, %229 in 0 : vector<1x8x8xf32>, vector<1x8x8xf32>, vector<1x8x8xf32>, vector<1x8x8xf32> -> vector<4x8x8xf32>
    %231 = vector.extract_strided_slice %219 {offsets = [0, 0], sizes = [8, 8], strides = [1, 1]} : vector<8x32xf32> to vector<8x8xf32>
    %232 = vector.extract_strided_slice %219 {offsets = [0, 8], sizes = [8, 8], strides = [1, 1]} : vector<8x32xf32> to vector<8x8xf32>
    %233 = vector.extract_strided_slice %219 {offsets = [0, 16], sizes = [8, 8], strides = [1, 1]} : vector<8x32xf32> to vector<8x8xf32>
    %234 = vector.extract_strided_slice %219 {offsets = [0, 24], sizes = [8, 8], strides = [1, 1]} : vector<8x32xf32> to vector<8x8xf32>
    %235 = vector.shape_cast %231 : vector<8x8xf32> to vector<1x8x8xf32>
    %236 = vector.shape_cast %232 : vector<8x8xf32> to vector<1x8x8xf32>
    %237 = vector.shape_cast %233 : vector<8x8xf32> to vector<1x8x8xf32>
    %238 = vector.shape_cast %234 : vector<8x8xf32> to vector<1x8x8xf32>
    %239 = tpu.concatenate %235, %236, %237, %238 in 0 : vector<1x8x8xf32>, vector<1x8x8xf32>, vector<1x8x8xf32>, vector<1x8x8xf32> -> vector<4x8x8xf32>
    %240 = vector.extract_strided_slice %220 {offsets = [0, 0], sizes = [8, 8], strides = [1, 1]} : vector<8x32xf32> to vector<8x8xf32>
    %241 = vector.extract_strided_slice %220 {offsets = [0, 8], sizes = [8, 8], strides = [1, 1]} : vector<8x32xf32> to vector<8x8xf32>
    %242 = vector.extract_strided_slice %220 {offsets = [0, 16], sizes = [8, 8], strides = [1, 1]} : vector<8x32xf32> to vector<8x8xf32>
    %243 = vector.extract_strided_slice %220 {offsets = [0, 24], sizes = [8, 8], strides = [1, 1]} : vector<8x32xf32> to vector<8x8xf32>
    %244 = vector.shape_cast %240 : vector<8x8xf32> to vector<1x8x8xf32>
    %245 = vector.shape_cast %241 : vector<8x8xf32> to vector<1x8x8xf32>
    %246 = vector.shape_cast %242 : vector<8x8xf32> to vector<1x8x8xf32>
    %247 = vector.shape_cast %243 : vector<8x8xf32> to vector<1x8x8xf32>
    %248 = tpu.concatenate %244, %245, %246, %247 in 0 : vector<1x8x8xf32>, vector<1x8x8xf32>, vector<1x8x8xf32>, vector<1x8x8xf32> -> vector<4x8x8xf32>
    "tpu.trace_start"() <{level = 10 : i32, message = "htd,hsd->hts"}> : () -> ()
    %cst_68 = arith.constant dense<0.000000e+00> : vector<4x8x8xf32>
    %249 = tpu.matmul %230, %239, %cst_68 {dimension_numbers = #tpu.dot_dimension_numbers<[2], [2], [1], [1], [0, 0, 0, 1, 1, 1], [0], [0]>} : vector<4x8x8xf32>, vector<4x8x8xf32>, vector<4x8x8xf32> -> vector<4x8x8xf32>
    "tpu.trace_stop"() : () -> ()
    %250 = vector.broadcast %221 : vector<1x8x8xf32> to vector<4x8x8xf32>
    %251 = arith.addf %249, %250 : vector<4x8x8xf32>
    %cst_69 = arith.constant dense<0xFF800000> : vector<4x8xf32>
    %252 = vector.multi_reduction <maximumf>, %251, %cst_69 [2] : vector<4x8x8xf32> to vector<4x8xf32>
    %253 = vector.shape_cast %252 : vector<4x8xf32> to vector<4x8x1xf32>
    %254 = vector.broadcast %253 : vector<4x8x1xf32> to vector<4x8x8xf32>
    %255 = arith.subf %251, %254 : vector<4x8x8xf32>
    %256 = math.exp %255 : vector<4x8x8xf32>
    %cst_70 = arith.constant dense<0.000000e+00> : vector<4x8xf32>
    %257 = vector.multi_reduction <add>, %256, %cst_70 [2] : vector<4x8x8xf32> to vector<4x8xf32>
    %258 = vector.shape_cast %257 : vector<4x8xf32> to vector<4x8x1xf32>
    %259 = tpu.reciprocal %258 {approx = true} : vector<4x8x1xf32> -> vector<4x8x1xf32>
    %260 = vector.broadcast %259 : vector<4x8x1xf32> to vector<4x8x8xf32>
    %261 = arith.mulf %256, %260 : vector<4x8x8xf32>
    "tpu.trace_start"() <{level = 10 : i32, message = "hts,hsd->htd"}> : () -> ()
    %cst_71 = arith.constant dense<0.000000e+00> : vector<4x8x8xf32>
    %262 = tpu.matmul %261, %248, %cst_71 {dimension_numbers = #tpu.dot_dimension_numbers<[2], [1], [1], [2], [0, 0, 0, 1, 1, 2], [0], [0]>} : vector<4x8x8xf32>, vector<4x8x8xf32>, vector<4x8x8xf32> -> vector<4x8x8xf32>
    "tpu.trace_stop"() : () -> ()
    %263 = vector.extract_strided_slice %262 {offsets = [0, 0, 0], sizes = [1, 8, 8], strides = [1, 1, 1]} : vector<4x8x8xf32> to vector<1x8x8xf32>
    %264 = vector.shape_cast %263 : vector<1x8x8xf32> to vector<8x8xf32>
    %265 = vector.extract_strided_slice %262 {offsets = [1, 0, 0], sizes = [1, 8, 8], strides = [1, 1, 1]} : vector<4x8x8xf32> to vector<1x8x8xf32>
    %266 = vector.shape_cast %265 : vector<1x8x8xf32> to vector<8x8xf32>
    %267 = vector.extract_strided_slice %262 {offsets = [2, 0, 0], sizes = [1, 8, 8], strides = [1, 1, 1]} : vector<4x8x8xf32> to vector<1x8x8xf32>
    %268 = vector.shape_cast %267 : vector<1x8x8xf32> to vector<8x8xf32>
    %269 = vector.extract_strided_slice %262 {offsets = [3, 0, 0], sizes = [1, 8, 8], strides = [1, 1, 1]} : vector<4x8x8xf32> to vector<1x8x8xf32>
    %270 = vector.shape_cast %269 : vector<1x8x8xf32> to vector<8x8xf32>
    %271 = tpu.concatenate %264, %266, %268, %270 in 1 : vector<8x8xf32>, vector<8x8xf32>, vector<8x8xf32>, vector<8x8xf32> -> vector<8x32xf32>
    %272 = arith.truncf %271 : vector<8x32xf32> to vector<8x32xbf16>
    %c1_72 = arith.constant 1 : index
    %c0_73 = arith.constant 0 : index
    %c0_74 = arith.constant 0 : index
    %273 = vector.load %arg6[%c1_72, %c0_73, %c0_74] : memref<2x32x32xbf16, #tpu.memory_space<vmem>>, vector<1x32x32xbf16>
    %274 = vector.shape_cast %273 : vector<1x32x32xbf16> to vector<32x32xbf16>
    %cst_75 = arith.constant dense<0.000000e+00> : vector<8x32xf32>
    %275 = tpu.matmul %272, %274, %cst_75 {dimension_numbers = #tpu.dot_dimension_numbers<[1], [0], [0], [1], [0, 0, 1, 1], [], []>} : vector<8x32xbf16>, vector<32x32xbf16>, vector<8x32xf32> -> vector<8x32xf32>
    %276 = arith.addf %194, %275 : vector<8x32xf32>
    %277 = vector.extract_strided_slice %200 {offsets = [1, 0], sizes = [1, 32], strides = [1, 1]} : vector<3x32xf32> to vector<1x32xf32>
    %278 = arith.mulf %276, %276 : vector<8x32xf32>
    %cst_76 = arith.constant dense<0.000000e+00> : vector<8xf32>
    %279 = vector.multi_reduction <add>, %278, %cst_76 [1] : vector<8x32xf32> to vector<8xf32>
    %280 = vector.shape_cast %279 : vector<8xf32> to vector<8x1xf32>
    %cst_77 = arith.constant 3.200000e+01 : f32
    %281 = vector.broadcast %cst_77 : f32 to vector<8x1xf32>
    %282 = arith.divf %280, %281 : vector<8x1xf32>
    %cst_78 = arith.constant 9.99999997E-7 : f32
    %283 = vector.broadcast %cst_78 : f32 to vector<8x1xf32>
    %284 = arith.addf %282, %283 : vector<8x1xf32>
    %285 = math.rsqrt %284 : vector<8x1xf32>
    %286 = vector.broadcast %285 : vector<8x1xf32> to vector<8x32xf32>
    %287 = arith.mulf %276, %286 : vector<8x32xf32>
    %288 = vector.broadcast %277 : vector<1x32xf32> to vector<8x32xf32>
    %289 = arith.mulf %287, %288 : vector<8x32xf32>
    %290 = arith.truncf %289 : vector<8x32xf32> to vector<8x32xbf16>
    %c1_79 = arith.constant 1 : index
    %c0_80 = arith.constant 0 : index
    %c0_81 = arith.constant 0 : index
    %291 = vector.load %arg7[%c1_79, %c0_80, %c0_81] : memref<2x32x32xbf16, #tpu.memory_space<vmem>>, vector<1x32x32xbf16>
    %292 = vector.shape_cast %291 : vector<1x32x32xbf16> to vector<32x32xbf16>
    %cst_82 = arith.constant dense<0.000000e+00> : vector<8x32xf32>
    %293 = tpu.matmul %290, %292, %cst_82 {dimension_numbers = #tpu.dot_dimension_numbers<[1], [0], [0], [1], [0, 0, 1, 1], [], []>} : vector<8x32xbf16>, vector<32x32xbf16>, vector<8x32xf32> -> vector<8x32xf32>
    %c1_83 = arith.constant 1 : index
    %c0_84 = arith.constant 0 : index
    %c0_85 = arith.constant 0 : index
    %294 = vector.load %arg8[%c1_83, %c0_84, %c0_85] : memref<2x32x64xbf16, #tpu.memory_space<vmem>>, vector<1x32x64xbf16>
    %295 = vector.shape_cast %294 : vector<1x32x64xbf16> to vector<32x64xbf16>
    %cst_86 = arith.constant dense<0.000000e+00> : vector<8x64xf32>
    %296 = tpu.matmul %14, %295, %cst_86 {dimension_numbers = #tpu.dot_dimension_numbers<[1], [0], [0], [1], [0, 0, 1, 1], [], []>} : vector<8x32xbf16>, vector<32x64xbf16>, vector<8x64xf32> -> vector<8x64xf32>
    %297 = vector.extract_strided_slice %296 {offsets = [0, 0], sizes = [8, 32], strides = [1, 1]} : vector<8x64xf32> to vector<8x32xf32>
    %298 = vector.extract_strided_slice %296 {offsets = [0, 32], sizes = [8, 32], strides = [1, 1]} : vector<8x64xf32> to vector<8x32xf32>
    %299 = vector.shape_cast %13 : vector<1x8xf32> to vector<1x1x8xf32>
    %300 = vector.extract_strided_slice %293 {offsets = [0, 0], sizes = [8, 8], strides = [1, 1]} : vector<8x32xf32> to vector<8x8xf32>
    %301 = vector.extract_strided_slice %293 {offsets = [0, 8], sizes = [8, 8], strides = [1, 1]} : vector<8x32xf32> to vector<8x8xf32>
    %302 = vector.extract_strided_slice %293 {offsets = [0, 16], sizes = [8, 8], strides = [1, 1]} : vector<8x32xf32> to vector<8x8xf32>
    %303 = vector.extract_strided_slice %293 {offsets = [0, 24], sizes = [8, 8], strides = [1, 1]} : vector<8x32xf32> to vector<8x8xf32>
    %304 = vector.shape_cast %300 : vector<8x8xf32> to vector<1x8x8xf32>
    %305 = vector.shape_cast %301 : vector<8x8xf32> to vector<1x8x8xf32>
    %306 = vector.shape_cast %302 : vector<8x8xf32> to vector<1x8x8xf32>
    %307 = vector.shape_cast %303 : vector<8x8xf32> to vector<1x8x8xf32>
    %308 = tpu.concatenate %304, %305, %306, %307 in 0 : vector<1x8x8xf32>, vector<1x8x8xf32>, vector<1x8x8xf32>, vector<1x8x8xf32> -> vector<4x8x8xf32>
    %309 = vector.extract_strided_slice %297 {offsets = [0, 0], sizes = [8, 8], strides = [1, 1]} : vector<8x32xf32> to vector<8x8xf32>
    %310 = vector.extract_strided_slice %297 {offsets = [0, 8], sizes = [8, 8], strides = [1, 1]} : vector<8x32xf32> to vector<8x8xf32>
    %311 = vector.extract_strided_slice %297 {offsets = [0, 16], sizes = [8, 8], strides = [1, 1]} : vector<8x32xf32> to vector<8x8xf32>
    %312 = vector.extract_strided_slice %297 {offsets = [0, 24], sizes = [8, 8], strides = [1, 1]} : vector<8x32xf32> to vector<8x8xf32>
    %313 = vector.shape_cast %309 : vector<8x8xf32> to vector<1x8x8xf32>
    %314 = vector.shape_cast %310 : vector<8x8xf32> to vector<1x8x8xf32>
    %315 = vector.shape_cast %311 : vector<8x8xf32> to vector<1x8x8xf32>
    %316 = vector.shape_cast %312 : vector<8x8xf32> to vector<1x8x8xf32>
    %317 = tpu.concatenate %313, %314, %315, %316 in 0 : vector<1x8x8xf32>, vector<1x8x8xf32>, vector<1x8x8xf32>, vector<1x8x8xf32> -> vector<4x8x8xf32>
    %318 = vector.extract_strided_slice %298 {offsets = [0, 0], sizes = [8, 8], strides = [1, 1]} : vector<8x32xf32> to vector<8x8xf32>
    %319 = vector.extract_strided_slice %298 {offsets = [0, 8], sizes = [8, 8], strides = [1, 1]} : vector<8x32xf32> to vector<8x8xf32>
    %320 = vector.extract_strided_slice %298 {offsets = [0, 16], sizes = [8, 8], strides = [1, 1]} : vector<8x32xf32> to vector<8x8xf32>
    %321 = vector.extract_strided_slice %298 {offsets = [0, 24], sizes = [8, 8], strides = [1, 1]} : vector<8x32xf32> to vector<8x8xf32>
    %322 = vector.shape_cast %318 : vector<8x8xf32> to vector<1x8x8xf32>
    %323 = vector.shape_cast %319 : vector<8x8xf32> to vector<1x8x8xf32>
    %324 = vector.shape_cast %320 : vector<8x8xf32> to vector<1x8x8xf32>
    %325 = vector.shape_cast %321 : vector<8x8xf32> to vector<1x8x8xf32>
    %326 = tpu.concatenate %322, %323, %324, %325 in 0 : vector<1x8x8xf32>, vector<1x8x8xf32>, vector<1x8x8xf32>, vector<1x8x8xf32> -> vector<4x8x8xf32>
    "tpu.trace_start"() <{level = 10 : i32, message = "htd,hsd->hts"}> : () -> ()
    %cst_87 = arith.constant dense<0.000000e+00> : vector<4x8x8xf32>
    %327 = tpu.matmul %308, %317, %cst_87 {dimension_numbers = #tpu.dot_dimension_numbers<[2], [2], [1], [1], [0, 0, 0, 1, 1, 1], [0], [0]>} : vector<4x8x8xf32>, vector<4x8x8xf32>, vector<4x8x8xf32> -> vector<4x8x8xf32>
    "tpu.trace_stop"() : () -> ()
    %328 = vector.broadcast %299 : vector<1x1x8xf32> to vector<4x8x8xf32>
    %329 = arith.addf %327, %328 : vector<4x8x8xf32>
    %cst_88 = arith.constant dense<0xFF800000> : vector<4x8xf32>
    %330 = vector.multi_reduction <maximumf>, %329, %cst_88 [2] : vector<4x8x8xf32> to vector<4x8xf32>
    %331 = vector.shape_cast %330 : vector<4x8xf32> to vector<4x8x1xf32>
    %332 = vector.broadcast %331 : vector<4x8x1xf32> to vector<4x8x8xf32>
    %333 = arith.subf %329, %332 : vector<4x8x8xf32>
    %334 = math.exp %333 : vector<4x8x8xf32>
    %cst_89 = arith.constant dense<0.000000e+00> : vector<4x8xf32>
    %335 = vector.multi_reduction <add>, %334, %cst_89 [2] : vector<4x8x8xf32> to vector<4x8xf32>
    %336 = vector.shape_cast %335 : vector<4x8xf32> to vector<4x8x1xf32>
    %337 = tpu.reciprocal %336 {approx = true} : vector<4x8x1xf32> -> vector<4x8x1xf32>
    %338 = vector.broadcast %337 : vector<4x8x1xf32> to vector<4x8x8xf32>
    %339 = arith.mulf %334, %338 : vector<4x8x8xf32>
    "tpu.trace_start"() <{level = 10 : i32, message = "hts,hsd->htd"}> : () -> ()
    %cst_90 = arith.constant dense<0.000000e+00> : vector<4x8x8xf32>
    %340 = tpu.matmul %339, %326, %cst_90 {dimension_numbers = #tpu.dot_dimension_numbers<[2], [1], [1], [2], [0, 0, 0, 1, 1, 2], [0], [0]>} : vector<4x8x8xf32>, vector<4x8x8xf32>, vector<4x8x8xf32> -> vector<4x8x8xf32>
    "tpu.trace_stop"() : () -> ()
    %341 = vector.extract_strided_slice %340 {offsets = [0, 0, 0], sizes = [1, 8, 8], strides = [1, 1, 1]} : vector<4x8x8xf32> to vector<1x8x8xf32>
    %342 = vector.shape_cast %341 : vector<1x8x8xf32> to vector<8x8xf32>
    %343 = vector.extract_strided_slice %340 {offsets = [1, 0, 0], sizes = [1, 8, 8], strides = [1, 1, 1]} : vector<4x8x8xf32> to vector<1x8x8xf32>
    %344 = vector.shape_cast %343 : vector<1x8x8xf32> to vector<8x8xf32>
    %345 = vector.extract_strided_slice %340 {offsets = [2, 0, 0], sizes = [1, 8, 8], strides = [1, 1, 1]} : vector<4x8x8xf32> to vector<1x8x8xf32>
    %346 = vector.shape_cast %345 : vector<1x8x8xf32> to vector<8x8xf32>
    %347 = vector.extract_strided_slice %340 {offsets = [3, 0, 0], sizes = [1, 8, 8], strides = [1, 1, 1]} : vector<4x8x8xf32> to vector<1x8x8xf32>
    %348 = vector.shape_cast %347 : vector<1x8x8xf32> to vector<8x8xf32>
    %349 = tpu.concatenate %342, %344, %346, %348 in 1 : vector<8x8xf32>, vector<8x8xf32>, vector<8x8xf32>, vector<8x8xf32> -> vector<8x32xf32>
    %350 = arith.truncf %349 : vector<8x32xf32> to vector<8x32xbf16>
    %c1_91 = arith.constant 1 : index
    %c0_92 = arith.constant 0 : index
    %c0_93 = arith.constant 0 : index
    %351 = vector.load %arg9[%c1_91, %c0_92, %c0_93] : memref<2x32x32xbf16, #tpu.memory_space<vmem>>, vector<1x32x32xbf16>
    %352 = vector.shape_cast %351 : vector<1x32x32xbf16> to vector<32x32xbf16>
    %cst_94 = arith.constant dense<0.000000e+00> : vector<8x32xf32>
    %353 = tpu.matmul %350, %352, %cst_94 {dimension_numbers = #tpu.dot_dimension_numbers<[1], [0], [0], [1], [0, 0, 1, 1], [], []>} : vector<8x32xbf16>, vector<32x32xbf16>, vector<8x32xf32> -> vector<8x32xf32>
    %354 = arith.addf %276, %353 : vector<8x32xf32>
    %355 = vector.extract_strided_slice %200 {offsets = [2, 0], sizes = [1, 32], strides = [1, 1]} : vector<3x32xf32> to vector<1x32xf32>
    %356 = arith.mulf %354, %354 : vector<8x32xf32>
    %cst_95 = arith.constant dense<0.000000e+00> : vector<8xf32>
    %357 = vector.multi_reduction <add>, %356, %cst_95 [1] : vector<8x32xf32> to vector<8xf32>
    %358 = vector.shape_cast %357 : vector<8xf32> to vector<8x1xf32>
    %cst_96 = arith.constant 3.200000e+01 : f32
    %359 = vector.broadcast %cst_96 : f32 to vector<8x1xf32>
    %360 = arith.divf %358, %359 : vector<8x1xf32>
    %cst_97 = arith.constant 9.99999997E-7 : f32
    %361 = vector.broadcast %cst_97 : f32 to vector<8x1xf32>
    %362 = arith.addf %360, %361 : vector<8x1xf32>
    %363 = math.rsqrt %362 : vector<8x1xf32>
    %364 = vector.broadcast %363 : vector<8x1xf32> to vector<8x32xf32>
    %365 = arith.mulf %354, %364 : vector<8x32xf32>
    %366 = vector.broadcast %355 : vector<1x32xf32> to vector<8x32xf32>
    %367 = arith.mulf %365, %366 : vector<8x32xf32>
    %368 = arith.truncf %367 : vector<8x32xf32> to vector<8x32xbf16>
    %c1_98 = arith.constant 1 : index
    %c0_99 = arith.constant 0 : index
    %c0_100 = arith.constant 0 : index
    %369 = vector.load %arg10[%c1_98, %c0_99, %c0_100] : memref<2x32x64xbf16, #tpu.memory_space<vmem>>, vector<1x32x64xbf16>
    %370 = vector.shape_cast %369 : vector<1x32x64xbf16> to vector<32x64xbf16>
    %cst_101 = arith.constant dense<0.000000e+00> : vector<8x64xf32>
    %371 = tpu.matmul %368, %370, %cst_101 {dimension_numbers = #tpu.dot_dimension_numbers<[1], [0], [0], [1], [0, 0, 1, 1], [], []>} : vector<8x32xbf16>, vector<32x64xbf16>, vector<8x64xf32> -> vector<8x64xf32>
    %cst_102 = arith.constant 0.000000e+00 : f32
    %372 = vector.broadcast %cst_102 : f32 to vector<8x64xf32>
    %373 = arith.maximumf %371, %372 : vector<8x64xf32>
    %374 = arith.truncf %373 : vector<8x64xf32> to vector<8x64xbf16>
    %c1_103 = arith.constant 1 : index
    %c0_104 = arith.constant 0 : index
    %c0_105 = arith.constant 0 : index
    %375 = vector.load %arg11[%c1_103, %c0_104, %c0_105] : memref<2x64x32xbf16, #tpu.memory_space<vmem>>, vector<1x64x32xbf16>
    %376 = vector.shape_cast %375 : vector<1x64x32xbf16> to vector<64x32xbf16>
    %cst_106 = arith.constant dense<0.000000e+00> : vector<8x32xf32>
    %377 = tpu.matmul %374, %376, %cst_106 {dimension_numbers = #tpu.dot_dimension_numbers<[1], [0], [0], [1], [0, 0, 1, 1], [], []>} : vector<8x64xbf16>, vector<64x32xbf16>, vector<8x32xf32> -> vector<8x32xf32>
    %378 = arith.addf %354, %377 : vector<8x32xf32>
    %379 = tpu.concatenate %219, %220, %297, %298 in 1 : vector<8x32xf32>, vector<8x32xf32>, vector<8x32xf32>, vector<8x32xf32> -> vector<8x128xf32>
    %c1_107 = arith.constant 1 : index
    %c0_108 = arith.constant 0 : index
    %c0_109 = arith.constant 0 : index
    %380 = vector.load %arg15[%c1_107, %c0_108, %c0_109] : memref<2x8x128xf32, #tpu.memory_space<vmem>>, vector<1x8x128xf32>
    %381 = vector.shape_cast %380 : vector<1x8x128xf32> to vector<8x128xf32>
    %382 = vector.shape_cast %379 : vector<8x128xf32> to vector<1x8x128xf32>
    tpu.vector_store %arg15[%c1_107, %c0_108, %c0_109], %382 {strides = array<i32>} : memref<2x8x128xf32, #tpu.memory_space<vmem>>, vector<1x8x128xf32>,
    %c0_110 = arith.constant 0 : index
    %c0_111 = arith.constant 0 : index
    %383 = vector.load %arg12[%c0_110, %c0_111] : memref<1x32xf32, #tpu.memory_space<vmem>>, vector<1x32xf32>
    %384 = arith.mulf %378, %378 : vector<8x32xf32>
    %cst_112 = arith.constant dense<0.000000e+00> : vector<8xf32>
    %385 = vector.multi_reduction <add>, %384, %cst_112 [1] : vector<8x32xf32> to vector<8xf32>
    %386 = vector.shape_cast %385 : vector<8xf32> to vector<8x1xf32>
    %cst_113 = arith.constant 3.200000e+01 : f32
    %387 = vector.broadcast %cst_113 : f32 to vector<8x1xf32>
    %388 = arith.divf %386, %387 : vector<8x1xf32>
    %cst_114 = arith.constant 9.99999997E-7 : f32
    %389 = vector.broadcast %cst_114 : f32 to vector<8x1xf32>
    %390 = arith.addf %388, %389 : vector<8x1xf32>
    %391 = math.rsqrt %390 : vector<8x1xf32>
    %392 = vector.broadcast %391 : vector<8x1xf32> to vector<8x32xf32>
    %393 = arith.mulf %378, %392 : vector<8x32xf32>
    %394 = vector.broadcast %383 : vector<1x32xf32> to vector<8x32xf32>
    %395 = arith.mulf %393, %394 : vector<8x32xf32>
    %396 = arith.truncf %395 : vector<8x32xf32> to vector<8x32xbf16>
    %c0_115 = arith.constant 0 : index
    %c0_116 = arith.constant 0 : index
    %397 = vector.load %arg13[%c0_115, %c0_116] : memref<32x128xbf16, #tpu.memory_space<vmem>>, vector<32x128xbf16>
    %cst_117 = arith.constant dense<0.000000e+00> : vector<8x128xf32>
    %398 = tpu.matmul %396, %397, %cst_117 {dimension_numbers = #tpu.dot_dimension_numbers<[1], [0], [0], [1], [0, 0, 1, 1], [], []>} : vector<8x32xbf16>, vector<32x128xbf16>, vector<8x128xf32> -> vector<8x128xf32>
    %c0_118 = arith.constant 0 : index
    %c0_119 = arith.constant 0 : index
    %399 = vector.load %arg14[%c0_118, %c0_119] : memref<8x128xf32, #tpu.memory_space<vmem>>, vector<8x128xf32>
    tpu.vector_store %arg14[%c0_118, %c0_119], %398 {strides = array<i32>} : memref<8x128xf32, #tpu.memory_space<vmem>>, vector<8x128xf32>,
    return
  }
  func.func @transform_0(%arg0: i32) -> (i32, i32) {
    %c0_i32 = arith.constant 0 : i32
    %c0_i32_0 = arith.constant 0 : i32
    %c0_i32_1 = arith.constant 0 : i32
    return %c0_i32, %c0_i32_0 : i32, i32
  }
  func.func @transform_1(%arg0: i32) -> (i32, i32) {
    %c0_i32 = arith.constant 0 : i32
    %c0_i32_0 = arith.constant 0 : i32
    return %arg0, %c0_i32 : i32, i32
  }
  func.func @transform_2(%arg0: i32) -> (i32, i32) {
    %c0_i32 = arith.constant 0 : i32
    %c0_i32_0 = arith.constant 0 : i32
    return %arg0, %c0_i32 : i32, i32
  }
  func.func @transform_3(%arg0: i32) -> (i32, i32, i32) {
    %c0_i32 = arith.constant 0 : i32
    %c0_i32_0 = arith.constant 0 : i32
    %c0_i32_1 = arith.constant 0 : i32
    %c0_i32_2 = arith.constant 0 : i32
    return %c0_i32, %c0_i32_0, %c0_i32_1 : i32, i32, i32
  }
  func.func @transform_4(%arg0: i32) -> (i32, i32, i32) {
    %c0_i32 = arith.constant 0 : i32
    %c0_i32_0 = arith.constant 0 : i32
    %c0_i32_1 = arith.constant 0 : i32
    %c0_i32_2 = arith.constant 0 : i32
    return %c0_i32, %c0_i32_0, %c0_i32_1 : i32, i32, i32
  }
  func.func @transform_5(%arg0: i32) -> (i32, i32, i32) {
    %c0_i32 = arith.constant 0 : i32
    %c0_i32_0 = arith.constant 0 : i32
    %c0_i32_1 = arith.constant 0 : i32
    %c0_i32_2 = arith.constant 0 : i32
    return %c0_i32, %c0_i32_0, %c0_i32_1 : i32, i32, i32
  }
  func.func @transform_6(%arg0: i32) -> (i32, i32, i32) {
    %c0_i32 = arith.constant 0 : i32
    %c0_i32_0 = arith.constant 0 : i32
    %c0_i32_1 = arith.constant 0 : i32
    %c0_i32_2 = arith.constant 0 : i32
    return %c0_i32, %c0_i32_0, %c0_i32_1 : i32, i32, i32
  }
  func.func @transform_7(%arg0: i32) -> (i32, i32, i32) {
    %c0_i32 = arith.constant 0 : i32
    %c0_i32_0 = arith.constant 0 : i32
    %c0_i32_1 = arith.constant 0 : i32
    %c0_i32_2 = arith.constant 0 : i32
    return %c0_i32, %c0_i32_0, %c0_i32_1 : i32, i32, i32
  }
  func.func @transform_8(%arg0: i32) -> (i32, i32, i32) {
    %c0_i32 = arith.constant 0 : i32
    %c0_i32_0 = arith.constant 0 : i32
    %c0_i32_1 = arith.constant 0 : i32
    %c0_i32_2 = arith.constant 0 : i32
    return %c0_i32, %c0_i32_0, %c0_i32_1 : i32, i32, i32
  }
  func.func @transform_9(%arg0: i32) -> (i32, i32, i32) {
    %c0_i32 = arith.constant 0 : i32
    %c0_i32_0 = arith.constant 0 : i32
    %c0_i32_1 = arith.constant 0 : i32
    %c0_i32_2 = arith.constant 0 : i32
    return %c0_i32, %c0_i32_0, %c0_i32_1 : i32, i32, i32
  }
  func.func @transform_10(%arg0: i32) -> (i32, i32, i32) {
    %c0_i32 = arith.constant 0 : i32
    %c0_i32_0 = arith.constant 0 : i32
    %c0_i32_1 = arith.constant 0 : i32
    %c0_i32_2 = arith.constant 0 : i32
    return %c0_i32, %c0_i32_0, %c0_i32_1 : i32, i32, i32
  }
  func.func @transform_11(%arg0: i32) -> (i32, i32) {
    %c0_i32 = arith.constant 0 : i32
    %c0_i32_0 = arith.constant 0 : i32
    %c0_i32_1 = arith.constant 0 : i32
    return %c0_i32, %c0_i32_0 : i32, i32
  }
  func.func @transform_12(%arg0: i32) -> (i32, i32) {
    %c0_i32 = arith.constant 0 : i32
    %c0_i32_0 = arith.constant 0 : i32
    %c0_i32_1 = arith.constant 0 : i32
    return %c0_i32, %c0_i32_0 : i32, i32
  }
  func.func @transform_13(%arg0: i32) -> (i32, i32) {
    %c0_i32 = arith.constant 0 : i32
    %c0_i32_0 = arith.constant 0 : i32
    return %arg0, %c0_i32 : i32, i32
  }
  func.func @transform_14(%arg0: i32) -> (i32, i32, i32) {
    %c0_i32 = arith.constant 0 : i32
    %c0_i32_0 = arith.constant 0 : i32
    %c0_i32_1 = arith.constant 0 : i32
    return %c0_i32, %arg0, %c0_i32_0 : i32, i32, i32
  }
}

</mosaic_0001>

<llo_original>
// kernel: squeeze.15
$region0: #{squeeze.15}
  %s0 = inlined_call_operand.vmem [shape: f32[1,16,128], index: 0, kind: input, shape index: {}]
  %s1 = inlined_call_operand.vmem [shape: f32[2,8,4,4,8], index: 1, kind: output, shape index: {}]
  $region1: #{squeeze.15} parent=0
    #allocation0 [shape = 'u8[262144]{0}', space=vmem, size = 0x40000, scoped, tag = 'scoped mem for output reshape']
    %v2 = vld [vmem:[%s0] sm:$0xff]
    %vm3 = vcmask 64512
    %4 = vst.msk [vmem:[#allocation0] sm:$0x1] %vm3, %v2
    %s5 = scalar_lea.vmem [#allocation0], 31
    %6 = vst.msk [vmem:[%s5] sm:$0x2] %vm3, %v2
    %s7 = scalar_lea.vmem [#allocation0], 62
    %8 = vst.msk [vmem:[%s7] sm:$0x4] %vm3, %v2
    %s9 = scalar_lea.vmem [#allocation0], 93
    %10 = vst.msk [vmem:[%s9] sm:$0x8] %vm3, %v2
    %s11 = scalar_lea.vmem [#allocation0], 124
    %12 = vst.msk [vmem:[%s11] sm:$0x10] %vm3, %v2
    %s13 = scalar_lea.vmem [#allocation0], 155
    %14 = vst.msk [vmem:[%s13] sm:$0x20] %vm3, %v2
    %s15 = scalar_lea.vmem [#allocation0], 186
    %16 = vst.msk [vmem:[%s15] sm:$0x40] %vm3, %v2
    %s17 = scalar_lea.vmem [#allocation0], 217
    %18 = vst.msk [vmem:[%s17] sm:$0x80] %vm3, %v2
    %s19 = scalar_lea.vmem %s0, 8
    %v20 = vld [vmem:[%s19] sm:$0xff]
    %vm21 = vcmask 64512
    %s22 = scalar_lea.vmem [#allocation0], 256
    %23 = vst.msk [vmem:[%s22] sm:$0x1] %vm21, %v20
    %s24 = scalar_lea.vmem [#allocation0], 287
    %25 = vst.msk [vmem:[%s24] sm:$0x2] %vm21, %v20
    %s26 = scalar_lea.vmem [#allocation0], 318
    %27 = vst.msk [vmem:[%s26] sm:$0x4] %vm21, %v20
    %s28 = scalar_lea.vmem [#allocation0], 349
    %29 = vst.msk [vmem:[%s28] sm:$0x8] %vm21, %v20
    %s30 = scalar_lea.vmem [#allocation0], 380
    %31 = vst.msk [vmem:[%s30] sm:$0x10] %vm21, %v20
    %s32 = scalar_lea.vmem [#allocation0], 411
    %33 = vst.msk [vmem:[%s32] sm:$0x20] %vm21, %v20
    %s34 = scalar_lea.vmem [#allocation0], 442
    %35 = vst.msk [vmem:[%s34] sm:$0x40] %vm21, %v20
    %s36 = scalar_lea.vmem [#allocation0], 473
    %37 = vst.msk [vmem:[%s36] sm:$0x80] %vm21, %v20
    %v38 = vld [vmem:[%s0] sm:$0xff]
    %39 = vrot.lane.b32.xlu0 %v38, 120
    %v40 = vpop.permute.xlu0 %39
    %vm41 = vcmask 64512
    %s42 = scalar_lea.vmem [#allocation0], 1
    %43 = vst.msk [vmem:[%s42] sm:$0x1] %vm41, %v40
    %s44 = scalar_lea.vmem [#allocation0], 32
    %45 = vst.msk [vmem:[%s44] sm:$0x2] %vm41, %v40
    %s46 = scalar_lea.vmem [#allocation0], 63
    %47 = vst.msk [vmem:[%s46] sm:$0x4] %vm41, %v40
    %s48 = scalar_lea.vmem [#allocation0], 94
    %49 = vst.msk [vmem:[%s48] sm:$0x8] %vm41, %v40
    %s50 = scalar_lea.vmem [#allocation0], 125
    %51 = vst.msk [vmem:[%s50] sm:$0x10] %vm41, %v40
    %s52 = scalar_lea.vmem [#allocation0], 156
    %53 = vst.msk [vmem:[%s52] sm:$0x20] %vm41, %v40
    %s54 = scalar_lea.vmem [#allocation0], 187
    %55 = vst.msk [vmem:[%s54] sm:$0x40] %vm41, %v40
    %s56 = scalar_lea.vmem [#allocation0], 218
    %57 = vst.msk [vmem:[%s56] sm:$0x80] %vm41, %v40
    %s58 = scalar_lea.vmem %s0, 8
    %v59 = vld [vmem:[%s58] sm:$0xff]
    %60 = vrot.lane.b32.xlu0 %v59, 120
    %v61 = vpop.permute.xlu0 %60
    %vm62 = vcmask 64512
    %s63 = scalar_lea.vmem [#allocation0], 257
    %64 = vst.msk [vmem:[%s63] sm:$0x1] %vm62, %v61
    %s65 = scalar_lea.vmem [#allocation0], 288
    %66 = vst.msk [vmem:[%s65] sm:$0x2] %vm62, %v61
    %s67 = scalar_lea.vmem [#allocation0], 319
    %68 = vst.msk [vmem:[%s67] sm:$0x4] %vm62, %v61
    %s69 = scalar_lea.vmem [#allocation0], 350
    %70 = vst.msk [vmem:[%s69] sm:$0x8] %vm62, %v61
    %s71 = scalar_lea.vmem [#allocation0], 381
    %72 = vst.msk [vmem:[%s71] sm:$0x10] %vm62, %v61
    %s73 = scalar_lea.vmem [#allocation0], 412
    %74 = vst.msk [vmem:[%s73] sm:$0x20] %vm62, %v61
    %s75 = scalar_lea.vmem [#allocation0], 443
    %76 = vst.msk [vmem:[%s75] sm:$0x40] %vm62, %v61
    %s77 = scalar_lea.vmem [#allocation0], 474
    %78 = vst.msk [vmem:[%s77] sm:$0x80] %vm62, %v61
    %v79 = vld [vmem:[%s0] sm:$0xff]
    %80 = vrot.lane.b32.xlu0 %v79, 112
    %v81 = vpop.permute.xlu0 %80
    %vm82 = vcmask 64512
    %s83 = scalar_lea.vmem [#allocation0], 2
    %84 = vst.msk [vmem:[%s83] sm:$0x1] %vm82, %v81
    %s85 = scalar_lea.vmem [#allocation0], 33
    %86 = vst.msk [vmem:[%s85] sm:$0x2] %vm82, %v81
    %s87 = scalar_lea.vmem [#allocation0], 64
    %88 = vst.msk [vmem:[%s87] sm:$0x4] %vm82, %v81
    %s89 = scalar_lea.vmem [#allocation0], 95
    %90 = vst.msk [vmem:[%s89] sm:$0x8] %vm82, %v81
    %s91 = scalar_lea.vmem [#allocation0], 126
    %92 = vst.msk [vmem:[%s91] sm:$0x10] %vm82, %v81
    %s93 = scalar_lea.vmem [#allocation0], 157
    %94 = vst.msk [vmem:[%s93] sm:$0x20] %vm82, %v81
    %s95 = scalar_lea.vmem [#allocation0], 188
    %96 = vst.msk [vmem:[%s95] sm:$0x40] %vm82, %v81
    %s97 = scalar_lea.vmem [#allocation0], 219
    %98 = vst.msk [vmem:[%s97] sm:$0x80] %vm82, %v81
    %s99 = scalar_lea.vmem %s0, 8
    %v100 = vld [vmem:[%s99] sm:$0xff]
    %101 = vrot.lane.b32.xlu0 %v100, 112
    %v102 = vpop.permute.xlu0 %101
    %vm103 = vcmask 64512
    %s104 = scalar_lea.vmem [#allocation0], 258
    %105 = vst.msk [vmem:[%s104] sm:$0x1] %vm103, %v102
    %s106 = scalar_lea.vmem [#allocation0], 289
    %107 = vst.msk [vmem:[%s106] sm:$0x2] %vm103, %v102
    %s108 = scalar_lea.vmem [#allocation0], 320
    %109 = vst.msk [vmem:[%s108] sm:$0x4] %vm103, %v102
    %s110 = scalar_lea.vmem [#allocation0], 351
    %111 = vst.msk [vmem:[%s110] sm:$0x8] %vm103, %v102
    %s112 = scalar_lea.vmem [#allocation0], 382
    %113 = vst.msk [vmem:[%s112] sm:$0x10] %vm103, %v102
    %s114 = scalar_lea.vmem [#allocation0], 413
    %115 = vst.msk [vmem:[%s114] sm:$0x20] %vm103, %v102
    %s116 = scalar_lea.vmem [#allocation0], 444
    %117 = vst.msk [vmem:[%s116] sm:$0x40] %vm103, %v102
    %s118 = scalar_lea.vmem [#allocation0], 475
    %119 = vst.msk [vmem:[%s118] sm:$0x80] %vm103, %v102
    %v120 = vld [vmem:[%s0] sm:$0xff]
    %121 = vrot.lane.b32.xlu0 %v120, 104
    %v122 = vpop.permute.xlu0 %121
    %vm123 = vcmask 64512
    %s124 = scalar_lea.vmem [#allocation0], 3
    %125 = vst.msk [vmem:[%s124] sm:$0x1] %vm123, %v122
    %s126 = scalar_lea.vmem [#allocation0], 34
    %127 = vst.msk [vmem:[%s126] sm:$0x2] %vm123, %v122
    %s128 = scalar_lea.vmem [#allocation0], 65
    %129 = vst.msk [vmem:[%s128] sm:$0x4] %vm123, %v122
    %s130 = scalar_lea.vmem [#allocation0], 96
    %131 = vst.msk [vmem:[%s130] sm:$0x8] %vm123, %v122
    %s132 = scalar_lea.vmem [#allocation0], 127
    %133 = vst.msk [vmem:[%s132] sm:$0x10] %vm123, %v122
    %s134 = scalar_lea.vmem [#allocation0], 158
    %135 = vst.msk [vmem:[%s134] sm:$0x20] %vm123, %v122
    %s136 = scalar_lea.vmem [#allocation0], 189
    %137 = vst.msk [vmem:[%s136] sm:$0x40] %vm123, %v122
    %s138 = scalar_lea.vmem [#allocation0], 220
    %139 = vst.msk [vmem:[%s138] sm:$0x80] %vm123, %v122
    %s140 = scalar_lea.vmem %s0, 8
    %v141 = vld [vmem:[%s140] sm:$0xff]
    %142 = vrot.lane.b32.xlu0 %v141, 104
    %v143 = vpop.permute.xlu0 %142
    %vm144 = vcmask 64512
    %s145 = scalar_lea.vmem [#allocation0], 259
    %146 = vst.msk [vmem:[%s145] sm:$0x1] %vm144, %v143
    %s147 = scalar_lea.vmem [#allocation0], 290
    %148 = vst.msk [vmem:[%s147] sm:$0x2] %vm144, %v143
    %s149 = scalar_lea.vmem [#allocation0], 321
    %150 = vst.msk [vmem:[%s149] sm:$0x4] %vm144, %v143
    %s151 = scalar_lea.vmem [#allocation0], 352
    %152 = vst.msk [vmem:[%s151] sm:$0x8] %vm144, %v143
    %s153 = scalar_lea.vmem [#allocation0], 383
    %154 = vst.msk [vmem:[%s153] sm:$0x10] %vm144, %v143
    %s155 = scalar_lea.vmem [#allocation0], 414
    %156 = vst.msk [vmem:[%s155] sm:$0x20] %vm144, %v143
    %s157 = scalar_lea.vmem [#allocation0], 445
    %158 = vst.msk [vmem:[%s157] sm:$0x40] %vm144, %v143
    %s159 = scalar_lea.vmem [#allocation0], 476
    %160 = vst.msk [vmem:[%s159] sm:$0x80] %vm144, %v143
    %v161 = vld [vmem:[%s0] sm:$0xff]
    %162 = vrot.lane.b32.xlu0 %v161, 96
    %v163 = vpop.permute.xlu0 %162
    %vm164 = vcmask 64512
    %s165 = scalar_lea.vmem [#allocation0], 8
    %166 = vst.msk [vmem:[%s165] sm:$0x1] %vm164, %v163
    %s167 = scalar_lea.vmem [#allocation0], 39
    %168 = vst.msk [vmem:[%s167] sm:$0x2] %vm164, %v163
    %s169 = scalar_lea.vmem [#allocation0], 70
    %170 = vst.msk [vmem:[%s169] sm:$0x4] %vm164, %v163
    %s171 = scalar_lea.vmem [#allocation0], 101
    %172 = vst.msk [vmem:[%s171] sm:$0x8] %vm164, %v163
    %s173 = scalar_lea.vmem [#allocation0], 132
    %174 = vst.msk [vmem:[%s173] sm:$0x10] %vm164, %v163
    %s175 = scalar_lea.vmem [#allocation0], 163
    %176 = vst.msk [vmem:[%s175] sm:$0x20] %vm164, %v163
    %s177 = scalar_lea.vmem [#allocation0], 194
    %178 = vst.msk [vmem:[%s177] sm:$0x40] %vm164, %v163
    %s179 = scalar_lea.vmem [#allocation0], 225
    %180 = vst.msk [vmem:[%s179] sm:$0x80] %vm164, %v163
    %s181 = scalar_lea.vmem %s0, 8
    %v182 = vld [vmem:[%s181] sm:$0xff]
    %183 = vrot.lane.b32.xlu0 %v182, 96
    %v184 = vpop.permute.xlu0 %183
    %vm185 = vcmask 64512
    %s186 = scalar_lea.vmem [#allocation0], 264
    %187 = vst.msk [vmem:[%s186] sm:$0x1] %vm185, %v184
    %s188 = scalar_lea.vmem [#allocation0], 295
    %189 = vst.msk [vmem:[%s188] sm:$0x2] %vm185, %v184
    %s190 = scalar_lea.vmem [#allocation0], 326
    %191 = vst.msk [vmem:[%s190] sm:$0x4] %vm185, %v184
    %s192 = scalar_lea.vmem [#allocation0], 357
    %193 = vst.msk [vmem:[%s192] sm:$0x8] %vm185, %v184
    %s194 = scalar_lea.vmem [#allocation0], 388
    %195 = vst.msk [vmem:[%s194] sm:$0x10] %vm185, %v184
    %s196 = scalar_lea.vmem [#allocation0], 419
    %197 = vst.msk [vmem:[%s196] sm:$0x20] %vm185, %v184
    %s198 = scalar_lea.vmem [#allocation0], 450
    %199 = vst.msk [vmem:[%s198] sm:$0x40] %vm185, %v184
    %s200 = scalar_lea.vmem [#allocation0], 481
    %201 = vst.msk [vmem:[%s200] sm:$0x80] %vm185, %v184
    %v202 = vld [vmem:[%s0] sm:$0xff]
    %203 = vrot.lane.b32.xlu0 %v202, 88
    %v204 = vpop.permute.xlu0 %203
    %vm205 = vcmask 64512
    %s206 = scalar_lea.vmem [#allocation0], 9
    %207 = vst.msk [vmem:[%s206] sm:$0x1] %vm205, %v204
    %s208 = scalar_lea.vmem [#allocation0], 40
    %209 = vst.msk [vmem:[%s208] sm:$0x2] %vm205, %v204
    %s210 = scalar_lea.vmem [#allocation0], 71
    %211 = vst.msk [vmem:[%s210] sm:$0x4] %vm205, %v204
    %s212 = scalar_lea.vmem [#allocation0], 102
    %213 = vst.msk [vmem:[%s212] sm:$0x8] %vm205, %v204
    %s214 = scalar_lea.vmem [#allocation0], 133
    %215 = vst.msk [vmem:[%s214] sm:$0x10] %vm205, %v204
    %s216 = scalar_lea.vmem [#allocation0], 164
    %217 = vst.msk [vmem:[%s216] sm:$0x20] %vm205, %v204
    %s218 = scalar_lea.vmem [#allocation0], 195
    %219 = vst.msk [vmem:[%s218] sm:$0x40] %vm205, %v204
    %s220 = scalar_lea.vmem [#allocation0], 226
    %221 = vst.msk [vmem:[%s220] sm:$0x80] %vm205, %v204
    %s222 = scalar_lea.vmem %s0, 8
    %v223 = vld [vmem:[%s222] sm:$0xff]
    %224 = vrot.lane.b32.xlu0 %v223, 88
    %v225 = vpop.permute.xlu0 %224
    %vm226 = vcmask 64512
    %s227 = scalar_lea.vmem [#allocation0], 265
    %228 = vst.msk [vmem:[%s227] sm:$0x1] %vm226, %v225
    %s229 = scalar_lea.vmem [#allocation0], 296
    %230 = vst.msk [vmem:[%s229] sm:$0x2] %vm226, %v225
    %s231 = scalar_lea.vmem [#allocation0], 327
    %232 = vst.msk [vmem:[%s231] sm:$0x4] %vm226, %v225
    %s233 = scalar_lea.vmem [#allocation0], 358
    %234 = vst.msk [vmem:[%s233] sm:$0x8] %vm226, %v225
    %s235 = scalar_lea.vmem [#allocation0], 389
    %236 = vst.msk [vmem:[%s235] sm:$0x10] %vm226, %v225
    %s237 = scalar_lea.vmem [#allocation0], 420
    %238 = vst.msk [vmem:[%s237] sm:$0x20] %vm226, %v225
    %s239 = scalar_lea.vmem [#allocation0], 451
    %240 = vst.msk [vmem:[%s239] sm:$0x40] %vm226, %v225
    %s241 = scalar_lea.vmem [#allocation0], 482
    %242 = vst.msk [vmem:[%s241] sm:$0x80] %vm226, %v225
    %v243 = vld [vmem:[%s0] sm:$0xff]
    %244 = vrot.lane.b32.xlu0 %v243, 80
    %v245 = vpop.permute.xlu0 %244
    %vm246 = vcmask 64512
    %s247 = scalar_lea.vmem [#allocation0], 10
    %248 = vst.msk [vmem:[%s247] sm:$0x1] %vm246, %v245
    %s249 = scalar_lea.vmem [#allocation0], 41
    %250 = vst.msk [vmem:[%s249] sm:$0x2] %vm246, %v245
    %s251 = scalar_lea.vmem [#allocation0], 72
    %252 = vst.msk [vmem:[%s251] sm:$0x4] %vm246, %v245
    %s253 = scalar_lea.vmem [#allocation0], 103
    %254 = vst.msk [vmem:[%s253] sm:$0x8] %vm246, %v245
    %s255 = scalar_lea.vmem [#allocation0], 134
    %256 = vst.msk [vmem:[%s255] sm:$0x10] %vm246, %v245
    %s257 = scalar_lea.vmem [#allocation0], 165
    %258 = vst.msk [vmem:[%s257] sm:$0x20] %vm246, %v245
    %s259 = scalar_lea.vmem [#allocation0], 196
    %260 = vst.msk [vmem:[%s259] sm:$0x40] %vm246, %v245
    %s261 = scalar_lea.vmem [#allocation0], 227
    %262 = vst.msk [vmem:[%s261] sm:$0x80] %vm246, %v245
    %s263 = scalar_lea.vmem %s0, 8
    %v264 = vld [vmem:[%s263] sm:$0xff]
    %265 = vrot.lane.b32.xlu0 %v264, 80
    %v266 = vpop.permute.xlu0 %265
    %vm267 = vcmask 64512
    %s268 = scalar_lea.vmem [#allocation0], 266
    %269 = vst.msk [vmem:[%s268] sm:$0x1] %vm267, %v266
    %s270 = scalar_lea.vmem [#allocation0], 297
    %271 = vst.msk [vmem:[%s270] sm:$0x2] %vm267, %v266
    %s272 = scalar_lea.vmem [#allocation0], 328
    %273 = vst.msk [vmem:[%s272] sm:$0x4] %vm267, %v266
    %s274 = scalar_lea.vmem [#allocation0], 359
    %275 = vst.msk [vmem:[%s274] sm:$0x8] %vm267, %v266
    %s276 = scalar_lea.vmem [#allocation0], 390
    %277 = vst.msk [vmem:[%s276] sm:$0x10] %vm267, %v266
    %s278 = scalar_lea.vmem [#allocation0], 421
    %279 = vst.msk [vmem:[%s278] sm:$0x20] %vm267, %v266
    %s280 = scalar_lea.vmem [#allocation0], 452
    %281 = vst.msk [vmem:[%s280] sm:$0x40] %vm267, %v266
    %s282 = scalar_lea.vmem [#allocation0], 483
    %283 = vst.msk [vmem:[%s282] sm:$0x80] %vm267, %v266
    %v284 = vld [vmem:[%s0] sm:$0xff]
    %285 = vrot.lane.b32.xlu0 %v284, 72
    %v286 = vpop.permute.xlu0 %285
    %vm287 = vcmask 64512
    %s288 = scalar_lea.vmem [#allocation0], 11
    %289 = vst.msk [vmem:[%s288] sm:$0x1] %vm287, %v286
    %s290 = scalar_lea.vmem [#allocation0], 42
    %291 = vst.msk [vmem:[%s290] sm:$0x2] %vm287, %v286
    %s292 = scalar_lea.vmem [#allocation0], 73
    %293 = vst.msk [vmem:[%s292] sm:$0x4] %vm287, %v286
    %s294 = scalar_lea.vmem [#allocation0], 104
    %295 = vst.msk [vmem:[%s294] sm:$0x8] %vm287, %v286
    %s296 = scalar_lea.vmem [#allocation0], 135
    %297 = vst.msk [vmem:[%s296] sm:$0x10] %vm287, %v286
    %s298 = scalar_lea.vmem [#allocation0], 166
    %299 = vst.msk [vmem:[%s298] sm:$0x20] %vm287, %v286
    %s300 = scalar_lea.vmem [#allocation0], 197
    %301 = vst.msk [vmem:[%s300] sm:$0x40] %vm287, %v286
    %s302 = scalar_lea.vmem [#allocation0], 228
    %303 = vst.msk [vmem:[%s302] sm:$0x80] %vm287, %v286
    %s304 = scalar_lea.vmem %s0, 8
    %v305 = vld [vmem:[%s304] sm:$0xff]
    %306 = vrot.lane.b32.xlu0 %v305, 72
    %v307 = vpop.permute.xlu0 %306
    %vm308 = vcmask 64512
    %s309 = scalar_lea.vmem [#allocation0], 267
    %310 = vst.msk [vmem:[%s309] sm:$0x1] %vm308, %v307
    %s311 = scalar_lea.vmem [#allocation0], 298
    %312 = vst.msk [vmem:[%s311] sm:$0x2] %vm308, %v307
    %s313 = scalar_lea.vmem [#allocation0], 329
    %314 = vst.msk [vmem:[%s313] sm:$0x4] %vm308, %v307
    %s315 = scalar_lea.vmem [#allocation0], 360
    %316 = vst.msk [vmem:[%s315] sm:$0x8] %vm308, %v307
    %s317 = scalar_lea.vmem [#allocation0], 391
    %318 = vst.msk [vmem:[%s317] sm:$0x10] %vm308, %v307
    %s319 = scalar_lea.vmem [#allocation0], 422
    %320 = vst.msk [vmem:[%s319] sm:$0x20] %vm308, %v307
    %s321 = scalar_lea.vmem [#allocation0], 453
    %322 = vst.msk [vmem:[%s321] sm:$0x40] %vm308, %v307
    %s323 = scalar_lea.vmem [#allocation0], 484
    %324 = vst.msk [vmem:[%s323] sm:$0x80] %vm308, %v307
    %v325 = vld [vmem:[%s0] sm:$0xff]
    %326 = vrot.lane.b32.xlu0 %v325, 64
    %v327 = vpop.permute.xlu0 %326
    %vm328 = vcmask 64512
    %s329 = scalar_lea.vmem [#allocation0], 16
    %330 = vst.msk [vmem:[%s329] sm:$0x1] %vm328, %v327
    %s331 = scalar_lea.vmem [#allocation0], 47
    %332 = vst.msk [vmem:[%s331] sm:$0x2] %vm328, %v327
    %s333 = scalar_lea.vmem [#allocation0], 78
    %334 = vst.msk [vmem:[%s333] sm:$0x4] %vm328, %v327
    %s335 = scalar_lea.vmem [#allocation0], 109
    %336 = vst.msk [vmem:[%s335] sm:$0x8] %vm328, %v327
    %s337 = scalar_lea.vmem [#allocation0], 140
    %338 = vst.msk [vmem:[%s337] sm:$0x10] %vm328, %v327
    %s339 = scalar_lea.vmem [#allocation0], 171
    %340 = vst.msk [vmem:[%s339] sm:$0x20] %vm328, %v327
    %s341 = scalar_lea.vmem [#allocation0], 202
    %342 = vst.msk [vmem:[%s341] sm:$0x40] %vm328, %v327
    %s343 = scalar_lea.vmem [#allocation0], 233
    %344 = vst.msk [vmem:[%s343] sm:$0x80] %vm328, %v327
    %s345 = scalar_lea.vmem %s0, 8
    %v346 = vld [vmem:[%s345] sm:$0xff]
    %347 = vrot.lane.b32.xlu0 %v346, 64
    %v348 = vpop.permute.xlu0 %347
    %vm349 = vcmask 64512
    %s350 = scalar_lea.vmem [#allocation0], 272
    %351 = vst.msk [vmem:[%s350] sm:$0x1] %vm349, %v348
    %s352 = scalar_lea.vmem [#allocation0], 303
    %353 = vst.msk [vmem:[%s352] sm:$0x2] %vm349, %v348
    %s354 = scalar_lea.vmem [#allocation0], 334
    %355 = vst.msk [vmem:[%s354] sm:$0x4] %vm349, %v348
    %s356 = scalar_lea.vmem [#allocation0], 365
    %357 = vst.msk [vmem:[%s356] sm:$0x8] %vm349, %v348
    %s358 = scalar_lea.vmem [#allocation0], 396
    %359 = vst.msk [vmem:[%s358] sm:$0x10] %vm349, %v348
    %s360 = scalar_lea.vmem [#allocation0], 427
    %361 = vst.msk [vmem:[%s360] sm:$0x20] %vm349, %v348
    %s362 = scalar_lea.vmem [#allocation0], 458
    %363 = vst.msk [vmem:[%s362] sm:$0x40] %vm349, %v348
    %s364 = scalar_lea.vmem [#allocation0], 489
    %365 = vst.msk [vmem:[%s364] sm:$0x80] %vm349, %v348
    %v366 = vld [vmem:[%s0] sm:$0xff]
    %367 = vrot.lane.b32.xlu0 %v366, 56
    %v368 = vpop.permute.xlu0 %367
    %vm369 = vcmask 64512
    %s370 = scalar_lea.vmem [#allocation0], 17
    %371 = vst.msk [vmem:[%s370] sm:$0x1] %vm369, %v368
    %s372 = scalar_lea.vmem [#allocation0], 48
    %373 = vst.msk [vmem:[%s372] sm:$0x2] %vm369, %v368
    %s374 = scalar_lea.vmem [#allocation0], 79
    %375 = vst.msk [vmem:[%s374] sm:$0x4] %vm369, %v368
    %s376 = scalar_lea.vmem [#allocation0], 110
    %377 = vst.msk [vmem:[%s376] sm:$0x8] %vm369, %v368
    %s378 = scalar_lea.vmem [#allocation0], 141
    %379 = vst.msk [vmem:[%s378] sm:$0x10] %vm369, %v368
    %s380 = scalar_lea.vmem [#allocation0], 172
    %381 = vst.msk [vmem:[%s380] sm:$0x20] %vm369, %v368
    %s382 = scalar_lea.vmem [#allocation0], 203
    %383 = vst.msk [vmem:[%s382] sm:$0x40] %vm369, %v368
    %s384 = scalar_lea.vmem [#allocation0], 234
    %385 = vst.msk [vmem:[%s384] sm:$0x80] %vm369, %v368
    %s386 = scalar_lea.vmem %s0, 8
    %v387 = vld [vmem:[%s386] sm:$0xff]
    %388 = vrot.lane.b32.xlu0 %v387, 56
    %v389 = vpop.permute.xlu0 %388
    %vm390 = vcmask 64512
    %s391 = scalar_lea.vmem [#allocation0], 273
    %392 = vst.msk [vmem:[%s391] sm:$0x1] %vm390, %v389
    %s393 = scalar_lea.vmem [#allocation0], 304
    %394 = vst.msk [vmem:[%s393] sm:$0x2] %vm390, %v389
    %s395 = scalar_lea.vmem [#allocation0], 335
    %396 = vst.msk [vmem:[%s395] sm:$0x4] %vm390, %v389
    %s397 = scalar_lea.vmem [#allocation0], 366
    %398 = vst.msk [vmem:[%s397] sm:$0x8] %vm390, %v389
    %s399 = scalar_lea.vmem [#allocation0], 397
    %400 = vst.msk [vmem:[%s399] sm:$0x10] %vm390, %v389
    %s401 = scalar_lea.vmem [#allocation0], 428
    %402 = vst.msk [vmem:[%s401] sm:$0x20] %vm390, %v389
    %s403 = scalar_lea.vmem [#allocation0], 459
    %404 = vst.msk [vmem:[%s403] sm:$0x40] %vm390, %v389
    %s405 = scalar_lea.vmem [#allocation0], 490
    %406 = vst.msk [vmem:[%s405] sm:$0x80] %vm390, %v389
    %v407 = vld [vmem:[%s0] sm:$0xff]
    %408 = vrot.lane.b32.xlu0 %v407, 48
    %v409 = vpop.permute.xlu0 %408
    %vm410 = vcmask 64512
    %s411 = scalar_lea.vmem [#allocation0], 18
    %412 = vst.msk [vmem:[%s411] sm:$0x1] %vm410, %v409
    %s413 = scalar_lea.vmem [#allocation0], 49
    %414 = vst.msk [vmem:[%s413] sm:$0x2] %vm410, %v409
    %s415 = scalar_lea.vmem [#allocation0], 80
    %416 = vst.msk [vmem:[%s415] sm:$0x4] %vm410, %v409
    %s417 = scalar_lea.vmem [#allocation0], 111
    %418 = vst.msk [vmem:[%s417] sm:$0x8] %vm410, %v409
    %s419 = scalar_lea.vmem [#allocation0], 142
    %420 = vst.msk [vmem:[%s419] sm:$0x10] %vm410, %v409
    %s421 = scalar_lea.vmem [#allocation0], 173
    %422 = vst.msk [vmem:[%s421] sm:$0x20] %vm410, %v409
    %s423 = scalar_lea.vmem [#allocation0], 204
    %424 = vst.msk [vmem:[%s423] sm:$0x40] %vm410, %v409
    %s425 = scalar_lea.vmem [#allocation0], 235
    %426 = vst.msk [vmem:[%s425] sm:$0x80] %vm410, %v409
    %s427 = scalar_lea.vmem %s0, 8
    %v428 = vld [vmem:[%s427] sm:$0xff]
    %429 = vrot.lane.b32.xlu0 %v428, 48
    %v430 = vpop.permute.xlu0 %429
    %vm431 = vcmask 64512
    %s432 = scalar_lea.vmem [#allocation0], 274
    %433 = vst.msk [vmem:[%s432] sm:$0x1] %vm431, %v430
    %s434 = scalar_lea.vmem [#allocation0], 305
    %435 = vst.msk [vmem:[%s434] sm:$0x2] %vm431, %v430
    %s436 = scalar_lea.vmem [#allocation0], 336
    %437 = vst.msk [vmem:[%s436] sm:$0x4] %vm431, %v430
    %s438 = scalar_lea.vmem [#allocation0], 367
    %439 = vst.msk [vmem:[%s438] sm:$0x8] %vm431, %v430
    %s440 = scalar_lea.vmem [#allocation0], 398
    %441 = vst.msk [vmem:[%s440] sm:$0x10] %vm431, %v430
    %s442 = scalar_lea.vmem [#allocation0], 429
    %443 = vst.msk [vmem:[%s442] sm:$0x20] %vm431, %v430
    %s444 = scalar_lea.vmem [#allocation0], 460
    %445 = vst.msk [vmem:[%s444] sm:$0x40] %vm431, %v430
    %s446 = scalar_lea.vmem [#allocation0], 491
    %447 = vst.msk [vmem:[%s446] sm:$0x80] %vm431, %v430
    %v448 = vld [vmem:[%s0] sm:$0xff]
    %449 = vrot.lane.b32.xlu0 %v448, 40
    %v450 = vpop.permute.xlu0 %449
    %vm451 = vcmask 64512
    %s452 = scalar_lea.vmem [#allocation0], 19
    %453 = vst.msk [vmem:[%s452] sm:$0x1] %vm451, %v450
    %s454 = scalar_lea.vmem [#allocation0], 50
    %455 = vst.msk [vmem:[%s454] sm:$0x2] %vm451, %v450
    %s456 = scalar_lea.vmem [#allocation0], 81
    %457 = vst.msk [vmem:[%s456] sm:$0x4] %vm451, %v450
    %s458 = scalar_lea.vmem [#allocation0], 112
    %459 = vst.msk [vmem:[%s458] sm:$0x8] %vm451, %v450
    %s460 = scalar_lea.vmem [#allocation0], 143
    %461 = vst.msk [vmem:[%s460] sm:$0x10] %vm451, %v450
    %s462 = scalar_lea.vmem [#allocation0], 174
    %463 = vst.msk [vmem:[%s462] sm:$0x20] %vm451, %v450
    %s464 = scalar_lea.vmem [#allocation0], 205
    %465 = vst.msk [vmem:[%s464] sm:$0x40] %vm451, %v450
    %s466 = scalar_lea.vmem [#allocation0], 236
    %467 = vst.msk [vmem:[%s466] sm:$0x80] %vm451, %v450
    %s468 = scalar_lea.vmem %s0, 8
    %v469 = vld [vmem:[%s468] sm:$0xff]
    %470 = vrot.lane.b32.xlu0 %v469, 40
    %v471 = vpop.permute.xlu0 %470
    %vm472 = vcmask 64512
    %s473 = scalar_lea.vmem [#allocation0], 275
    %474 = vst.msk [vmem:[%s473] sm:$0x1] %vm472, %v471
    %s475 = scalar_lea.vmem [#allocation0], 306
    %476 = vst.msk [vmem:[%s475] sm:$0x2] %vm472, %v471
    %s477 = scalar_lea.vmem [#allocation0], 337
    %478 = vst.msk [vmem:[%s477] sm:$0x4] %vm472, %v471
    %s479 = scalar_lea.vmem [#allocation0], 368
    %480 = vst.msk [vmem:[%s479] sm:$0x8] %vm472, %v471
    %s481 = scalar_lea.vmem [#allocation0], 399
    %482 = vst.msk [vmem:[%s481] sm:$0x10] %vm472, %v471
    %s483 = scalar_lea.vmem [#allocation0], 430
    %484 = vst.msk [vmem:[%s483] sm:$0x20] %vm472, %v471
    %s485 = scalar_lea.vmem [#allocation0], 461
    %486 = vst.msk [vmem:[%s485] sm:$0x40] %vm472, %v471
    %s487 = scalar_lea.vmem [#allocation0], 492
    %488 = vst.msk [vmem:[%s487] sm:$0x80] %vm472, %v471
    %v489 = vld [vmem:[%s0] sm:$0xff]
    %490 = vrot.lane.b32.xlu0 %v489, 32
    %v491 = vpop.permute.xlu0 %490
    %vm492 = vcmask 64512
    %s493 = scalar_lea.vmem [#allocation0], 24
    %494 = vst.msk [vmem:[%s493] sm:$0x1] %vm492, %v491
    %s495 = scalar_lea.vmem [#allocation0], 55
    %496 = vst.msk [vmem:[%s495] sm:$0x2] %vm492, %v491
    %s497 = scalar_lea.vmem [#allocation0], 86
    %498 = vst.msk [vmem:[%s497] sm:$0x4] %vm492, %v491
    %s499 = scalar_lea.vmem [#allocation0], 117
    %500 = vst.msk [vmem:[%s499] sm:$0x8] %vm492, %v491
    %s501 = scalar_lea.vmem [#allocation0], 148
    %502 = vst.msk [vmem:[%s501] sm:$0x10] %vm492, %v491
    %s503 = scalar_lea.vmem [#allocation0], 179
    %504 = vst.msk [vmem:[%s503] sm:$0x20] %vm492, %v491
    %s505 = scalar_lea.vmem [#allocation0], 210
    %506 = vst.msk [vmem:[%s505] sm:$0x40] %vm492, %v491
    %s507 = scalar_lea.vmem [#allocation0], 241
    %508 = vst.msk [vmem:[%s507] sm:$0x80] %vm492, %v491
    %s509 = scalar_lea.vmem %s0, 8
    %v510 = vld [vmem:[%s509] sm:$0xff]
    %511 = vrot.lane.b32.xlu0 %v510, 32
    %v512 = vpop.permute.xlu0 %511
    %vm513 = vcmask 64512
    %s514 = scalar_lea.vmem [#allocation0], 280
    %515 = vst.msk [vmem:[%s514] sm:$0x1] %vm513, %v512
    %s516 = scalar_lea.vmem [#allocation0], 311
    %517 = vst.msk [vmem:[%s516] sm:$0x2] %vm513, %v512
    %s518 = scalar_lea.vmem [#allocation0], 342
    %519 = vst.msk [vmem:[%s518] sm:$0x4] %vm513, %v512
    %s520 = scalar_lea.vmem [#allocation0], 373
    %521 = vst.msk [vmem:[%s520] sm:$0x8] %vm513, %v512
    %s522 = scalar_lea.vmem [#allocation0], 404
    %523 = vst.msk [vmem:[%s522] sm:$0x10] %vm513, %v512
    %s524 = scalar_lea.vmem [#allocation0], 435
    %525 = vst.msk [vmem:[%s524] sm:$0x20] %vm513, %v512
    %s526 = scalar_lea.vmem [#allocation0], 466
    %527 = vst.msk [vmem:[%s526] sm:$0x40] %vm513, %v512
    %s528 = scalar_lea.vmem [#allocation0], 497
    %529 = vst.msk [vmem:[%s528] sm:$0x80] %vm513, %v512
    %v530 = vld [vmem:[%s0] sm:$0xff]
    %531 = vrot.lane.b32.xlu0 %v530, 24
    %v532 = vpop.permute.xlu0 %531
    %vm533 = vcmask 64512
    %s534 = scalar_lea.vmem [#allocation0], 25
    %535 = vst.msk [vmem:[%s534] sm:$0x1] %vm533, %v532
    %s536 = scalar_lea.vmem [#allocation0], 56
    %537 = vst.msk [vmem:[%s536] sm:$0x2] %vm533, %v532
    %s538 = scalar_lea.vmem [#allocation0], 87
    %539 = vst.msk [vmem:[%s538] sm:$0x4] %vm533, %v532
    %s540 = scalar_lea.vmem [#allocation0], 118
    %541 = vst.msk [vmem:[%s540] sm:$0x8] %vm533, %v532
    %s542 = scalar_lea.vmem [#allocation0], 149
    %543 = vst.msk [vmem:[%s542] sm:$0x10] %vm533, %v532
    %s544 = scalar_lea.vmem [#allocation0], 180
    %545 = vst.msk [vmem:[%s544] sm:$0x20] %vm533, %v532
    %s546 = scalar_lea.vmem [#allocation0], 211
    %547 = vst.msk [vmem:[%s546] sm:$0x40] %vm533, %v532
    %s548 = scalar_lea.vmem [#allocation0], 242
    %549 = vst.msk [vmem:[%s548] sm:$0x80] %vm533, %v532
    %s550 = scalar_lea.vmem %s0, 8
    %v551 = vld [vmem:[%s550] sm:$0xff]
    %552 = vrot.lane.b32.xlu0 %v551, 24
    %v553 = vpop.permute.xlu0 %552
    %vm554 = vcmask 64512
    %s555 = scalar_lea.vmem [#allocation0], 281
    %556 = vst.msk [vmem:[%s555] sm:$0x1] %vm554, %v553
    %s557 = scalar_lea.vmem [#allocation0], 312
    %558 = vst.msk [vmem:[%s557] sm:$0x2] %vm554, %v553
    %s559 = scalar_lea.vmem [#allocation0], 343
    %560 = vst.msk [vmem:[%s559] sm:$0x4] %vm554, %v553
    %s561 = scalar_lea.vmem [#allocation0], 374
    %562 = vst.msk [vmem:[%s561] sm:$0x8] %vm554, %v553
    %s563 = scalar_lea.vmem [#allocation0], 405
    %564 = vst.msk [vmem:[%s563] sm:$0x10] %vm554, %v553
    %s565 = scalar_lea.vmem [#allocation0], 436
    %566 = vst.msk [vmem:[%s565] sm:$0x20] %vm554, %v553
    %s567 = scalar_lea.vmem [#allocation0], 467
    %568 = vst.msk [vmem:[%s567] sm:$0x40] %vm554, %v553
    %s569 = scalar_lea.vmem [#allocation0], 498
    %570 = vst.msk [vmem:[%s569] sm:$0x80] %vm554, %v553
    %v571 = vld [vmem:[%s0] sm:$0xff]
    %572 = vrot.lane.b32.xlu0 %v571, 16
    %v573 = vpop.permute.xlu0 %572
    %vm574 = vcmask 64512
    %s575 = scalar_lea.vmem [#allocation0], 26
    %576 = vst.msk [vmem:[%s575] sm:$0x1] %vm574, %v573
    %s577 = scalar_lea.vmem [#allocation0], 57
    %578 = vst.msk [vmem:[%s577] sm:$0x2] %vm574, %v573
    %s579 = scalar_lea.vmem [#allocation0], 88
    %580 = vst.msk [vmem:[%s579] sm:$0x4] %vm574, %v573
    %s581 = scalar_lea.vmem [#allocation0], 119
    %582 = vst.msk [vmem:[%s581] sm:$0x8] %vm574, %v573
    %s583 = scalar_lea.vmem [#allocation0], 150
    %584 = vst.msk [vmem:[%s583] sm:$0x10] %vm574, %v573
    %s585 = scalar_lea.vmem [#allocation0], 181
    %586 = vst.msk [vmem:[%s585] sm:$0x20] %vm574, %v573
    %s587 = scalar_lea.vmem [#allocation0], 212
    %588 = vst.msk [vmem:[%s587] sm:$0x40] %vm574, %v573
    %s589 = scalar_lea.vmem [#allocation0], 243
    %590 = vst.msk [vmem:[%s589] sm:$0x80] %vm574, %v573
    %s591 = scalar_lea.vmem %s0, 8
    %v592 = vld [vmem:[%s591] sm:$0xff]
    %593 = vrot.lane.b32.xlu0 %v592, 16
    %v594 = vpop.permute.xlu0 %593
    %vm595 = vcmask 64512
    %s596 = scalar_lea.vmem [#allocation0], 282
    %597 = vst.msk [vmem:[%s596] sm:$0x1] %vm595, %v594
    %s598 = scalar_lea.vmem [#allocation0], 313
    %599 = vst.msk [vmem:[%s598] sm:$0x2] %vm595, %v594
    %s600 = scalar_lea.vmem [#allocation0], 344
    %601 = vst.msk [vmem:[%s600] sm:$0x4] %vm595, %v594
    %s602 = scalar_lea.vmem [#allocation0], 375
    %603 = vst.msk [vmem:[%s602] sm:$0x8] %vm595, %v594
    %s604 = scalar_lea.vmem [#allocation0], 406
    %605 = vst.msk [vmem:[%s604] sm:$0x10] %vm595, %v594
    %s606 = scalar_lea.vmem [#allocation0], 437
    %607 = vst.msk [vmem:[%s606] sm:$0x20] %vm595, %v594
    %s608 = scalar_lea.vmem [#allocation0], 468
    %609 = vst.msk [vmem:[%s608] sm:$0x40] %vm595, %v594
    %s610 = scalar_lea.vmem [#allocation0], 499
    %611 = vst.msk [vmem:[%s610] sm:$0x80] %vm595, %v594
    %v612 = vld [vmem:[%s0] sm:$0xff]
    %613 = vrot.lane.b32.xlu0 %v612, 8
    %v614 = vpop.permute.xlu0 %613
    %vm615 = vcmask 64512
    %s616 = scalar_lea.vmem [#allocation0], 27
    %617 = vst.msk [vmem:[%s616] sm:$0x1] %vm615, %v614
    %s618 = scalar_lea.vmem [#allocation0], 58
    %619 = vst.msk [vmem:[%s618] sm:$0x2] %vm615, %v614
    %s620 = scalar_lea.vmem [#allocation0], 89
    %621 = vst.msk [vmem:[%s620] sm:$0x4] %vm615, %v614
    %s622 = scalar_lea.vmem [#allocation0], 120
    %623 = vst.msk [vmem:[%s622] sm:$0x8] %vm615, %v614
    %s624 = scalar_lea.vmem [#allocation0], 151
    %625 = vst.msk [vmem:[%s624] sm:$0x10] %vm615, %v614
    %s626 = scalar_lea.vmem [#allocation0], 182
    %627 = vst.msk [vmem:[%s626] sm:$0x20] %vm615, %v614
    %s628 = scalar_lea.vmem [#allocation0], 213
    %629 = vst.msk [vmem:[%s628] sm:$0x40] %vm615, %v614
    %s630 = scalar_lea.vmem [#allocation0], 244
    %631 = vst.msk [vmem:[%s630] sm:$0x80] %vm615, %v614
    %s632 = scalar_lea.vmem %s0, 8
    %v633 = vld [vmem:[%s632] sm:$0xff]
    %634 = vrot.lane.b32.xlu0 %v633, 8
    %v635 = vpop.permute.xlu0 %634
    %vm636 = vcmask 64512
    %s637 = scalar_lea.vmem [#allocation0], 283
    %638 = vst.msk [vmem:[%s637] sm:$0x1] %vm636, %v635
    %s639 = scalar_lea.vmem [#allocation0], 314
    %640 = vst.msk [vmem:[%s639] sm:$0x2] %vm636, %v635
    %s641 = scalar_lea.vmem [#allocation0], 345
    %642 = vst.msk [vmem:[%s641] sm:$0x4] %vm636, %v635
    %s643 = scalar_lea.vmem [#allocation0], 376
    %644 = vst.msk [vmem:[%s643] sm:$0x8] %vm636, %v635
    %s645 = scalar_lea.vmem [#allocation0], 407
    %646 = vst.msk [vmem:[%s645] sm:$0x10] %vm636, %v635
    %s647 = scalar_lea.vmem [#allocation0], 438
    %648 = vst.msk [vmem:[%s647] sm:$0x20] %vm636, %v635
    %s649 = scalar_lea.vmem [#allocation0], 469
    %650 = vst.msk [vmem:[%s649] sm:$0x40] %vm636, %v635
    %s651 = scalar_lea.vmem [#allocation0], 500
    %652 = vst.msk [vmem:[%s651] sm:$0x80] %vm636, %v635
    %s654 = sshllo.u32 0, 4
    %v656 = vld [vmem:[#allocation0] sm:%s654]
    %s657 = sshllo.u32 0, 4
    %658 = vst [vmem:[%s1] sm:%s657] %v656
    %s659 = scalar_lea.vmem [#allocation0], 8
    %v660 = vld [vmem:[%s659] sm:%s654]
    %s661 = sshllo.u32 0, 4
    %s662 = scalar_lea.vmem %s1, 4
    %663 = vst [vmem:[%s662] sm:%s661] %v660
    %s664 = scalar_lea.vmem [#allocation0], 16
    %v665 = vld [vmem:[%s664] sm:%s654]
    %s666 = sshllo.u32 0, 4
    %s667 = smul.addr 4, 2
    %s668 = scalar_lea.vmem %s1, %s667
    %669 = vst [vmem:[%s668] sm:%s666] %v665
    %s670 = scalar_lea.vmem [#allocation0], 24
    %v671 = vld [vmem:[%s670] sm:%s654]
    %s672 = sshllo.u32 0, 4
    %s673 = smul.addr 4, 3
    %s674 = scalar_lea.vmem %s1, %s673
    %675 = vst [vmem:[%s674] sm:%s672] %v671
    %s676 = scalar_lea.vmem [#allocation0], 32
    %v677 = vld [vmem:[%s676] sm:%s654]
    %s678 = sshllo.u32 0, 4
    %s679 = smul.addr 4, 4
    %s680 = scalar_lea.vmem %s1, %s679
    %681 = vst [vmem:[%s680] sm:%s678] %v677
    %s682 = scalar_lea.vmem [#allocation0], 40
    %v683 = vld [vmem:[%s682] sm:%s654]
    %s684 = sshllo.u32 0, 4
    %s685 = smul.addr 4, 5
    %s686 = scalar_lea.vmem %s1, %s685
    %687 = vst [vmem:[%s686] sm:%s684] %v683
    %s688 = scalar_lea.vmem [#allocation0], 48
    %v689 = vld [vmem:[%s688] sm:%s654]
    %s690 = sshllo.u32 0, 4
    %s691 = smul.addr 4, 6
    %s692 = scalar_lea.vmem %s1, %s691
    %693 = vst [vmem:[%s692] sm:%s690] %v689
    %s694 = scalar_lea.vmem [#allocation0], 56
    %v695 = vld [vmem:[%s694] sm:%s654]
    %s696 = sshllo.u32 0, 4
    %s697 = smul.addr 4, 7
    %s698 = scalar_lea.vmem %s1, %s697
    %699 = vst [vmem:[%s698] sm:%s696] %v695
    %s700 = scalar_lea.vmem [#allocation0], 64
    %v701 = vld [vmem:[%s700] sm:%s654]
    %s702 = sshllo.u32 0, 4
    %s703 = smul.addr 4, 8
    %s704 = scalar_lea.vmem %s1, %s703
    %705 = vst [vmem:[%s704] sm:%s702] %v701
    %s706 = scalar_lea.vmem [#allocation0], 72
    %v707 = vld [vmem:[%s706] sm:%s654]
    %s708 = sshllo.u32 0, 4
    %s709 = smul.addr 4, 9
    %s710 = scalar_lea.vmem %s1, %s709
    %711 = vst [vmem:[%s710] sm:%s708] %v707
    %s712 = scalar_lea.vmem [#allocation0], 80
    %v713 = vld [vmem:[%s712] sm:%s654]
    %s714 = sshllo.u32 0, 4
    %s715 = smul.addr 4, 10
    %s716 = scalar_lea.vmem %s1, %s715
    %717 = vst [vmem:[%s716] sm:%s714] %v713
    %s718 = scalar_lea.vmem [#allocation0], 88
    %v719 = vld [vmem:[%s718] sm:%s654]
    %s720 = sshllo.u32 0, 4
    %s721 = smul.addr 4, 11
    %s722 = scalar_lea.vmem %s1, %s721
    %723 = vst [vmem:[%s722] sm:%s720] %v719
    %s724 = scalar_lea.vmem [#allocation0], 96
    %v725 = vld [vmem:[%s724] sm:%s654]
    %s726 = sshllo.u32 0, 4
    %s727 = smul.addr 4, 12
    %s728 = scalar_lea.vmem %s1, %s727
    %729 = vst [vmem:[%s728] sm:%s726] %v725
    %s730 = scalar_lea.vmem [#allocation0], 104
    %v731 = vld [vmem:[%s730] sm:%s654]
    %s732 = sshllo.u32 0, 4
    %s733 = smul.addr 4, 13
    %s734 = scalar_lea.vmem %s1, %s733
    %735 = vst [vmem:[%s734] sm:%s732] %v731
    %s736 = scalar_lea.vmem [#allocation0], 112
    %v737 = vld [vmem:[%s736] sm:%s654]
    %s738 = sshllo.u32 0, 4
    %s739 = smul.addr 4, 14
    %s740 = scalar_lea.vmem %s1, %s739
    %741 = vst [vmem:[%s740] sm:%s738] %v737
    %s742 = scalar_lea.vmem [#allocation0], 120
    %v743 = vld [vmem:[%s742] sm:%s654]
    %s744 = sshllo.u32 0, 4
    %s745 = smul.addr 4, 15
    %s746 = scalar_lea.vmem %s1, %s745
    %747 = vst [vmem:[%s746] sm:%s744] %v743
    %s748 = scalar_lea.vmem [#allocation0], 128
    %v749 = vld [vmem:[%s748] sm:%s654]
    %s750 = sshllo.u32 0, 4
    %s751 = smul.addr 4, 16
    %s752 = scalar_lea.vmem %s1, %s751
    %753 = vst [vmem:[%s752] sm:%s750] %v749
    %s754 = scalar_lea.vmem [#allocation0], 136
    %v755 = vld [vmem:[%s754] sm:%s654]
    %s756 = sshllo.u32 0, 4
    %s757 = smul.addr 4, 17
    %s758 = scalar_lea.vmem %s1, %s757
    %759 = vst [vmem:[%s758] sm:%s756] %v755
    %s760 = scalar_lea.vmem [#allocation0], 144
    %v761 = vld [vmem:[%s760] sm:%s654]
    %s762 = sshllo.u32 0, 4
    %s763 = smul.addr 4, 18
    %s764 = scalar_lea.vmem %s1, %s763
    %765 = vst [vmem:[%s764] sm:%s762] %v761
    %s766 = scalar_lea.vmem [#allocation0], 152
    %v767 = vld [vmem:[%s766] sm:%s654]
    %s768 = sshllo.u32 0, 4
    %s769 = smul.addr 4, 19
    %s770 = scalar_lea.vmem %s1, %s769
    %771 = vst [vmem:[%s770] sm:%s768] %v767
    %s772 = scalar_lea.vmem [#allocation0], 160
    %v773 = vld [vmem:[%s772] sm:%s654]
    %s774 = sshllo.u32 0, 4
    %s775 = smul.addr 4, 20
    %s776 = scalar_lea.vmem %s1, %s775
    %777 = vst [vmem:[%s776] sm:%s774] %v773
    %s778 = scalar_lea.vmem [#allocation0], 168
    %v779 = vld [vmem:[%s778] sm:%s654]
    %s780 = sshllo.u32 0, 4
    %s781 = smul.addr 4, 21
    %s782 = scalar_lea.vmem %s1, %s781
    %783 = vst [vmem:[%s782] sm:%s780] %v779
    %s784 = scalar_lea.vmem [#allocation0], 176
    %v785 = vld [vmem:[%s784] sm:%s654]
    %s786 = sshllo.u32 0, 4
    %s787 = smul.addr 4, 22
    %s788 = scalar_lea.vmem %s1, %s787
    %789 = vst [vmem:[%s788] sm:%s786] %v785
    %s790 = scalar_lea.vmem [#allocation0], 184
    %v791 = vld [vmem:[%s790] sm:%s654]
    %s792 = sshllo.u32 0, 4
    %s793 = smul.addr 4, 23
    %s794 = scalar_lea.vmem %s1, %s793
    %795 = vst [vmem:[%s794] sm:%s792] %v791
    %s796 = scalar_lea.vmem [#allocation0], 192
    %v797 = vld [vmem:[%s796] sm:%s654]
    %s798 = sshllo.u32 0, 4
    %s799 = smul.addr 4, 24
    %s800 = scalar_lea.vmem %s1, %s799
    %801 = vst [vmem:[%s800] sm:%s798] %v797
    %s802 = scalar_lea.vmem [#allocation0], 200
    %v803 = vld [vmem:[%s802] sm:%s654]
    %s804 = sshllo.u32 0, 4
    %s805 = smul.addr 4, 25
    %s806 = scalar_lea.vmem %s1, %s805
    %807 = vst [vmem:[%s806] sm:%s804] %v803
    %s808 = scalar_lea.vmem [#allocation0], 208
    %v809 = vld [vmem:[%s808] sm:%s654]
    %s810 = sshllo.u32 0, 4
    %s811 = smul.addr 4, 26
    %s812 = scalar_lea.vmem %s1, %s811
    %813 = vst [vmem:[%s812] sm:%s810] %v809
    %s814 = scalar_lea.vmem [#allocation0], 216
    %v815 = vld [vmem:[%s814] sm:%s654]
    %s816 = sshllo.u32 0, 4
    %s817 = smul.addr 4, 27
    %s818 = scalar_lea.vmem %s1, %s817
    %819 = vst [vmem:[%s818] sm:%s816] %v815
    %s820 = scalar_lea.vmem [#allocation0], 224
    %v821 = vld [vmem:[%s820] sm:%s654]
    %s822 = sshllo.u32 0, 4
    %s823 = smul.addr 4, 28
    %s824 = scalar_lea.vmem %s1, %s823
    %825 = vst [vmem:[%s824] sm:%s822] %v821
    %s826 = scalar_lea.vmem [#allocation0], 232
    %v827 = vld [vmem:[%s826] sm:%s654]
    %s828 = sshllo.u32 0, 4
    %s829 = smul.addr 4, 29
    %s830 = scalar_lea.vmem %s1, %s829
    %831 = vst [vmem:[%s830] sm:%s828] %v827
    %s832 = scalar_lea.vmem [#allocation0], 240
    %v833 = vld [vmem:[%s832] sm:%s654]
    %s834 = sshllo.u32 0, 4
    %s835 = smul.addr 4, 30
    %s836 = scalar_lea.vmem %s1, %s835
    %837 = vst [vmem:[%s836] sm:%s834] %v833
    %s838 = scalar_lea.vmem [#allocation0], 248
    %v839 = vld [vmem:[%s838] sm:%s654]
    %s840 = sshllo.u32 0, 4
    %s841 = smul.addr 4, 31
    %s842 = scalar_lea.vmem %s1, %s841
    %843 = vst [vmem:[%s842] sm:%s840] %v839
    %s844 = scalar_lea.vmem [#allocation0], 256
    %v845 = vld [vmem:[%s844] sm:%s654]
    %s846 = sshllo.u32 0, 4
    %s847 = smul.addr 4, 32
    %s848 = scalar_lea.vmem %s1, %s847
    %849 = vst [vmem:[%s848] sm:%s846] %v845
    %s850 = scalar_lea.vmem [#allocation0], 264
    %v851 = vld [vmem:[%s850] sm:%s654]
    %s852 = sshllo.u32 0, 4
    %s853 = smul.addr 4, 33
    %s854 = scalar_lea.vmem %s1, %s853
    %855 = vst [vmem:[%s854] sm:%s852] %v851
    %s856 = scalar_lea.vmem [#allocation0], 272
    %v857 = vld [vmem:[%s856] sm:%s654]
    %s858 = sshllo.u32 0, 4
    %s859 = smul.addr 4, 34
    %s860 = scalar_lea.vmem %s1, %s859
    %861 = vst [vmem:[%s860] sm:%s858] %v857
    %s862 = scalar_lea.vmem [#allocation0], 280
    %v863 = vld [vmem:[%s862] sm:%s654]
    %s864 = sshllo.u32 0, 4
    %s865 = smul.addr 4, 35
    %s866 = scalar_lea.vmem %s1, %s865
    %867 = vst [vmem:[%s866] sm:%s864] %v863
    %s868 = scalar_lea.vmem [#allocation0], 288
    %v869 = vld [vmem:[%s868] sm:%s654]
    %s870 = sshllo.u32 0, 4
    %s871 = smul.addr 4, 36
    %s872 = scalar_lea.vmem %s1, %s871
    %873 = vst [vmem:[%s872] sm:%s870] %v869
    %s874 = scalar_lea.vmem [#allocation0], 296
    %v875 = vld [vmem:[%s874] sm:%s654]
    %s876 = sshllo.u32 0, 4
    %s877 = smul.addr 4, 37
    %s878 = scalar_lea.vmem %s1, %s877
    %879 = vst [vmem:[%s878] sm:%s876] %v875
    %s880 = scalar_lea.vmem [#allocation0], 304
    %v881 = vld [vmem:[%s880] sm:%s654]
    %s882 = sshllo.u32 0, 4
    %s883 = smul.addr 4, 38
    %s884 = scalar_lea.vmem %s1, %s883
    %885 = vst [vmem:[%s884] sm:%s882] %v881
    %s886 = scalar_lea.vmem [#allocation0], 312
    %v887 = vld [vmem:[%s886] sm:%s654]
    %s888 = sshllo.u32 0, 4
    %s889 = smul.addr 4, 39
    %s890 = scalar_lea.vmem %s1, %s889
    %891 = vst [vmem:[%s890] sm:%s888] %v887
    %s892 = scalar_lea.vmem [#allocation0], 320
    %v893 = vld [vmem:[%s892] sm:%s654]
    %s894 = sshllo.u32 0, 4
    %s895 = smul.addr 4, 40
    %s896 = scalar_lea.vmem %s1, %s895
    %897 = vst [vmem:[%s896] sm:%s894] %v893
    %s898 = scalar_lea.vmem [#allocation0], 328
    %v899 = vld [vmem:[%s898] sm:%s654]
    %s900 = sshllo.u32 0, 4
    %s901 = smul.addr 4, 41
    %s902 = scalar_lea.vmem %s1, %s901
    %903 = vst [vmem:[%s902] sm:%s900] %v899
    %s904 = scalar_lea.vmem [#allocation0], 336
    %v905 = vld [vmem:[%s904] sm:%s654]
    %s906 = sshllo.u32 0, 4
    %s907 = smul.addr 4, 42
    %s908 = scalar_lea.vmem %s1, %s907
    %909 = vst [vmem:[%s908] sm:%s906] %v905
    %s910 = scalar_lea.vmem [#allocation0], 344
    %v911 = vld [vmem:[%s910] sm:%s654]
    %s912 = sshllo.u32 0, 4
    %s913 = smul.addr 4, 43
    %s914 = scalar_lea.vmem %s1, %s913
    %915 = vst [vmem:[%s914] sm:%s912] %v911
    %s916 = scalar_lea.vmem [#allocation0], 352
    %v917 = vld [vmem:[%s916] sm:%s654]
    %s918 = sshllo.u32 0, 4
    %s919 = smul.addr 4, 44
    %s920 = scalar_lea.vmem %s1, %s919
    %921 = vst [vmem:[%s920] sm:%s918] %v917
    %s922 = scalar_lea.vmem [#allocation0], 360
    %v923 = vld [vmem:[%s922] sm:%s654]
    %s924 = sshllo.u32 0, 4
    %s925 = smul.addr 4, 45
    %s926 = scalar_lea.vmem %s1, %s925
    %927 = vst [vmem:[%s926] sm:%s924] %v923
    %s928 = scalar_lea.vmem [#allocation0], 368
    %v929 = vld [vmem:[%s928] sm:%s654]
    %s930 = sshllo.u32 0, 4
    %s931 = smul.addr 4, 46
    %s932 = scalar_lea.vmem %s1, %s931
    %933 = vst [vmem:[%s932] sm:%s930] %v929
    %s934 = scalar_lea.vmem [#allocation0], 376
    %v935 = vld [vmem:[%s934] sm:%s654]
    %s936 = sshllo.u32 0, 4
    %s937 = smul.addr 4, 47
    %s938 = scalar_lea.vmem %s1, %s937
    %939 = vst [vmem:[%s938] sm:%s936] %v935
    %s940 = scalar_lea.vmem [#allocation0], 384
    %v941 = vld [vmem:[%s940] sm:%s654]
    %s942 = sshllo.u32 0, 4
    %s943 = smul.addr 4, 48
    %s944 = scalar_lea.vmem %s1, %s943
    %945 = vst [vmem:[%s944] sm:%s942] %v941
    %s946 = scalar_lea.vmem [#allocation0], 392
    %v947 = vld [vmem:[%s946] sm:%s654]
    %s948 = sshllo.u32 0, 4
    %s949 = smul.addr 4, 49
    %s950 = scalar_lea.vmem %s1, %s949
    %951 = vst [vmem:[%s950] sm:%s948] %v947
    %s952 = scalar_lea.vmem [#allocation0], 400
    %v953 = vld [vmem:[%s952] sm:%s654]
    %s954 = sshllo.u32 0, 4
    %s955 = smul.addr 4, 50
    %s956 = scalar_lea.vmem %s1, %s955
    %957 = vst [vmem:[%s956] sm:%s954] %v953
    %s958 = scalar_lea.vmem [#allocation0], 408
    %v959 = vld [vmem:[%s958] sm:%s654]
    %s960 = sshllo.u32 0, 4
    %s961 = smul.addr 4, 51
    %s962 = scalar_lea.vmem %s1, %s961
    %963 = vst [vmem:[%s962] sm:%s960] %v959
    %s964 = scalar_lea.vmem [#allocation0], 416
    %v965 = vld [vmem:[%s964] sm:%s654]
    %s966 = sshllo.u32 0, 4
    %s967 = smul.addr 4, 52
    %s968 = scalar_lea.vmem %s1, %s967
    %969 = vst [vmem:[%s968] sm:%s966] %v965
    %s970 = scalar_lea.vmem [#allocation0], 424
    %v971 = vld [vmem:[%s970] sm:%s654]
    %s972 = sshllo.u32 0, 4
    %s973 = smul.addr 4, 53
    %s974 = scalar_lea.vmem %s1, %s973
    %975 = vst [vmem:[%s974] sm:%s972] %v971
    %s976 = scalar_lea.vmem [#allocation0], 432
    %v977 = vld [vmem:[%s976] sm:%s654]
    %s978 = sshllo.u32 0, 4
    %s979 = smul.addr 4, 54
    %s980 = scalar_lea.vmem %s1, %s979
    %981 = vst [vmem:[%s980] sm:%s978] %v977
    %s982 = scalar_lea.vmem [#allocation0], 440
    %v983 = vld [vmem:[%s982] sm:%s654]
    %s984 = sshllo.u32 0, 4
    %s985 = smul.addr 4, 55
    %s986 = scalar_lea.vmem %s1, %s985
    %987 = vst [vmem:[%s986] sm:%s984] %v983
    %s988 = scalar_lea.vmem [#allocation0], 448
    %v989 = vld [vmem:[%s988] sm:%s654]
    %s990 = sshllo.u32 0, 4
    %s991 = smul.addr 4, 56
    %s992 = scalar_lea.vmem %s1, %s991
    %993 = vst [vmem:[%s992] sm:%s990] %v989
    %s994 = scalar_lea.vmem [#allocation0], 456
    %v995 = vld [vmem:[%s994] sm:%s654]
    %s996 = sshllo.u32 0, 4
    %s997 = smul.addr 4, 57
    %s998 = scalar_lea.vmem %s1, %s997
    %999 = vst [vmem:[%s998] sm:%s996] %v995
    %s1000 = scalar_lea.vmem [#allocation0], 464
    %v1001 = vld [vmem:[%s1000] sm:%s654]
    %s1002 = sshllo.u32 0, 4
    %s1003 = smul.addr 4, 58
    %s1004 = scalar_lea.vmem %s1, %s1003
    %1005 = vst [vmem:[%s1004] sm:%s1002] %v1001
    %s1006 = scalar_lea.vmem [#allocation0], 472
    %v1007 = vld [vmem:[%s1006] sm:%s654]
    %s1008 = sshllo.u32 0, 4
    %s1009 = smul.addr 4, 59
    %s1010 = scalar_lea.vmem %s1, %s1009
    %1011 = vst [vmem:[%s1010] sm:%s1008] %v1007
    %s1012 = scalar_lea.vmem [#allocation0], 480
    %v1013 = vld [vmem:[%s1012] sm:%s654]
    %s1014 = sshllo.u32 0, 4
    %s1015 = smul.addr 4, 60
    %s1016 = scalar_lea.vmem %s1, %s1015
    %1017 = vst [vmem:[%s1016] sm:%s1014] %v1013
    %s1018 = scalar_lea.vmem [#allocation0], 488
    %v1019 = vld [vmem:[%s1018] sm:%s654]
    %s1020 = sshllo.u32 0, 4
    %s1021 = smul.addr 4, 61
    %s1022 = scalar_lea.vmem %s1, %s1021
    %1023 = vst [vmem:[%s1022] sm:%s1020] %v1019
    %s1024 = scalar_lea.vmem [#allocation0], 496
    %v1025 = vld [vmem:[%s1024] sm:%s654]
    %s1026 = sshllo.u32 0, 4
    %s1027 = smul.addr 4, 62
    %s1028 = scalar_lea.vmem %s1, %s1027
    %1029 = vst [vmem:[%s1028] sm:%s1026] %v1025
    %s1030 = scalar_lea.vmem [#allocation0], 504
    %v1031 = vld [vmem:[%s1030] sm:%s654]
    %s1032 = sshllo.u32 0, 4
    %s1033 = smul.addr 4, 63
    %s1034 = scalar_lea.vmem %s1, %s1033
    %1035 = vst [vmem:[%s1034] sm:%s1032] %v1031

// kernel: t5_decoder_init.1
$region0: #{t5_decoder_init.1}
  #allocation0 [shape = 'u32[]', space=smem, size = 0x4, offset = 0x4, fixed_abs, tag = 'smem constant byte address 0x4 - core index']
  #allocation1 [shape = 'u32[144,128]{1,0:T(1,128)}', space=vmem, size = 0x12000, scoped, tag = 'internal scratch']
  %s0 = inlined_call_operand.vmem [shape: f32[2,8], index: 0, kind: input, shape index: {}]
  %s1 = inlined_call_operand.vmem [shape: f32[16,32], index: 1, kind: input, shape index: {}]
  %s2 = inlined_call_operand.vmem [shape: f32[16,32], index: 2, kind: input, shape index: {}]
  %s3 = inlined_call_operand.vmem [shape: f32[2,3,32], index: 3, kind: input, shape index: {}]
  %s4 = inlined_call_operand.vmem [shape: bf16[2,32,96], index: 4, kind: input, shape index: {}]
  %s5 = inlined_call_operand.vmem [shape: bf16[2,32,32], index: 5, kind: input, shape index: {}]
  %s6 = inlined_call_operand.vmem [shape: bf16[2,32,32], index: 6, kind: input, shape index: {}]
  %s7 = inlined_call_operand.vmem [shape: bf16[2,32,64], index: 7, kind: input, shape index: {}]
  %s8 = inlined_call_operand.vmem [shape: bf16[2,32,32], index: 8, kind: input, shape index: {}]
  %s9 = inlined_call_operand.vmem [shape: bf16[2,32,64], index: 9, kind: input, shape index: {}]
  %s10 = inlined_call_operand.vmem [shape: bf16[2,64,32], index: 10, kind: input, shape index: {}]
  %s11 = inlined_call_operand.vmem [shape: f32[1,32], index: 11, kind: input, shape index: {}]
  %s12 = inlined_call_operand.vmem [shape: bf16[32,128], index: 12, kind: input, shape index: {}]
  %s13 = inlined_call_operand.hbm [shape: f32[16,128], index: 13, kind: output, shape index: {0}]
  %s14 = inlined_call_operand.vmem [shape: f32[2,16,128], index: 14, kind: output, shape index: {1}]
  %15 = xla_tuple %s13, %s14
  %s16 = sld [smem:[#allocation0]]
  $region127: #{t5_decoder_init.1} parent=0
    _
  %s18 = ssub.s32 1, %s16
  %s19 = scalar_select 0, %s18, %s16
  $region1: #{t5_decoder_init.1} parent=0
    #allocation2 [shape = 'u8[8192]{0}', space=vmem, size = 0x2000, scoped, tag = 'output window, operand 0']
    #allocation3 [shape = 's32[2]{0}', space=sflag, size = 0x8, scoped, tag = 'scoped memory for t5_decoder_init.1']
    #allocation4 [shape = 'u8[16384]{0}', space=vmem, size = 0x4000, scoped, tag = 'output window, operand 1']
    %20 = vsyncpa [#allocation3], 0
    %s21 = scalar_lea.sflag [#allocation3], 1
    %22 = vsyncpa %s21, 0
    loop: start=0, step=1, limit=4
    $region2: #{t5_decoder_init.1} parent=1 // loop_pre_header
      _
    $region3: #{t5_decoder_init.1} parent=1 // loop_header
      %s24 = sphi 0, %s28
      %p25 = scmp.ge.s32.totalorder %s24, 4
      %s32 = sphi 0, %s32
      %s34 = sphi 0, %s32
      %s35 = sphi 0, %s34
      %s49 = sphi 0, %s35
      %s55 = sphi 0, %s57
      %s58 = sphi 0, %s55
      %s59 = sphi 0, %s58
      %s75 = sphi 0, %s59
      %s81 = sphi 0, %s83
      %s84 = sphi 0, %s81
      %s85 = sphi 0, %s84
      %s101 = sphi 0, %s85
      %s105 = sphi 0, %s105
      %s107 = sphi 0, %s105
      %s108 = sphi 0, %s107
      %s122 = sphi 0, %s108
      %s126 = sphi 0, %s126
      %s128 = sphi 0, %s126
      %s129 = sphi 0, %s128
      %s143 = sphi 0, %s129
      %s147 = sphi 0, %s147
      %s149 = sphi 0, %s147
      %s150 = sphi 0, %s149
      %s164 = sphi 0, %s150
      %s168 = sphi 0, %s168
      %s170 = sphi 0, %s168
      %s171 = sphi 0, %s170
      %s185 = sphi 0, %s171
      %s189 = sphi 0, %s189
      %s191 = sphi 0, %s189
      %s192 = sphi 0, %s191
      %s206 = sphi 0, %s192
      %s210 = sphi 0, %s210
      %s212 = sphi 0, %s210
      %s213 = sphi 0, %s212
      %s227 = sphi 0, %s213
      %s231 = sphi 0, %s231
      %s233 = sphi 0, %s231
      %s234 = sphi 0, %s233
      %s248 = sphi 0, %s234
      %s252 = sphi 0, %s252
      %s254 = sphi 0, %s252
      %s255 = sphi 0, %s254
      %s269 = sphi 0, %s255
      %s273 = sphi 0, %s273
      %s275 = sphi 0, %s273
      %s276 = sphi 0, %s275
      %s290 = sphi 0, %s276
      %s294 = sphi 0, %s294
      %s296 = sphi 0, %s294
      %s297 = sphi 0, %s296
      %s311 = sphi 0, %s297
      %s317 = sphi 0, %s319
      %s320 = sphi 0, %s317
      %s321 = sphi 0, %s320
      %s337 = sphi 0, %s321
      %s343 = sphi 0, %s345
      %s346 = sphi 0, %s343
      %s347 = sphi 0, %s346
      %s363 = sphi 0, %s347
    $region4: #{t5_decoder_init.1} parent=1 // loop_header_branch
      %27 = sbr.rel (%p25) target = $region8
    $region5: #{t5_decoder_init.1} parent=1 // loop_body
      %s29 = ssub.s32 %s24, 1
      %s30 = ssub.s32 %s24, 2
      %s31 = sadd.s32 %s24, 1
      %s33 = sadd.s32 %s32, 1
      %p36 = scmp.eq.s32.totalorder %s24, 1
      %p37 = scmp.ne.s32.totalorder %s32, %s34
      %p38 = scmp.eq.s32.totalorder %s24, 0
      %p39 = por %p37, %p38
      %p40 = scmp.ne.s32.totalorder %s32, %s34
      %p41 = scmp.eq.s32.totalorder %s29, 1
      %p42 = por %p40, %p41
      %p43 = scmp.ne.s32.totalorder %s34, %s35
      %p44 = scmp.eq.s32.totalorder %s29, 0
      %p45 = por %p43, %p44
      %p46 = scmp.ne.s32.totalorder %s34, %s35
      %p47 = scmp.eq.s32.totalorder %s30, 1
      %p48 = por %p46, %p47
      %p50 = scmp.ne.s32.totalorder %s35, %s49
      %p51 = scmp.eq.s32.totalorder %s30, 0
      %p52 = por %p50, %p51
      %s53 = ssub.s32 %s24, %s31
      %p54 = scmp.eq.s32.totalorder %s53, 0
      %s56 = sadd.s32 %s55, 1
      %s57 = scalar_select %p54, %s55, %s56
      %p60 = pneg %p54
      %p61 = scmp.eq.s32.totalorder %s24, 1
      %p62 = por %p60, %p61
      %p63 = scmp.ne.s32.totalorder %s55, %s58
      %p64 = scmp.eq.s32.totalorder %s24, 0
      %p65 = por %p63, %p64
      %p66 = scmp.ne.s32.totalorder %s55, %s58
      %p67 = scmp.eq.s32.totalorder %s29, 1
      %p68 = por %p66, %p67
      %p69 = scmp.ne.s32.totalorder %s58, %s59
      %p70 = scmp.eq.s32.totalorder %s29, 0
      %p71 = por %p69, %p70
      %p72 = scmp.ne.s32.totalorder %s58, %s59
      %p73 = scmp.eq.s32.totalorder %s30, 1
      %p74 = por %p72, %p73
      %p76 = scmp.ne.s32.totalorder %s59, %s75
      %p77 = scmp.eq.s32.totalorder %s30, 0
      %p78 = por %p76, %p77
      %s79 = ssub.s32 %s24, %s31
      %p80 = scmp.eq.s32.totalorder %s79, 0
      %s82 = sadd.s32 %s81, 1
      %s83 = scalar_select %p80, %s81, %s82
      %p86 = pneg %p80
      %p87 = scmp.eq.s32.totalorder %s24, 1
      %p88 = por %p86, %p87
      %p89 = scmp.ne.s32.totalorder %s81, %s84
      %p90 = scmp.eq.s32.totalorder %s24, 0
      %p91 = por %p89, %p90
      %p92 = scmp.ne.s32.totalorder %s81, %s84
      %p93 = scmp.eq.s32.totalorder %s29, 1
      %p94 = por %p92, %p93
      %p95 = scmp.ne.s32.totalorder %s84, %s85
      %p96 = scmp.eq.s32.totalorder %s29, 0
      %p97 = por %p95, %p96
      %p98 = scmp.ne.s32.totalorder %s84, %s85
      %p99 = scmp.eq.s32.totalorder %s30, 1
      %p100 = por %p98, %p99
      %p102 = scmp.ne.s32.totalorder %s85, %s101
      %p103 = scmp.eq.s32.totalorder %s30, 0
      %p104 = por %p102, %p103
      %s106 = sadd.s32 %s105, 1
      %p109 = scmp.eq.s32.totalorder %s24, 1
      %p110 = scmp.ne.s32.totalorder %s105, %s107
      %p111 = scmp.eq.s32.totalorder %s24, 0
      %p112 = por %p110, %p111
      %p113 = scmp.ne.s32.totalorder %s105, %s107
      %p114 = scmp.eq.s32.totalorder %s29, 1
      %p115 = por %p113, %p114
      %p116 = scmp.ne.s32.totalorder %s107, %s108
      %p117 = scmp.eq.s32.totalorder %s29, 0
      %p118 = por %p116, %p117
      %p119 = scmp.ne.s32.totalorder %s107, %s108
      %p120 = scmp.eq.s32.totalorder %s30, 1
      %p121 = por %p119, %p120
      %p123 = scmp.ne.s32.totalorder %s108, %s122
      %p124 = scmp.eq.s32.totalorder %s30, 0
      %p125 = por %p123, %p124
      %s127 = sadd.s32 %s126, 1
      %p130 = scmp.eq.s32.totalorder %s24, 1
      %p131 = scmp.ne.s32.totalorder %s126, %s128
      %p132 = scmp.eq.s32.totalorder %s24, 0
      %p133 = por %p131, %p132
      %p134 = scmp.ne.s32.totalorder %s126, %s128
      %p135 = scmp.eq.s32.totalorder %s29, 1
      %p136 = por %p134, %p135
      %p137 = scmp.ne.s32.totalorder %s128, %s129
      %p138 = scmp.eq.s32.totalorder %s29, 0
      %p139 = por %p137, %p138
      %p140 = scmp.ne.s32.totalorder %s128, %s129
      %p141 = scmp.eq.s32.totalorder %s30, 1
      %p142 = por %p140, %p141
      %p144 = scmp.ne.s32.totalorder %s129, %s143
      %p145 = scmp.eq.s32.totalorder %s30, 0
      %p146 = por %p144, %p145
      %s148 = sadd.s32 %s147, 1
      %p151 = scmp.eq.s32.totalorder %s24, 1
      %p152 = scmp.ne.s32.totalorder %s147, %s149
      %p153 = scmp.eq.s32.totalorder %s24, 0
      %p154 = por %p152, %p153
      %p155 = scmp.ne.s32.totalorder %s147, %s149
      %p156 = scmp.eq.s32.totalorder %s29, 1
      %p157 = por %p155, %p156
      %p158 = scmp.ne.s32.totalorder %s149, %s150
      %p159 = scmp.eq.s32.totalorder %s29, 0
      %p160 = por %p158, %p159
      %p161 = scmp.ne.s32.totalorder %s149, %s150
      %p162 = scmp.eq.s32.totalorder %s30, 1
      %p163 = por %p161, %p162
      %p165 = scmp.ne.s32.totalorder %s150, %s164
      %p166 = scmp.eq.s32.totalorder %s30, 0
      %p167 = por %p165, %p166
      %s169 = sadd.s32 %s168, 1
      %p172 = scmp.eq.s32.totalorder %s24, 1
      %p173 = scmp.ne.s32.totalorder %s168, %s170
      %p174 = scmp.eq.s32.totalorder %s24, 0
      %p175 = por %p173, %p174
      %p176 = scmp.ne.s32.totalorder %s168, %s170
      %p177 = scmp.eq.s32.totalorder %s29, 1
      %p178 = por %p176, %p177
      %p179 = scmp.ne.s32.totalorder %s170, %s171
      %p180 = scmp.eq.s32.totalorder %s29, 0
      %p181 = por %p179, %p180
      %p182 = scmp.ne.s32.totalorder %s170, %s171
      %p183 = scmp.eq.s32.totalorder %s30, 1
      %p184 = por %p182, %p183
      %p186 = scmp.ne.s32.totalorder %s171, %s185
      %p187 = scmp.eq.s32.totalorder %s30, 0
      %p188 = por %p186, %p187
      %s190 = sadd.s32 %s189, 1
      %p193 = scmp.eq.s32.totalorder %s24, 1
      %p194 = scmp.ne.s32.totalorder %s189, %s191
      %p195 = scmp.eq.s32.totalorder %s24, 0
      %p196 = por %p194, %p195
      %p197 = scmp.ne.s32.totalorder %s189, %s191
      %p198 = scmp.eq.s32.totalorder %s29, 1
      %p199 = por %p197, %p198
      %p200 = scmp.ne.s32.totalorder %s191, %s192
      %p201 = scmp.eq.s32.totalorder %s29, 0
      %p202 = por %p200, %p201
      %p203 = scmp.ne.s32.totalorder %s191, %s192
      %p204 = scmp.eq.s32.totalorder %s30, 1
      %p205 = por %p203, %p204
      %p207 = scmp.ne.s32.totalorder %s192, %s206
      %p208 = scmp.eq.s32.totalorder %s30, 0
      %p209 = por %p207, %p208
      %s211 = sadd.s32 %s210, 1
      %p214 = scmp.eq.s32.totalorder %s24, 1
      %p215 = scmp.ne.s32.totalorder %s210, %s212
      %p216 = scmp.eq.s32.totalorder %s24, 0
      %p217 = por %p215, %p216
      %p218 = scmp.ne.s32.totalorder %s210, %s212
      %p219 = scmp.eq.s32.totalorder %s29, 1
      %p220 = por %p218, %p219
      %p221 = scmp.ne.s32.totalorder %s212, %s213
      %p222 = scmp.eq.s32.totalorder %s29, 0
      %p223 = por %p221, %p222
      %p224 = scmp.ne.s32.totalorder %s212, %s213
      %p225 = scmp.eq.s32.totalorder %s30, 1
      %p226 = por %p224, %p225
      %p228 = scmp.ne.s32.totalorder %s213, %s227
      %p229 = scmp.eq.s32.totalorder %s30, 0
      %p230 = por %p228, %p229
      %s232 = sadd.s32 %s231, 1
      %p235 = scmp.eq.s32.totalorder %s24, 1
      %p236 = scmp.ne.s32.totalorder %s231, %s233
      %p237 = scmp.eq.s32.totalorder %s24, 0
      %p238 = por %p236, %p237
      %p239 = scmp.ne.s32.totalorder %s231, %s233
      %p240 = scmp.eq.s32.totalorder %s29, 1
      %p241 = por %p239, %p240
      %p242 = scmp.ne.s32.totalorder %s233, %s234
      %p243 = scmp.eq.s32.totalorder %s29, 0
      %p244 = por %p242, %p243
      %p245 = scmp.ne.s32.totalorder %s233, %s234
      %p246 = scmp.eq.s32.totalorder %s30, 1
      %p247 = por %p245, %p246
      %p249 = scmp.ne.s32.totalorder %s234, %s248
      %p250 = scmp.eq.s32.totalorder %s30, 0
      %p251 = por %p249, %p250
      %s253 = sadd.s32 %s252, 1
      %p256 = scmp.eq.s32.totalorder %s24, 1
      %p257 = scmp.ne.s32.totalorder %s252, %s254
      %p258 = scmp.eq.s32.totalorder %s24, 0
      %p259 = por %p257, %p258
      %p260 = scmp.ne.s32.totalorder %s252, %s254
      %p261 = scmp.eq.s32.totalorder %s29, 1
      %p262 = por %p260, %p261
      %p263 = scmp.ne.s32.totalorder %s254, %s255
      %p264 = scmp.eq.s32.totalorder %s29, 0
      %p265 = por %p263, %p264
      %p266 = scmp.ne.s32.totalorder %s254, %s255
      %p267 = scmp.eq.s32.totalorder %s30, 1
      %p268 = por %p266, %p267
      %p270 = scmp.ne.s32.totalorder %s255, %s269
      %p271 = scmp.eq.s32.totalorder %s30, 0
      %p272 = por %p270, %p271
      %s274 = sadd.s32 %s273, 1
      %p277 = scmp.eq.s32.totalorder %s24, 1
      %p278 = scmp.ne.s32.totalorder %s273, %s275
      %p279 = scmp.eq.s32.totalorder %s24, 0
      %p280 = por %p278, %p279
      %p281 = scmp.ne.s32.totalorder %s273, %s275
      %p282 = scmp.eq.s32.totalorder %s29, 1
      %p283 = por %p281, %p282
      %p284 = scmp.ne.s32.totalorder %s275, %s276
      %p285 = scmp.eq.s32.totalorder %s29, 0
      %p286 = por %p284, %p285
      %p287 = scmp.ne.s32.totalorder %s275, %s276
      %p288 = scmp.eq.s32.totalorder %s30, 1
      %p289 = por %p287, %p288
      %p291 = scmp.ne.s32.totalorder %s276, %s290
      %p292 = scmp.eq.s32.totalorder %s30, 0
      %p293 = por %p291, %p292
      %s295 = sadd.s32 %s294, 1
      %p298 = scmp.eq.s32.totalorder %s24, 1
      %p299 = scmp.ne.s32.totalorder %s294, %s296
      %p300 = scmp.eq.s32.totalorder %s24, 0
      %p301 = por %p299, %p300
      %p302 = scmp.ne.s32.totalorder %s294, %s296
      %p303 = scmp.eq.s32.totalorder %s29, 1
      %p304 = por %p302, %p303
      %p305 = scmp.ne.s32.totalorder %s296, %s297
      %p306 = scmp.eq.s32.totalorder %s29, 0
      %p307 = por %p305, %p306
      %p308 = scmp.ne.s32.totalorder %s296, %s297
      %p309 = scmp.eq.s32.totalorder %s30, 1
      %p310 = por %p308, %p309
      %p312 = scmp.ne.s32.totalorder %s297, %s311
      %p313 = scmp.eq.s32.totalorder %s30, 0
      %p314 = por %p312, %p313
      %s315 = ssub.s32 %s24, %s31
      %p316 = scmp.eq.s32.totalorder %s315, 0
      %s318 = sadd.s32 %s317, 1
      %s319 = scalar_select %p316, %s317, %s318
      %p322 = pneg %p316
      %p323 = scmp.eq.s32.totalorder %s24, 1
      %p324 = por %p322, %p323
      %p325 = scmp.ne.s32.totalorder %s317, %s320
      %p326 = scmp.eq.s32.totalorder %s24, 0
      %p327 = por %p325, %p326
      %p328 = scmp.ne.s32.totalorder %s317, %s320
      %p329 = scmp.eq.s32.totalorder %s29, 1
      %p330 = por %p328, %p329
      %p331 = scmp.ne.s32.totalorder %s320, %s321
      %p332 = scmp.eq.s32.totalorder %s29, 0
      %p333 = por %p331, %p332
      %p334 = scmp.ne.s32.totalorder %s320, %s321
      %p335 = scmp.eq.s32.totalorder %s30, 1
      %p336 = por %p334, %p335
      %p338 = scmp.ne.s32.totalorder %s321, %s337
      %p339 = scmp.eq.s32.totalorder %s30, 0
      %p340 = por %p338, %p339
      %s341 = ssub.s32 %s24, %s31
      %p342 = scmp.eq.s32.totalorder %s341, 0
      %s344 = sadd.s32 %s343, 1
      %s345 = scalar_select %p342, %s343, %s344
      %p348 = pneg %p342
      %p349 = scmp.eq.s32.totalorder %s24, 1
      %p350 = por %p348, %p349
      %p351 = scmp.ne.s32.totalorder %s343, %s346
      %p352 = scmp.eq.s32.totalorder %s24, 0
      %p353 = por %p351, %p352
      %p354 = scmp.ne.s32.totalorder %s343, %s346
      %p355 = scmp.eq.s32.totalorder %s29, 1
      %p356 = por %p354, %p355
      %p357 = scmp.ne.s32.totalorder %s346, %s347
      %p358 = scmp.eq.s32.totalorder %s29, 0
      %p359 = por %p357, %p358
      %p360 = scmp.ne.s32.totalorder %s346, %s347
      %p361 = scmp.eq.s32.totalorder %s30, 1
      %p362 = por %p360, %p361
      %p364 = scmp.ne.s32.totalorder %s347, %s363
      %p365 = scmp.eq.s32.totalorder %s30, 0
      %p366 = por %p364, %p365
      %p367 = scmp.le.s32.totalorder 1, %s24
      %p368 = scmp.lt.s32.totalorder %s24, 3
      %p369 = pnand %p367, %p368
      %p370 = pneg %p369
      // Predicated region
      $region9: #{t5_decoder_init.1} parent=5 // pred_check
        _
      $region10: #{t5_decoder_init.1} parent=5 // pred_check_branch
        %372 = sbr.rel (%p369) target = $region12
      $region11: #{t5_decoder_init.1} parent=5 // pred_region
        %s373 = ssub.s32 %s24, 1
        // Predicated region
        $region13: #{t5_decoder_init.1} parent=11 // pred_check
          %p374 = pneg %p45
        $region14: #{t5_decoder_init.1} parent=11 // pred_check_branch
          %376 = sbr.rel (%p374) target = $region16
        $region15: #{t5_decoder_init.1} parent=11 // pred_region
          _
        $region16: #{t5_decoder_init.1} parent=11 // pred_fallthru
          _
        // Predicated region
        $region17: #{t5_decoder_init.1} parent=11 // pred_check
          %p377 = pneg %p118
        $region18: #{t5_decoder_init.1} parent=11 // pred_check_branch
          %379 = sbr.rel (%p377) target = $region20
        $region19: #{t5_decoder_init.1} parent=11 // pred_region
          _
        $region20: #{t5_decoder_init.1} parent=11 // pred_fallthru
          _
        // Predicated region
        $region21: #{t5_decoder_init.1} parent=11 // pred_check
          %p380 = pneg %p139
        $region22: #{t5_decoder_init.1} parent=11 // pred_check_branch
          %382 = sbr.rel (%p380) target = $region24
        $region23: #{t5_decoder_init.1} parent=11 // pred_region
          _
        $region24: #{t5_decoder_init.1} parent=11 // pred_fallthru
          _
        // Predicated region
        $region25: #{t5_decoder_init.1} parent=11 // pred_check
          %p383 = pneg %p160
        $region26: #{t5_decoder_init.1} parent=11 // pred_check_branch
          %385 = sbr.rel (%p383) target = $region28
        $region27: #{t5_decoder_init.1} parent=11 // pred_region
          _
        $region28: #{t5_decoder_init.1} parent=11 // pred_fallthru
          _
        // Predicated region
        $region29: #{t5_decoder_init.1} parent=11 // pred_check
          %p386 = pneg %p181
        $region30: #{t5_decoder_init.1} parent=11 // pred_check_branch
          %388 = sbr.rel (%p386) target = $region32
        $region31: #{t5_decoder_init.1} parent=11 // pred_region
          _
        $region32: #{t5_decoder_init.1} parent=11 // pred_fallthru
          _
        // Predicated region
        $region33: #{t5_decoder_init.1} parent=11 // pred_check
          %p389 = pneg %p202
        $region34: #{t5_decoder_init.1} parent=11 // pred_check_branch
          %391 = sbr.rel (%p389) target = $region36
        $region35: #{t5_decoder_init.1} parent=11 // pred_region
          _
        $region36: #{t5_decoder_init.1} parent=11 // pred_fallthru
          _
        // Predicated region
        $region37: #{t5_decoder_init.1} parent=11 // pred_check
          %p392 = pneg %p223
        $region38: #{t5_decoder_init.1} parent=11 // pred_check_branch
          %394 = sbr.rel (%p392) target = $region40
        $region39: #{t5_decoder_init.1} parent=11 // pred_region
          _
        $region40: #{t5_decoder_init.1} parent=11 // pred_fallthru
          _
        // Predicated region
        $region41: #{t5_decoder_init.1} parent=11 // pred_check
          %p395 = pneg %p244
        $region42: #{t5_decoder_init.1} parent=11 // pred_check_branch
          %397 = sbr.rel (%p395) target = $region44
        $region43: #{t5_decoder_init.1} parent=11 // pred_region
          _
        $region44: #{t5_decoder_init.1} parent=11 // pred_fallthru
          _
        // Predicated region
        $region45: #{t5_decoder_init.1} parent=11 // pred_check
          %p398 = pneg %p265
        $region46: #{t5_decoder_init.1} parent=11 // pred_check_branch
          %400 = sbr.rel (%p398) target = $region48
        $region47: #{t5_decoder_init.1} parent=11 // pred_region
          _
        $region48: #{t5_decoder_init.1} parent=11 // pred_fallthru
          _
        // Predicated region
        $region49: #{t5_decoder_init.1} parent=11 // pred_check
          %p401 = pneg %p286
        $region50: #{t5_decoder_init.1} parent=11 // pred_check_branch
          %403 = sbr.rel (%p401) target = $region52
        $region51: #{t5_decoder_init.1} parent=11 // pred_region
          _
        $region52: #{t5_decoder_init.1} parent=11 // pred_fallthru
          _
        // Predicated region
        $region53: #{t5_decoder_init.1} parent=11 // pred_check
          %p404 = pneg %p307
        $region54: #{t5_decoder_init.1} parent=11 // pred_check_branch
          %406 = sbr.rel (%p404) target = $region56
        $region55: #{t5_decoder_init.1} parent=11 // pred_region
          _
        $region56: #{t5_decoder_init.1} parent=11 // pred_fallthru
          _
      $region12: #{t5_decoder_init.1} parent=5 // pred_fallthru
        _
      %p407 = scmp.lt.s32.totalorder %s24, 2
      // Predicated region
      $region57: #{t5_decoder_init.1} parent=5 // pred_check
        %p408 = pneg %p407
      $region58: #{t5_decoder_init.1} parent=5 // pred_check_branch
        %410 = sbr.rel (%p408) target = $region60
      $region59: #{t5_decoder_init.1} parent=5 // pred_region
        // Predicated region
        $region61: #{t5_decoder_init.1} parent=59 // pred_check
          %p411 = pneg %p65
        $region62: #{t5_decoder_init.1} parent=59 // pred_check_branch
          %413 = sbr.rel (%p411) target = $region64
        $region63: #{t5_decoder_init.1} parent=59 // pred_region
          %p414 = scmp.lt.s32.totalorder %s24, 1
          %s415 = scalar_select %p414, %s24, 1
          %s416 = smul.addr %s415, 8
          %s417 = scalar_lea.vmem %s1, %s416
        $region64: #{t5_decoder_init.1} parent=59 // pred_fallthru
          _
        // Predicated region
        $region65: #{t5_decoder_init.1} parent=59 // pred_check
          %p418 = pneg %p91
        $region66: #{t5_decoder_init.1} parent=59 // pred_check_branch
          %420 = sbr.rel (%p418) target = $region68
        $region67: #{t5_decoder_init.1} parent=59 // pred_region
          %p421 = scmp.lt.s32.totalorder %s24, 1
          %s422 = scalar_select %p421, %s24, 1
          %s423 = smul.addr %s422, 8
          %s424 = scalar_lea.vmem %s2, %s423
        $region68: #{t5_decoder_init.1} parent=59 // pred_fallthru
          _
      $region60: #{t5_decoder_init.1} parent=5 // pred_fallthru
        _
      %p425 = scmp.le.s32.totalorder 1, %s24
      %p426 = scmp.lt.s32.totalorder %s24, 3
      %p427 = pnand %p425, %p426
      %p428 = pneg %p427
      // Predicated region
      $region69: #{t5_decoder_init.1} parent=5 // pred_check
        _
      $region70: #{t5_decoder_init.1} parent=5 // pred_check_branch
        %430 = sbr.rel (%p427) target = $region72
      $region71: #{t5_decoder_init.1} parent=5 // pred_region
        %s431 = ssub.s32 %s24, 1
        %p432 = pneg %p45
        %p433 = pneg %p42
        %p434 = scmp.lt.s32.totalorder %s29, 1
        %s435 = scalar_select %p434, %s29, 1
        %s436 = smul.addr %s435, 8
        %s437 = scalar_lea.vmem %s1, %s436
        %p438 = pneg %p71
        %p439 = pneg %p68
        %p440 = scmp.lt.s32.totalorder %s29, 1
        %s441 = scalar_select %p440, %s29, 1
        %s442 = smul.addr %s441, 8
        %s443 = scalar_lea.vmem %s2, %s442
        %p444 = pneg %p97
        %p445 = pneg %p94
        %p446 = pneg %p118
        %p447 = pneg %p115
        %p448 = pneg %p139
        %p449 = pneg %p136
        %p450 = pneg %p160
        %p451 = pneg %p157
        %p452 = pneg %p181
        %p453 = pneg %p178
        %p454 = pneg %p202
        %p455 = pneg %p199
        %p456 = pneg %p223
        %p457 = pneg %p220
        %p458 = pneg %p244
        %p459 = pneg %p241
        %p460 = pneg %p265
        %p461 = pneg %p262
        %p462 = pneg %p286
        %p463 = pneg %p283
        %p464 = pneg %p307
        %p465 = pneg %p304
        %p466 = pneg %p333
        %p467 = pneg %p330
        %s468 = sand.u32 %s320, 1
        %s469 = scalar_lea.sflag [#allocation3], %s468
        %s470 = sand.u32 %s320, 1
        %s471 = smul.addr %s470, 8
        %s472 = scalar_lea.vmem [#allocation2], %s471
        %p473 = pneg %p359
        %p474 = pneg %p356
        %s475 = sand.u32 %s346, 1
        %s476 = sand.u32 %s346, 1
        %s477 = smul.addr %s476, 16
        %s478 = scalar_lea.vmem [#allocation4], %s477
        %p479 = scmp.lt.s32.totalorder %s29, 1
        %s480 = scalar_select %p479, %s29, 1
        %s481 = smul.addr %s480, 8
        %s482 = scalar_lea.vmem %s1, %s481
        %p483 = scmp.lt.s32.totalorder %s29, 1
        %s484 = scalar_select %p483, %s29, 1
        %s485 = smul.addr %s484, 8
        %s486 = scalar_lea.vmem %s2, %s485
        %v488 = vld [vmem:[%s482] sm:$0xff]
        %v489 = vld [vmem:[%s486] sm:$0xff]
        %v490 = vlaneseq
        %v491 = vshrl.u32 %v490, 7
        %v492 = vlaneseq
        %v493 = vand.u32 %v492, 127
        %vm494 = vcmp.ge.s32.totalorder %v491, %v493
        %v495 = vsel %vm494, 0.0, -1e+09
        %s496 = scalar_lea.vmem %s0, %s29
        %v497 = vld [vmem:[%s496] sm:$0x1]
        %v498 = vsub.f32 1.0, %v497
        %v499 = vmul.f32 %v498, -1e+09
        %v500 = vpack.c.bf16 %v489, %v489
        %v501 = vld [vmem:[%s3] sm:$0x7]
        %v502 = vmul.f32 %v488, %v488
        %vm503 = vcmask 261120
        %v504 = vsel %vm503, %v502, 0.0
        %505 = vadd.xlane.f32.xlu0 %v504
        %v506 = vpop.xlane.xlu0 %505
        %v507 = vrcp.pop 32.0
        %v508 = vmul.f32 %v506, %v507
        %v509 = vadd.f32 %v508, 1e-06
        %v510 = vrsqrt.pop %v509
        %v511 = vmul.f32 %v488, %v510
        %v512 = vlaneseq
        %v513 = vshrl.u32 %v512, 7
        %v514 = vsub.s32 0, %v513
        %v515 = vrot.slane %v501, %v514
        %v516 = vmul.f32 %v511, %v515
        %v517 = vpack.c.bf16 %v516, %v516
        %v518 = vld [vmem:[%s4] sm:$0xf]
        %v519 = vld [vmem:[%s4 + $0x4] sm:$0xf]
        %v520 = vld [vmem:[%s4 + $0x8] sm:$0xf]
        %v521 = vld [vmem:[%s4 + $0xc] sm:$0xf]
        %v526 = vunpack.c.l.b16 %v518
        %v527 = vunpack.c.l.b16 %v519
        %v528 = vunpack.c.l.b16 %v520
        %v529 = vunpack.c.l.b16 %v521
        %v530 = vpack.c.b16 %v527, %v526
        %v531 = vpack.c.b16 %v529, %v528
        %v535 = vsel %vm503, %v517, 0
        %537 = vmatprep.subr.bf16.mxu0 0
        %538 = vmatpush1.bf16.msra.mxu0 %v530
        %539 = vmatprep.subr.bf16.mxu0 0
        %540 = vmatpush1.bf16.msra.mxu0 %v531
        %541 = vmatprep.subr.bf16.mxu0 0
        %542 = vmatpush1.bf16.msra.mxu0 0
        %543 = vmatprep.subr.bf16.mxu0 0
        %544 = vmatpush1.bf16.msra.mxu0 0
        %545 = vmatprep.subr.bf16.mxu0 0
        %546 = vmatpush1.bf16.msra.mxu0 0
        %547 = vmatprep.subr.bf16.mxu0 0
        %548 = vmatpush1.bf16.msra.mxu0 0
        %549 = vmatprep.subr.bf16.mxu0 0
        %550 = vmatpush1.bf16.msra.mxu0 0
        %551 = vmatprep.subr.bf16.mxu0 0
        %552 = vmatpush1.bf16.msra.mxu0 0
        %553 = vmatprep.subr.bf16.mxu0 0
        %554 = vmatpush1.bf16.msra.mxu0 0
        %555 = vmatprep.subr.bf16.mxu0 0
        %556 = vmatpush1.bf16.msra.mxu0 0
        %557 = vmatprep.subr.bf16.mxu0 0
        %558 = vmatpush1.bf16.msra.mxu0 0
        %559 = vmatprep.subr.bf16.mxu0 0
        %560 = vmatpush1.bf16.msra.mxu0 0
        %561 = vmatprep.subr.bf16.mxu0 0
        %562 = vmatpush1.bf16.msra.mxu0 0
        %563 = vmatprep.subr.bf16.mxu0 0
        %564 = vmatpush1.bf16.msra.mxu0 0
        %565 = vmatprep.subr.bf16.mxu0 0
        %566 = vmatpush1.bf16.msra.mxu0 0
        %567 = vmatprep.subr.bf16.mxu0 0
        %568 = vmatpush1.bf16.msra.mxu0 0
        %569 = vmatprep.mubr.bf16.mxu0 0
        %570 = vmatmul.mubr.bf16.gmra.mrb[0].mxu0 %v535
        %v571 = vpop.f32.mrb[0].mxu0
        %v572 = vadd.f32 0.0, %v571
        %v573 = vpop.f32.mrb[0].mxu0
        %v574 = vpop.f32.mrb[0].mxu0
        %v575 = vpop.f32.mrb[0].mxu0
        %576 = vdwg.mxu0
        %578 = vrot.lane.b32.xlu0 %v572, 120
        %v579 = vpop.permute.xlu0 %578
        %580 = vrot.lane.b32.xlu0 %v572, 112
        %v581 = vpop.permute.xlu0 %580
        %582 = vrot.lane.b32.xlu0 %v572, 104
        %v583 = vpop.permute.xlu0 %582
        %584 = vrot.lane.b32.xlu0 %v572, 96
        %v585 = vpop.permute.xlu0 %584
        %vm586 = vcmask 64512
        %v587 = vsel %vm586, %v572, 0
        %v589 = vsel %vm586, %v585, 0
        %591 = vmatprep.subr.mxu0 0.0
        %592 = vmatpush1.xpose.msra.mxu0 %v589
        %593 = vmatprep.subr.mxu0 0.0
        %594 = vmatpush1.xpose.msra.mxu0 0.0
        %595 = vmatprep.subr.mxu0 0.0
        %596 = vmatpush1.xpose.msra.mxu0 0.0
        %597 = vmatprep.subr.mxu0 0.0
        %598 = vmatpush1.xpose.msra.mxu0 0.0
        %599 = vmatprep.subr.mxu0 0.0
        %600 = vmatpush1.xpose.msra.mxu0 0.0
        %601 = vmatprep.subr.mxu0 0.0
        %602 = vmatpush1.xpose.msra.mxu0 0.0
        %603 = vmatprep.subr.mxu0 0.0
        %604 = vmatpush1.xpose.msra.mxu0 0.0
        %605 = vmatprep.subr.mxu0 0.0
        %606 = vmatpush1.xpose.msra.mxu0 0.0
        %607 = vmatprep.subr.mxu0 0.0
        %608 = vmatpush1.xpose.msra.mxu0 0.0
        %609 = vmatprep.subr.mxu0 0.0
        %610 = vmatpush1.xpose.msra.mxu0 0.0
        %611 = vmatprep.subr.mxu0 0.0
        %612 = vmatpush1.xpose.msra.mxu0 0.0
        %613 = vmatprep.subr.mxu0 0.0
        %614 = vmatpush1.xpose.msra.mxu0 0.0
        %615 = vmatprep.subr.mxu0 0.0
        %616 = vmatpush1.xpose.msra.mxu0 0.0
        %617 = vmatprep.subr.mxu0 0.0
        %618 = vmatpush1.xpose.msra.mxu0 0.0
        %619 = vmatprep.subr.mxu0 0.0
        %620 = vmatpush1.xpose.msra.mxu0 0.0
        %621 = vmatprep.subr.mxu0 0.0
        %622 = vmatpush1.xpose.msra.mxu0 0.0
        %623 = vmatprep.subr.mxu0 0.0
        %624 = vmatpush1.xpose.msra.mxu0 0.0
        %625 = vmatprep.subr.mxu0 0.0
        %626 = vmatpush1.xpose.msra.mxu0 0.0
        %627 = vmatprep.subr.mxu0 0.0
        %628 = vmatpush1.xpose.msra.mxu0 0.0
        %629 = vmatprep.subr.mxu0 0.0
        %630 = vmatpush1.xpose.msra.mxu0 0.0
        %631 = vmatprep.subr.mxu0 0.0
        %632 = vmatpush1.xpose.msra.mxu0 0.0
        %633 = vmatprep.subr.mxu0 0.0
        %634 = vmatpush1.xpose.msra.mxu0 0.0
        %635 = vmatprep.subr.mxu0 0.0
        %636 = vmatpush1.xpose.msra.mxu0 0.0
        %637 = vmatprep.subr.mxu0 0.0
        %638 = vmatpush1.xpose.msra.mxu0 0.0
        %639 = vmatprep.subr.mxu0 0.0
        %640 = vmatpush1.xpose.msra.mxu0 0.0
        %641 = vmatprep.subr.mxu0 0.0
        %642 = vmatpush1.xpose.msra.mxu0 0.0
        %643 = vmatprep.subr.mxu0 0.0
        %644 = vmatpush1.xpose.msra.mxu0 0.0
        %645 = vmatprep.subr.mxu0 0.0
        %646 = vmatpush1.xpose.msra.mxu0 0.0
        %647 = vmatprep.subr.mxu0 0.0
        %648 = vmatpush1.xpose.msra.mxu0 0.0
        %649 = vmatprep.subr.mxu0 0.0
        %650 = vmatpush1.xpose.msra.mxu0 0.0
        %651 = vmatprep.subr.mxu0 0.0
        %652 = vmatpush1.xpose.msra.mxu0 0.0
        %653 = vmatprep.subr.mxu0 0.0
        %654 = vmatpush1.xpose.msra.mxu0 0.0
        %655 = vmatprep.mubr.f32.mxu0 0.0
        %656 = vmatmul.mubr.f32.gmra.mrb[0].mxu0 %v587
        %v657 = vpop.f32.mrb[0].mxu0
        %v658 = vadd.f32 %v495, %v657
        %v659 = vpop.f32.mrb[0].mxu0
        %660 = vdwg.mxu0
        %661 = vrot.lane.b32.xlu0 %v579, 96
        %v662 = vpop.permute.xlu0 %661
        %v663 = vsel %vm586, %v579, 0
        %v665 = vsel %vm586, %v662, 0
        %667 = vmatprep.subr.mxu0 0.0
        %668 = vmatpush1.xpose.msra.mxu0 %v665
        %669 = vmatprep.subr.mxu0 0.0
        %670 = vmatpush1.xpose.msra.mxu0 0.0
        %671 = vmatprep.subr.mxu0 0.0
        %672 = vmatpush1.xpose.msra.mxu0 0.0
        %673 = vmatprep.subr.mxu0 0.0
        %674 = vmatpush1.xpose.msra.mxu0 0.0
        %675 = vmatprep.subr.mxu0 0.0
        %676 = vmatpush1.xpose.msra.mxu0 0.0
        %677 = vmatprep.subr.mxu0 0.0
        %678 = vmatpush1.xpose.msra.mxu0 0.0
        %679 = vmatprep.subr.mxu0 0.0
        %680 = vmatpush1.xpose.msra.mxu0 0.0
        %681 = vmatprep.subr.mxu0 0.0
        %682 = vmatpush1.xpose.msra.mxu0 0.0
        %683 = vmatprep.subr.mxu0 0.0
        %684 = vmatpush1.xpose.msra.mxu0 0.0
        %685 = vmatprep.subr.mxu0 0.0
        %686 = vmatpush1.xpose.msra.mxu0 0.0
        %687 = vmatprep.subr.mxu0 0.0
        %688 = vmatpush1.xpose.msra.mxu0 0.0
        %689 = vmatprep.subr.mxu0 0.0
        %690 = vmatpush1.xpose.msra.mxu0 0.0
        %691 = vmatprep.subr.mxu0 0.0
        %692 = vmatpush1.xpose.msra.mxu0 0.0
        %693 = vmatprep.subr.mxu0 0.0
        %694 = vmatpush1.xpose.msra.mxu0 0.0
        %695 = vmatprep.subr.mxu0 0.0
        %696 = vmatpush1.xpose.msra.mxu0 0.0
        %697 = vmatprep.subr.mxu0 0.0
        %698 = vmatpush1.xpose.msra.mxu0 0.0
        %699 = vmatprep.subr.mxu0 0.0
        %700 = vmatpush1.xpose.msra.mxu0 0.0
        %701 = vmatprep.subr.mxu0 0.0
        %702 = vmatpush1.xpose.msra.mxu0 0.0
        %703 = vmatprep.subr.mxu0 0.0
        %704 = vmatpush1.xpose.msra.mxu0 0.0
        %705 = vmatprep.subr.mxu0 0.0
        %706 = vmatpush1.xpose.msra.mxu0 0.0
        %707 = vmatprep.subr.mxu0 0.0
        %708 = vmatpush1.xpose.msra.mxu0 0.0
        %709 = vmatprep.subr.mxu0 0.0
        %710 = vmatpush1.xpose.msra.mxu0 0.0
        %711 = vmatprep.subr.mxu0 0.0
        %712 = vmatpush1.xpose.msra.mxu0 0.0
        %713 = vmatprep.subr.mxu0 0.0
        %714 = vmatpush1.xpose.msra.mxu0 0.0
        %715 = vmatprep.subr.mxu0 0.0
        %716 = vmatpush1.xpose.msra.mxu0 0.0
        %717 = vmatprep.subr.mxu0 0.0
        %718 = vmatpush1.xpose.msra.mxu0 0.0
        %719 = vmatprep.subr.mxu0 0.0
        %720 = vmatpush1.xpose.msra.mxu0 0.0
        %721 = vmatprep.subr.mxu0 0.0
        %722 = vmatpush1.xpose.msra.mxu0 0.0
        %723 = vmatprep.subr.mxu0 0.0
        %724 = vmatpush1.xpose.msra.mxu0 0.0
        %725 = vmatprep.subr.mxu0 0.0
        %726 = vmatpush1.xpose.msra.mxu0 0.0
        %727 = vmatprep.subr.mxu0 0.0
        %728 = vmatpush1.xpose.msra.mxu0 0.0
        %729 = vmatprep.subr.mxu0 0.0
        %730 = vmatpush1.xpose.msra.mxu0 0.0
        %731 = vmatprep.mubr.f32.mxu0 0.0
        %732 = vmatmul.mubr.f32.gmra.mrb[0].mxu0 %v663
        %v733 = vpop.f32.mrb[0].mxu0
        %v734 = vadd.f32 %v495, %v733
        %v735 = vpop.f32.mrb[0].mxu0
        %736 = vdwg.mxu0
        %737 = vrot.lane.b32.xlu0 %v581, 96
        %v738 = vpop.permute.xlu0 %737
        %v739 = vsel %vm586, %v581, 0
        %v741 = vsel %vm586, %v738, 0
        %743 = vmatprep.subr.mxu0 0.0
        %744 = vmatpush1.xpose.msra.mxu0 %v741
        %745 = vmatprep.subr.mxu0 0.0
        %746 = vmatpush1.xpose.msra.mxu0 0.0
        %747 = vmatprep.subr.mxu0 0.0
        %748 = vmatpush1.xpose.msra.mxu0 0.0
        %749 = vmatprep.subr.mxu0 0.0
        %750 = vmatpush1.xpose.msra.mxu0 0.0
        %751 = vmatprep.subr.mxu0 0.0
        %752 = vmatpush1.xpose.msra.mxu0 0.0
        %753 = vmatprep.subr.mxu0 0.0
        %754 = vmatpush1.xpose.msra.mxu0 0.0
        %755 = vmatprep.subr.mxu0 0.0
        %756 = vmatpush1.xpose.msra.mxu0 0.0
        %757 = vmatprep.subr.mxu0 0.0
        %758 = vmatpush1.xpose.msra.mxu0 0.0
        %759 = vmatprep.subr.mxu0 0.0
        %760 = vmatpush1.xpose.msra.mxu0 0.0
        %761 = vmatprep.subr.mxu0 0.0
        %762 = vmatpush1.xpose.msra.mxu0 0.0
        %763 = vmatprep.subr.mxu0 0.0
        %764 = vmatpush1.xpose.msra.mxu0 0.0
        %765 = vmatprep.subr.mxu0 0.0
        %766 = vmatpush1.xpose.msra.mxu0 0.0
        %767 = vmatprep.subr.mxu0 0.0
        %768 = vmatpush1.xpose.msra.mxu0 0.0
        %769 = vmatprep.subr.mxu0 0.0
        %770 = vmatpush1.xpose.msra.mxu0 0.0
        %771 = vmatprep.subr.mxu0 0.0
        %772 = vmatpush1.xpose.msra.mxu0 0.0
        %773 = vmatprep.subr.mxu0 0.0
        %774 = vmatpush1.xpose.msra.mxu0 0.0
        %775 = vmatprep.subr.mxu0 0.0
        %776 = vmatpush1.xpose.msra.mxu0 0.0
        %777 = vmatprep.subr.mxu0 0.0
        %778 = vmatpush1.xpose.msra.mxu0 0.0
        %779 = vmatprep.subr.mxu0 0.0
        %780 = vmatpush1.xpose.msra.mxu0 0.0
        %781 = vmatprep.subr.mxu0 0.0
        %782 = vmatpush1.xpose.msra.mxu0 0.0
        %783 = vmatprep.subr.mxu0 0.0
        %784 = vmatpush1.xpose.msra.mxu0 0.0
        %785 = vmatprep.subr.mxu0 0.0
        %786 = vmatpush1.xpose.msra.mxu0 0.0
        %787 = vmatprep.subr.mxu0 0.0
        %788 = vmatpush1.xpose.msra.mxu0 0.0
        %789 = vmatprep.subr.mxu0 0.0
        %790 = vmatpush1.xpose.msra.mxu0 0.0
        %791 = vmatprep.subr.mxu0 0.0
        %792 = vmatpush1.xpose.msra.mxu0 0.0
        %793 = vmatprep.subr.mxu0 0.0
        %794 = vmatpush1.xpose.msra.mxu0 0.0
        %795 = vmatprep.subr.mxu0 0.0
        %796 = vmatpush1.xpose.msra.mxu0 0.0
        %797 = vmatprep.subr.mxu0 0.0
        %798 = vmatpush1.xpose.msra.mxu0 0.0
        %799 = vmatprep.subr.mxu0 0.0
        %800 = vmatpush1.xpose.msra.mxu0 0.0
        %801 = vmatprep.subr.mxu0 0.0
        %802 = vmatpush1.xpose.msra.mxu0 0.0
        %803 = vmatprep.subr.mxu0 0.0
        %804 = vmatpush1.xpose.msra.mxu0 0.0
        %805 = vmatprep.subr.mxu0 0.0
        %806 = vmatpush1.xpose.msra.mxu0 0.0
        %807 = vmatprep.mubr.f32.mxu0 0.0
        %808 = vmatmul.mubr.f32.gmra.mrb[0].mxu0 %v739
        %v809 = vpop.f32.mrb[0].mxu0
        %v810 = vadd.f32 %v495, %v809
        %v811 = vpop.f32.mrb[0].mxu0
        %812 = vdwg.mxu0
        %813 = vrot.lane.b32.xlu0 %v583, 96
        %v814 = vpop.permute.xlu0 %813
        %v815 = vsel %vm586, %v583, 0
        %v817 = vsel %vm586, %v814, 0
        %819 = vmatprep.subr.mxu0 0.0
        %820 = vmatpush1.xpose.msra.mxu0 %v817
        %821 = vmatprep.subr.mxu0 0.0
        %822 = vmatpush1.xpose.msra.mxu0 0.0
        %823 = vmatprep.subr.mxu0 0.0
        %824 = vmatpush1.xpose.msra.mxu0 0.0
        %825 = vmatprep.subr.mxu0 0.0
        %826 = vmatpush1.xpose.msra.mxu0 0.0
        %827 = vmatprep.subr.mxu0 0.0
        %828 = vmatpush1.xpose.msra.mxu0 0.0
        %829 = vmatprep.subr.mxu0 0.0
        %830 = vmatpush1.xpose.msra.mxu0 0.0
        %831 = vmatprep.subr.mxu0 0.0
        %832 = vmatpush1.xpose.msra.mxu0 0.0
        %833 = vmatprep.subr.mxu0 0.0
        %834 = vmatpush1.xpose.msra.mxu0 0.0
        %835 = vmatprep.subr.mxu0 0.0
        %836 = vmatpush1.xpose.msra.mxu0 0.0
        %837 = vmatprep.subr.mxu0 0.0
        %838 = vmatpush1.xpose.msra.mxu0 0.0
        %839 = vmatprep.subr.mxu0 0.0
        %840 = vmatpush1.xpose.msra.mxu0 0.0
        %841 = vmatprep.subr.mxu0 0.0
        %842 = vmatpush1.xpose.msra.mxu0 0.0
        %843 = vmatprep.subr.mxu0 0.0
        %844 = vmatpush1.xpose.msra.mxu0 0.0
        %845 = vmatprep.subr.mxu0 0.0
        %846 = vmatpush1.xpose.msra.mxu0 0.0
        %847 = vmatprep.subr.mxu0 0.0
        %848 = vmatpush1.xpose.msra.mxu0 0.0
        %849 = vmatprep.subr.mxu0 0.0
        %850 = vmatpush1.xpose.msra.mxu0 0.0
        %851 = vmatprep.subr.mxu0 0.0
        %852 = vmatpush1.xpose.msra.mxu0 0.0
        %853 = vmatprep.subr.mxu0 0.0
        %854 = vmatpush1.xpose.msra.mxu0 0.0
        %855 = vmatprep.subr.mxu0 0.0
        %856 = vmatpush1.xpose.msra.mxu0 0.0
        %857 = vmatprep.subr.mxu0 0.0
        %858 = vmatpush1.xpose.msra.mxu0 0.0
        %859 = vmatprep.subr.mxu0 0.0
        %860 = vmatpush1.xpose.msra.mxu0 0.0
        %861 = vmatprep.subr.mxu0 0.0
        %862 = vmatpush1.xpose.msra.mxu0 0.0
        %863 = vmatprep.subr.mxu0 0.0
        %864 = vmatpush1.xpose.msra.mxu0 0.0
        %865 = vmatprep.subr.mxu0 0.0
        %866 = vmatpush1.xpose.msra.mxu0 0.0
        %867 = vmatprep.subr.mxu0 0.0
        %868 = vmatpush1.xpose.msra.mxu0 0.0
        %869 = vmatprep.subr.mxu0 0.0
        %870 = vmatpush1.xpose.msra.mxu0 0.0
        %871 = vmatprep.subr.mxu0 0.0
        %872 = vmatpush1.xpose.msra.mxu0 0.0
        %873 = vmatprep.subr.mxu0 0.0
        %874 = vmatpush1.xpose.msra.mxu0 0.0
        %875 = vmatprep.subr.mxu0 0.0
        %876 = vmatpush1.xpose.msra.mxu0 0.0
        %877 = vmatprep.subr.mxu0 0.0
        %878 = vmatpush1.xpose.msra.mxu0 0.0
        %879 = vmatprep.subr.mxu0 0.0
        %880 = vmatpush1.xpose.msra.mxu0 0.0
        %881 = vmatprep.subr.mxu0 0.0
        %882 = vmatpush1.xpose.msra.mxu0 0.0
        %883 = vmatprep.mubr.f32.mxu0 0.0
        %884 = vmatmul.mubr.f32.gmra.mrb[0].mxu0 %v815
        %v885 = vpop.f32.mrb[0].mxu0
        %v886 = vadd.f32 %v495, %v885
        %v887 = vpop.f32.mrb[0].mxu0
        %888 = vdwg.mxu0
        %v889 = vsel %vm586, %v658, -inf
        %890 = vmax.xlane.f32.xlu0 %v889
        %v891 = vpop.xlane.xlu0 %890
        %v892 = vsel %vm586, %v734, -inf
        %893 = vmax.xlane.f32.xlu0 %v892
        %v894 = vpop.xlane.xlu0 %893
        %v895 = vsel %vm586, %v810, -inf
        %896 = vmax.xlane.f32.xlu0 %v895
        %v897 = vpop.xlane.xlu0 %896
        %v898 = vsel %vm586, %v886, -inf
        %899 = vmax.xlane.f32.xlu0 %v898
        %v900 = vpop.xlane.xlu0 %899
        %v901 = vsub.f32 %v658, %v891
        %v902 = vsub.f32 %v734, %v894
        %v903 = vsub.f32 %v810, %v897
        %v904 = vsub.f32 %v886, %v900
        %v905 = vmul.f32 %v901, 1.442695
        %v906 = vpow.pop %v905
        %v907 = vmul.f32 %v902, 1.442695
        %v908 = vpow.pop %v907
        %v909 = vmul.f32 %v903, 1.442695
        %v910 = vpow.pop %v909
        %v911 = vmul.f32 %v904, 1.442695
        %v912 = vpow.pop %v911
        %v913 = vsel %vm586, %v906, 0.0
        %914 = vadd.xlane.f32.xlu0 %v913
        %v915 = vpop.xlane.xlu0 %914
        %v916 = vsel %vm586, %v908, 0.0
        %917 = vadd.xlane.f32.xlu0 %v916
        %v918 = vpop.xlane.xlu0 %917
        %v919 = vsel %vm586, %v910, 0.0
        %920 = vadd.xlane.f32.xlu0 %v919
        %v921 = vpop.xlane.xlu0 %920
        %v922 = vsel %vm586, %v912, 0.0
        %923 = vadd.xlane.f32.xlu0 %v922
        %v924 = vpop.xlane.xlu0 %923
        %v925 = vrcp.pop %v915
        %v926 = vrcp.pop %v918
        %v927 = vrcp.pop %v921
        %v928 = vrcp.pop %v924
        %v929 = vmul.f32 %v906, %v925
        %v930 = vmul.f32 %v908, %v926
        %v931 = vmul.f32 %v910, %v927
        %v932 = vmul.f32 %v912, %v928
        %933 = vrot.lane.b32.xlu0 %v572, 64
        %v934 = vpop.permute.xlu0 %933
        %v937 = vsel %vm586, %v929, 0
        %939 = vmatprep.subr.mxu0 0.0
        %940 = vmatpush1.msra.mxu0 %v934
        %941 = vmatprep.subr.mxu0 0.0
        %942 = vmatpush1.msra.mxu0 0.0
        %943 = vmatprep.subr.mxu0 0.0
        %944 = vmatpush1.msra.mxu0 0.0
        %945 = vmatprep.subr.mxu0 0.0
        %946 = vmatpush1.msra.mxu0 0.0
        %947 = vmatprep.subr.mxu0 0.0
        %948 = vmatpush1.msra.mxu0 0.0
        %949 = vmatprep.subr.mxu0 0.0
        %950 = vmatpush1.msra.mxu0 0.0
        %951 = vmatprep.subr.mxu0 0.0
        %952 = vmatpush1.msra.mxu0 0.0
        %953 = vmatprep.subr.mxu0 0.0
        %954 = vmatpush1.msra.mxu0 0.0
        %955 = vmatprep.subr.mxu0 0.0
        %956 = vmatpush1.msra.mxu0 0.0
        %957 = vmatprep.subr.mxu0 0.0
        %958 = vmatpush1.msra.mxu0 0.0
        %959 = vmatprep.subr.mxu0 0.0
        %960 = vmatpush1.msra.mxu0 0.0
        %961 = vmatprep.subr.mxu0 0.0
        %962 = vmatpush1.msra.mxu0 0.0
        %963 = vmatprep.subr.mxu0 0.0
        %964 = vmatpush1.msra.mxu0 0.0
        %965 = vmatprep.subr.mxu0 0.0
        %966 = vmatpush1.msra.mxu0 0.0
        %967 = vmatprep.subr.mxu0 0.0
        %968 = vmatpush1.msra.mxu0 0.0
        %969 = vmatprep.subr.mxu0 0.0
        %970 = vmatpush1.msra.mxu0 0.0
        %971 = vmatprep.subr.mxu0 0.0
        %972 = vmatpush1.msra.mxu0 0.0
        %973 = vmatprep.subr.mxu0 0.0
        %974 = vmatpush1.msra.mxu0 0.0
        %975 = vmatprep.subr.mxu0 0.0
        %976 = vmatpush1.msra.mxu0 0.0
        %977 = vmatprep.subr.mxu0 0.0
        %978 = vmatpush1.msra.mxu0 0.0
        %979 = vmatprep.subr.mxu0 0.0
        %980 = vmatpush1.msra.mxu0 0.0
        %981 = vmatprep.subr.mxu0 0.0
        %982 = vmatpush1.msra.mxu0 0.0
        %983 = vmatprep.subr.mxu0 0.0
        %984 = vmatpush1.msra.mxu0 0.0
        %985 = vmatprep.subr.mxu0 0.0
        %986 = vmatpush1.msra.mxu0 0.0
        %987 = vmatprep.subr.mxu0 0.0
        %988 = vmatpush1.msra.mxu0 0.0
        %989 = vmatprep.subr.mxu0 0.0
        %990 = vmatpush1.msra.mxu0 0.0
        %991 = vmatprep.subr.mxu0 0.0
        %992 = vmatpush1.msra.mxu0 0.0
        %993 = vmatprep.subr.mxu0 0.0
        %994 = vmatpush1.msra.mxu0 0.0
        %995 = vmatprep.subr.mxu0 0.0
        %996 = vmatpush1.msra.mxu0 0.0
        %997 = vmatprep.subr.mxu0 0.0
        %998 = vmatpush1.msra.mxu0 0.0
        %999 = vmatprep.subr.mxu0 0.0
        %1000 = vmatpush1.msra.mxu0 0.0
        %1001 = vmatprep.subr.mxu0 0.0
        %1002 = vmatpush1.msra.mxu0 0.0
        %1003 = vmatprep.mubr.f32.mxu0 0.0
        %1004 = vmatmul.mubr.f32.gmra.mrb[0].mxu0 %v937
        %v1005 = vpop.f32.mrb[0].mxu0
        %v1006 = vadd.f32 0.0, %v1005
        %v1007 = vpop.f32.mrb[0].mxu0
        %1008 = vdwg.mxu0
        %1009 = vrot.lane.b32.xlu0 %v579, 64
        %v1010 = vpop.permute.xlu0 %1009
        %v1013 = vsel %vm586, %v930, 0
        %1015 = vmatprep.subr.mxu0 0.0
        %1016 = vmatpush1.msra.mxu0 %v1010
        %1017 = vmatprep.subr.mxu0 0.0
        %1018 = vmatpush1.msra.mxu0 0.0
        %1019 = vmatprep.subr.mxu0 0.0
        %1020 = vmatpush1.msra.mxu0 0.0
        %1021 = vmatprep.subr.mxu0 0.0
        %1022 = vmatpush1.msra.mxu0 0.0
        %1023 = vmatprep.subr.mxu0 0.0
        %1024 = vmatpush1.msra.mxu0 0.0
        %1025 = vmatprep.subr.mxu0 0.0
        %1026 = vmatpush1.msra.mxu0 0.0
        %1027 = vmatprep.subr.mxu0 0.0
        %1028 = vmatpush1.msra.mxu0 0.0
        %1029 = vmatprep.subr.mxu0 0.0
        %1030 = vmatpush1.msra.mxu0 0.0
        %1031 = vmatprep.subr.mxu0 0.0
        %1032 = vmatpush1.msra.mxu0 0.0
        %1033 = vmatprep.subr.mxu0 0.0
        %1034 = vmatpush1.msra.mxu0 0.0
        %1035 = vmatprep.subr.mxu0 0.0
        %1036 = vmatpush1.msra.mxu0 0.0
        %1037 = vmatprep.subr.mxu0 0.0
        %1038 = vmatpush1.msra.mxu0 0.0
        %1039 = vmatprep.subr.mxu0 0.0
        %1040 = vmatpush1.msra.mxu0 0.0
        %1041 = vmatprep.subr.mxu0 0.0
        %1042 = vmatpush1.msra.mxu0 0.0
        %1043 = vmatprep.subr.mxu0 0.0
        %1044 = vmatpush1.msra.mxu0 0.0
        %1045 = vmatprep.subr.mxu0 0.0
        %1046 = vmatpush1.msra.mxu0 0.0
        %1047 = vmatprep.subr.mxu0 0.0
        %1048 = vmatpush1.msra.mxu0 0.0
        %1049 = vmatprep.subr.mxu0 0.0
        %1050 = vmatpush1.msra.mxu0 0.0
        %1051 = vmatprep.subr.mxu0 0.0
        %1052 = vmatpush1.msra.mxu0 0.0
        %1053 = vmatprep.subr.mxu0 0.0
        %1054 = vmatpush1.msra.mxu0 0.0
        %1055 = vmatprep.subr.mxu0 0.0
        %1056 = vmatpush1.msra.mxu0 0.0
        %1057 = vmatprep.subr.mxu0 0.0
        %1058 = vmatpush1.msra.mxu0 0.0
        %1059 = vmatprep.subr.mxu0 0.0
        %1060 = vmatpush1.msra.mxu0 0.0
        %1061 = vmatprep.subr.mxu0 0.0
        %1062 = vmatpush1.msra.mxu0 0.0
        %1063 = vmatprep.subr.mxu0 0.0
        %1064 = vmatpush1.msra.mxu0 0.0
        %1065 = vmatprep.subr.mxu0 0.0
        %1066 = vmatpush1.msra.mxu0 0.0
        %1067 = vmatprep.subr.mxu0 0.0
        %1068 = vmatpush1.msra.mxu0 0.0
        %1069 = vmatprep.subr.mxu0 0.0
        %1070 = vmatpush1.msra.mxu0 0.0
        %1071 = vmatprep.subr.mxu0 0.0
        %1072 = vmatpush1.msra.mxu0 0.0
        %1073 = vmatprep.subr.mxu0 0.0
        %1074 = vmatpush1.msra.mxu0 0.0
        %1075 = vmatprep.subr.mxu0 0.0
        %1076 = vmatpush1.msra.mxu0 0.0
        %1077 = vmatprep.subr.mxu0 0.0
        %1078 = vmatpush1.msra.mxu0 0.0
        %1079 = vmatprep.mubr.f32.mxu0 0.0
        %1080 = vmatmul.mubr.f32.gmra.mrb[0].mxu0 %v1013
        %v1081 = vpop.f32.mrb[0].mxu0
        %v1082 = vadd.f32 0.0, %v1081
        %v1083 = vpop.f32.mrb[0].mxu0
        %1084 = vdwg.mxu0
        %1085 = vrot.lane.b32.xlu0 %v581, 64
        %v1086 = vpop.permute.xlu0 %1085
        %v1089 = vsel %vm586, %v931, 0
        %1091 = vmatprep.subr.mxu0 0.0
        %1092 = vmatpush1.msra.mxu0 %v1086
        %1093 = vmatprep.subr.mxu0 0.0
        %1094 = vmatpush1.msra.mxu0 0.0
        %1095 = vmatprep.subr.mxu0 0.0
        %1096 = vmatpush1.msra.mxu0 0.0
        %1097 = vmatprep.subr.mxu0 0.0
        %1098 = vmatpush1.msra.mxu0 0.0
        %1099 = vmatprep.subr.mxu0 0.0
        %1100 = vmatpush1.msra.mxu0 0.0
        %1101 = vmatprep.subr.mxu0 0.0
        %1102 = vmatpush1.msra.mxu0 0.0
        %1103 = vmatprep.subr.mxu0 0.0
        %1104 = vmatpush1.msra.mxu0 0.0
        %1105 = vmatprep.subr.mxu0 0.0
        %1106 = vmatpush1.msra.mxu0 0.0
        %1107 = vmatprep.subr.mxu0 0.0
        %1108 = vmatpush1.msra.mxu0 0.0
        %1109 = vmatprep.subr.mxu0 0.0
        %1110 = vmatpush1.msra.mxu0 0.0
        %1111 = vmatprep.subr.mxu0 0.0
        %1112 = vmatpush1.msra.mxu0 0.0
        %1113 = vmatprep.subr.mxu0 0.0
        %1114 = vmatpush1.msra.mxu0 0.0
        %1115 = vmatprep.subr.mxu0 0.0
        %1116 = vmatpush1.msra.mxu0 0.0
        %1117 = vmatprep.subr.mxu0 0.0
        %1118 = vmatpush1.msra.mxu0 0.0
        %1119 = vmatprep.subr.mxu0 0.0
        %1120 = vmatpush1.msra.mxu0 0.0
        %1121 = vmatprep.subr.mxu0 0.0
        %1122 = vmatpush1.msra.mxu0 0.0
        %1123 = vmatprep.subr.mxu0 0.0
        %1124 = vmatpush1.msra.mxu0 0.0
        %1125 = vmatprep.subr.mxu0 0.0
        %1126 = vmatpush1.msra.mxu0 0.0
        %1127 = vmatprep.subr.mxu0 0.0
        %1128 = vmatpush1.msra.mxu0 0.0
        %1129 = vmatprep.subr.mxu0 0.0
        %1130 = vmatpush1.msra.mxu0 0.0
        %1131 = vmatprep.subr.mxu0 0.0
        %1132 = vmatpush1.msra.mxu0 0.0
        %1133 = vmatprep.subr.mxu0 0.0
        %1134 = vmatpush1.msra.mxu0 0.0
        %1135 = vmatprep.subr.mxu0 0.0
        %1136 = vmatpush1.msra.mxu0 0.0
        %1137 = vmatprep.subr.mxu0 0.0
        %1138 = vmatpush1.msra.mxu0 0.0
        %1139 = vmatprep.subr.mxu0 0.0
        %1140 = vmatpush1.msra.mxu0 0.0
        %1141 = vmatprep.subr.mxu0 0.0
        %1142 = vmatpush1.msra.mxu0 0.0
        %1143 = vmatprep.subr.mxu0 0.0
        %1144 = vmatpush1.msra.mxu0 0.0
        %1145 = vmatprep.subr.mxu0 0.0
        %1146 = vmatpush1.msra.mxu0 0.0
        %1147 = vmatprep.subr.mxu0 0.0
        %1148 = vmatpush1.msra.mxu0 0.0
        %1149 = vmatprep.subr.mxu0 0.0
        %1150 = vmatpush1.msra.mxu0 0.0
        %1151 = vmatprep.subr.mxu0 0.0
        %1152 = vmatpush1.msra.mxu0 0.0
        %1153 = vmatprep.subr.mxu0 0.0
        %1154 = vmatpush1.msra.mxu0 0.0
        %1155 = vmatprep.mubr.f32.mxu0 0.0
        %1156 = vmatmul.mubr.f32.gmra.mrb[0].mxu0 %v1089
        %v1157 = vpop.f32.mrb[0].mxu0
        %v1158 = vadd.f32 0.0, %v1157
        %v1159 = vpop.f32.mrb[0].mxu0
        %1160 = vdwg.mxu0
        %1161 = vrot.lane.b32.xlu0 %v583, 64
        %v1162 = vpop.permute.xlu0 %1161
        %v1165 = vsel %vm586, %v932, 0
        %1167 = vmatprep.subr.mxu0 0.0
        %1168 = vmatpush1.msra.mxu0 %v1162
        %1169 = vmatprep.subr.mxu0 0.0
        %1170 = vmatpush1.msra.mxu0 0.0
        %1171 = vmatprep.subr.mxu0 0.0
        %1172 = vmatpush1.msra.mxu0 0.0
        %1173 = vmatprep.subr.mxu0 0.0
        %1174 = vmatpush1.msra.mxu0 0.0
        %1175 = vmatprep.subr.mxu0 0.0
        %1176 = vmatpush1.msra.mxu0 0.0
        %1177 = vmatprep.subr.mxu0 0.0
        %1178 = vmatpush1.msra.mxu0 0.0
        %1179 = vmatprep.subr.mxu0 0.0
        %1180 = vmatpush1.msra.mxu0 0.0
        %1181 = vmatprep.subr.mxu0 0.0
        %1182 = vmatpush1.msra.mxu0 0.0
        %1183 = vmatprep.subr.mxu0 0.0
        %1184 = vmatpush1.msra.mxu0 0.0
        %1185 = vmatprep.subr.mxu0 0.0
        %1186 = vmatpush1.msra.mxu0 0.0
        %1187 = vmatprep.subr.mxu0 0.0
        %1188 = vmatpush1.msra.mxu0 0.0
        %1189 = vmatprep.subr.mxu0 0.0
        %1190 = vmatpush1.msra.mxu0 0.0
        %1191 = vmatprep.subr.mxu0 0.0
        %1192 = vmatpush1.msra.mxu0 0.0
        %1193 = vmatprep.subr.mxu0 0.0
        %1194 = vmatpush1.msra.mxu0 0.0
        %1195 = vmatprep.subr.mxu0 0.0
        %1196 = vmatpush1.msra.mxu0 0.0
        %1197 = vmatprep.subr.mxu0 0.0
        %1198 = vmatpush1.msra.mxu0 0.0
        %1199 = vmatprep.subr.mxu0 0.0
        %1200 = vmatpush1.msra.mxu0 0.0
        %1201 = vmatprep.subr.mxu0 0.0
        %1202 = vmatpush1.msra.mxu0 0.0
        %1203 = vmatprep.subr.mxu0 0.0
        %1204 = vmatpush1.msra.mxu0 0.0
        %1205 = vmatprep.subr.mxu0 0.0
        %1206 = vmatpush1.msra.mxu0 0.0
        %1207 = vmatprep.subr.mxu0 0.0
        %1208 = vmatpush1.msra.mxu0 0.0
        %1209 = vmatprep.subr.mxu0 0.0
        %1210 = vmatpush1.msra.mxu0 0.0
        %1211 = vmatprep.subr.mxu0 0.0
        %1212 = vmatpush1.msra.mxu0 0.0
        %1213 = vmatprep.subr.mxu0 0.0
        %1214 = vmatpush1.msra.mxu0 0.0
        %1215 = vmatprep.subr.mxu0 0.0
        %1216 = vmatpush1.msra.mxu0 0.0
        %1217 = vmatprep.subr.mxu0 0.0
        %1218 = vmatpush1.msra.mxu0 0.0
        %1219 = vmatprep.subr.mxu0 0.0
        %1220 = vmatpush1.msra.mxu0 0.0
        %1221 = vmatprep.subr.mxu0 0.0
        %1222 = vmatpush1.msra.mxu0 0.0
        %1223 = vmatprep.subr.mxu0 0.0
        %1224 = vmatpush1.msra.mxu0 0.0
        %1225 = vmatprep.subr.mxu0 0.0
        %1226 = vmatpush1.msra.mxu0 0.0
        %1227 = vmatprep.subr.mxu0 0.0
        %1228 = vmatpush1.msra.mxu0 0.0
        %1229 = vmatprep.subr.mxu0 0.0
        %1230 = vmatpush1.msra.mxu0 0.0
        %1231 = vmatprep.mubr.f32.mxu0 0.0
        %1232 = vmatmul.mubr.f32.gmra.mrb[0].mxu0 %v1165
        %v1233 = vpop.f32.mrb[0].mxu0
        %v1234 = vadd.f32 0.0, %v1233
        %v1235 = vpop.f32.mrb[0].mxu0
        %1236 = vdwg.mxu0
        %1238 = vrot.lane.b32.xlu0 %v1082, 8
        %v1239 = vpop.permute.xlu0 %1238
        %1242 = vrot.lane.b32.xlu0 %v1158, 16
        %v1243 = vpop.permute.xlu0 %1242
        %1246 = vrot.lane.b32.xlu0 %v1234, 24
        %v1247 = vpop.permute.xlu0 %1246
        %v1249 = vsel %vm586, %v1006, %v1239
        %vm1250 = vcmask 130048
        %v1251 = vsel %vm1250, %v1249, %v1243
        %vm1252 = vcmask 195584
        %v1253 = vsel %vm1252, %v1251, %v1247
        %v1254 = vpack.c.bf16 %v1253, %v1253
        %v1255 = vld [vmem:[%s5] sm:$0xf]
        %v1256 = vld [vmem:[%s5 + $0x4] sm:$0xf]
        %v1257 = vld [vmem:[%s5 + $0x8] sm:$0xf]
        %v1258 = vld [vmem:[%s5 + $0xc] sm:$0xf]
        %v1263 = vunpack.c.l.b16 %v1255
        %v1264 = vunpack.c.l.b16 %v1256
        %v1265 = vunpack.c.l.b16 %v1257
        %v1266 = vunpack.c.l.b16 %v1258
        %v1267 = vpack.c.b16 %v1264, %v1263
        %v1268 = vpack.c.b16 %v1266, %v1265
        %v1272 = vsel %vm503, %v1254, 0
        %1274 = vmatprep.subr.bf16.mxu0 0
        %1275 = vmatpush1.bf16.msra.mxu0 %v1267
        %1276 = vmatprep.subr.bf16.mxu0 0
        %1277 = vmatpush1.bf16.msra.mxu0 %v1268
        %1278 = vmatprep.subr.bf16.mxu0 0
        %1279 = vmatpush1.bf16.msra.mxu0 0
        %1280 = vmatprep.subr.bf16.mxu0 0
        %1281 = vmatpush1.bf16.msra.mxu0 0
        %1282 = vmatprep.subr.bf16.mxu0 0
        %1283 = vmatpush1.bf16.msra.mxu0 0
        %1284 = vmatprep.subr.bf16.mxu0 0
        %1285 = vmatpush1.bf16.msra.mxu0 0
        %1286 = vmatprep.subr.bf16.mxu0 0
        %1287 = vmatpush1.bf16.msra.mxu0 0
        %1288 = vmatprep.subr.bf16.mxu0 0
        %1289 = vmatpush1.bf16.msra.mxu0 0
        %1290 = vmatprep.subr.bf16.mxu0 0
        %1291 = vmatpush1.bf16.msra.mxu0 0
        %1292 = vmatprep.subr.bf16.mxu0 0
        %1293 = vmatpush1.bf16.msra.mxu0 0
        %1294 = vmatprep.subr.bf16.mxu0 0
        %1295 = vmatpush1.bf16.msra.mxu0 0
        %1296 = vmatprep.subr.bf16.mxu0 0
        %1297 = vmatpush1.bf16.msra.mxu0 0
        %1298 = vmatprep.subr.bf16.mxu0 0
        %1299 = vmatpush1.bf16.msra.mxu0 0
        %1300 = vmatprep.subr.bf16.mxu0 0
        %1301 = vmatpush1.bf16.msra.mxu0 0
        %1302 = vmatprep.subr.bf16.mxu0 0
        %1303 = vmatpush1.bf16.msra.mxu0 0
        %1304 = vmatprep.subr.bf16.mxu0 0
        %1305 = vmatpush1.bf16.msra.mxu0 0
        %1306 = vmatprep.mubr.bf16.mxu0 0
        %1307 = vmatmul.mubr.bf16.gmra.mrb[0].mxu0 %v1272
        %v1308 = vpop.f32.mrb[0].mxu0
        %v1309 = vadd.f32 0.0, %v1308
        %v1310 = vpop.f32.mrb[0].mxu0
        %v1311 = vpop.f32.mrb[0].mxu0
        %v1312 = vpop.f32.mrb[0].mxu0
        %1313 = vdwg.mxu0
        %v1314 = vadd.f32 %v488, %v1309
        %v1315 = vmul.f32 %v1314, %v1314
        %v1316 = vsel %vm503, %v1315, 0.0
        %1317 = vadd.xlane.f32.xlu0 %v1316
        %v1318 = vpop.xlane.xlu0 %1317
        %v1319 = vmul.f32 %v1318, %v507
        %v1320 = vadd.f32 %v1319, 1e-06
        %v1321 = vrsqrt.pop %v1320
        %v1322 = vmul.f32 %v1314, %v1321
        %v1323 = vlaneseq
        %v1324 = vshrl.u32 %v1323, 7
        %v1325 = vsub.s32 1, %v1324
        %v1326 = vrot.slane %v501, %v1325
        %v1327 = vmul.f32 %v1322, %v1326
        %v1328 = vpack.c.bf16 %v1327, %v1327
        %v1329 = vld [vmem:[%s6] sm:$0xf]
        %v1330 = vld [vmem:[%s6 + $0x4] sm:$0xf]
        %v1331 = vld [vmem:[%s6 + $0x8] sm:$0xf]
        %v1332 = vld [vmem:[%s6 + $0xc] sm:$0xf]
        %v1337 = vunpack.c.l.b16 %v1329
        %v1338 = vunpack.c.l.b16 %v1330
        %v1339 = vunpack.c.l.b16 %v1331
        %v1340 = vunpack.c.l.b16 %v1332
        %v1341 = vpack.c.b16 %v1338, %v1337
        %v1342 = vpack.c.b16 %v1340, %v1339
        %v1346 = vsel %vm503, %v1328, 0
        %1348 = vmatprep.subr.bf16.mxu0 0
        %1349 = vmatpush1.bf16.msra.mxu0 %v1341
        %1350 = vmatprep.subr.bf16.mxu0 0
        %1351 = vmatpush1.bf16.msra.mxu0 %v1342
        %1352 = vmatprep.subr.bf16.mxu0 0
        %1353 = vmatpush1.bf16.msra.mxu0 0
        %1354 = vmatprep.subr.bf16.mxu0 0
        %1355 = vmatpush1.bf16.msra.mxu0 0
        %1356 = vmatprep.subr.bf16.mxu0 0
        %1357 = vmatpush1.bf16.msra.mxu0 0
        %1358 = vmatprep.subr.bf16.mxu0 0
        %1359 = vmatpush1.bf16.msra.mxu0 0
        %1360 = vmatprep.subr.bf16.mxu0 0
        %1361 = vmatpush1.bf16.msra.mxu0 0
        %1362 = vmatprep.subr.bf16.mxu0 0
        %1363 = vmatpush1.bf16.msra.mxu0 0
        %1364 = vmatprep.subr.bf16.mxu0 0
        %1365 = vmatpush1.bf16.msra.mxu0 0
        %1366 = vmatprep.subr.bf16.mxu0 0
        %1367 = vmatpush1.bf16.msra.mxu0 0
        %1368 = vmatprep.subr.bf16.mxu0 0
        %1369 = vmatpush1.bf16.msra.mxu0 0
        %1370 = vmatprep.subr.bf16.mxu0 0
        %1371 = vmatpush1.bf16.msra.mxu0 0
        %1372 = vmatprep.subr.bf16.mxu0 0
        %1373 = vmatpush1.bf16.msra.mxu0 0
        %1374 = vmatprep.subr.bf16.mxu0 0
        %1375 = vmatpush1.bf16.msra.mxu0 0
        %1376 = vmatprep.subr.bf16.mxu0 0
        %1377 = vmatpush1.bf16.msra.mxu0 0
        %1378 = vmatprep.subr.bf16.mxu0 0
        %1379 = vmatpush1.bf16.msra.mxu0 0
        %1380 = vmatprep.mubr.bf16.mxu0 0
        %1381 = vmatmul.mubr.bf16.gmra.mrb[0].mxu0 %v1346
        %v1382 = vpop.f32.mrb[0].mxu0
        %v1383 = vadd.f32 0.0, %v1382
        %v1384 = vpop.f32.mrb[0].mxu0
        %v1385 = vpop.f32.mrb[0].mxu0
        %v1386 = vpop.f32.mrb[0].mxu0
        %1387 = vdwg.mxu0
        %v1388 = vld [vmem:[%s7] sm:$0xf]
        %v1389 = vld [vmem:[%s7 + $0x4] sm:$0xf]
        %v1390 = vld [vmem:[%s7 + $0x8] sm:$0xf]
        %v1391 = vld [vmem:[%s7 + $0xc] sm:$0xf]
        %v1396 = vunpack.c.l.b16 %v1388
        %v1397 = vunpack.c.l.b16 %v1389
        %v1398 = vunpack.c.l.b16 %v1390
        %v1399 = vunpack.c.l.b16 %v1391
        %v1400 = vpack.c.b16 %v1397, %v1396
        %v1401 = vpack.c.b16 %v1399, %v1398
        %v1405 = vsel %vm503, %v500, 0
        %1407 = vmatprep.subr.bf16.mxu0 0
        %1408 = vmatpush1.bf16.msra.mxu0 %v1400
        %1409 = vmatprep.subr.bf16.mxu0 0
        %1410 = vmatpush1.bf16.msra.mxu0 %v1401
        %1411 = vmatprep.subr.bf16.mxu0 0
        %1412 = vmatpush1.bf16.msra.mxu0 0
        %1413 = vmatprep.subr.bf16.mxu0 0
        %1414 = vmatpush1.bf16.msra.mxu0 0
        %1415 = vmatprep.subr.bf16.mxu0 0
        %1416 = vmatpush1.bf16.msra.mxu0 0
        %1417 = vmatprep.subr.bf16.mxu0 0
        %1418 = vmatpush1.bf16.msra.mxu0 0
        %1419 = vmatprep.subr.bf16.mxu0 0
        %1420 = vmatpush1.bf16.msra.mxu0 0
        %1421 = vmatprep.subr.bf16.mxu0 0
        %1422 = vmatpush1.bf16.msra.mxu0 0
        %1423 = vmatprep.subr.bf16.mxu0 0
        %1424 = vmatpush1.bf16.msra.mxu0 0
        %1425 = vmatprep.subr.bf16.mxu0 0
        %1426 = vmatpush1.bf16.msra.mxu0 0
        %1427 = vmatprep.subr.bf16.mxu0 0
        %1428 = vmatpush1.bf16.msra.mxu0 0
        %1429 = vmatprep.subr.bf16.mxu0 0
        %1430 = vmatpush1.bf16.msra.mxu0 0
        %1431 = vmatprep.subr.bf16.mxu0 0
        %1432 = vmatpush1.bf16.msra.mxu0 0
        %1433 = vmatprep.subr.bf16.mxu0 0
        %1434 = vmatpush1.bf16.msra.mxu0 0
        %1435 = vmatprep.subr.bf16.mxu0 0
        %1436 = vmatpush1.bf16.msra.mxu0 0
        %1437 = vmatprep.subr.bf16.mxu0 0
        %1438 = vmatpush1.bf16.msra.mxu0 0
        %1439 = vmatprep.mubr.bf16.mxu0 0
        %1440 = vmatmul.mubr.bf16.gmra.mrb[0].mxu0 %v1405
        %v1441 = vpop.f32.mrb[0].mxu0
        %v1442 = vadd.f32 0.0, %v1441
        %v1443 = vpop.f32.mrb[0].mxu0
        %v1444 = vpop.f32.mrb[0].mxu0
        %v1445 = vpop.f32.mrb[0].mxu0
        %1446 = vdwg.mxu0
        %1448 = vrot.lane.b32.xlu0 %v1383, 120
        %v1449 = vpop.permute.xlu0 %1448
        %1450 = vrot.lane.b32.xlu0 %v1383, 112
        %v1451 = vpop.permute.xlu0 %1450
        %1452 = vrot.lane.b32.xlu0 %v1383, 104
        %v1453 = vpop.permute.xlu0 %1452
        %1455 = vrot.lane.b32.xlu0 %v1442, 120
        %v1456 = vpop.permute.xlu0 %1455
        %1457 = vrot.lane.b32.xlu0 %v1442, 112
        %v1458 = vpop.permute.xlu0 %1457
        %1459 = vrot.lane.b32.xlu0 %v1442, 104
        %v1460 = vpop.permute.xlu0 %1459
        %v1461 = vlaneseq
        %v1462 = vshrl.u32 %v1461, 7
        %v1463 = vsub.s32 0, %v1462
        %v1464 = vrot.slane %v499, %v1463
        %v1465 = vsel %vm586, %v1383, 0
        %v1467 = vsel %vm586, %v1442, 0
        %1469 = vmatprep.subr.mxu0 0.0
        %1470 = vmatpush1.xpose.msra.mxu0 %v1467
        %1471 = vmatprep.subr.mxu0 0.0
        %1472 = vmatpush1.xpose.msra.mxu0 0.0
        %1473 = vmatprep.subr.mxu0 0.0
        %1474 = vmatpush1.xpose.msra.mxu0 0.0
        %1475 = vmatprep.subr.mxu0 0.0
        %1476 = vmatpush1.xpose.msra.mxu0 0.0
        %1477 = vmatprep.subr.mxu0 0.0
        %1478 = vmatpush1.xpose.msra.mxu0 0.0
        %1479 = vmatprep.subr.mxu0 0.0
        %1480 = vmatpush1.xpose.msra.mxu0 0.0
        %1481 = vmatprep.subr.mxu0 0.0
        %1482 = vmatpush1.xpose.msra.mxu0 0.0
        %1483 = vmatprep.subr.mxu0 0.0
        %1484 = vmatpush1.xpose.msra.mxu0 0.0
        %1485 = vmatprep.subr.mxu0 0.0
        %1486 = vmatpush1.xpose.msra.mxu0 0.0
        %1487 = vmatprep.subr.mxu0 0.0
        %1488 = vmatpush1.xpose.msra.mxu0 0.0
        %1489 = vmatprep.subr.mxu0 0.0
        %1490 = vmatpush1.xpose.msra.mxu0 0.0
        %1491 = vmatprep.subr.mxu0 0.0
        %1492 = vmatpush1.xpose.msra.mxu0 0.0
        %1493 = vmatprep.subr.mxu0 0.0
        %1494 = vmatpush1.xpose.msra.mxu0 0.0
        %1495 = vmatprep.subr.mxu0 0.0
        %1496 = vmatpush1.xpose.msra.mxu0 0.0
        %1497 = vmatprep.subr.mxu0 0.0
        %1498 = vmatpush1.xpose.msra.mxu0 0.0
        %1499 = vmatprep.subr.mxu0 0.0
        %1500 = vmatpush1.xpose.msra.mxu0 0.0
        %1501 = vmatprep.subr.mxu0 0.0
        %1502 = vmatpush1.xpose.msra.mxu0 0.0
        %1503 = vmatprep.subr.mxu0 0.0
        %1504 = vmatpush1.xpose.msra.mxu0 0.0
        %1505 = vmatprep.subr.mxu0 0.0
        %1506 = vmatpush1.xpose.msra.mxu0 0.0
        %1507 = vmatprep.subr.mxu0 0.0
        %1508 = vmatpush1.xpose.msra.mxu0 0.0
        %1509 = vmatprep.subr.mxu0 0.0
        %1510 = vmatpush1.xpose.msra.mxu0 0.0
        %1511 = vmatprep.subr.mxu0 0.0
        %1512 = vmatpush1.xpose.msra.mxu0 0.0
        %1513 = vmatprep.subr.mxu0 0.0
        %1514 = vmatpush1.xpose.msra.mxu0 0.0
        %1515 = vmatprep.subr.mxu0 0.0
        %1516 = vmatpush1.xpose.msra.mxu0 0.0
        %1517 = vmatprep.subr.mxu0 0.0
        %1518 = vmatpush1.xpose.msra.mxu0 0.0
        %1519 = vmatprep.subr.mxu0 0.0
        %1520 = vmatpush1.xpose.msra.mxu0 0.0
        %1521 = vmatprep.subr.mxu0 0.0
        %1522 = vmatpush1.xpose.msra.mxu0 0.0
        %1523 = vmatprep.subr.mxu0 0.0
        %1524 = vmatpush1.xpose.msra.mxu0 0.0
        %1525 = vmatprep.subr.mxu0 0.0
        %1526 = vmatpush1.xpose.msra.mxu0 0.0
        %1527 = vmatprep.subr.mxu0 0.0
        %1528 = vmatpush1.xpose.msra.mxu0 0.0
        %1529 = vmatprep.subr.mxu0 0.0
        %1530 = vmatpush1.xpose.msra.mxu0 0.0
        %1531 = vmatprep.subr.mxu0 0.0
        %1532 = vmatpush1.xpose.msra.mxu0 0.0
        %1533 = vmatprep.mubr.f32.mxu0 0.0
        %1534 = vmatmul.mubr.f32.gmra.mrb[0].mxu0 %v1465
        %v1535 = vpop.f32.mrb[0].mxu0
        %v1536 = vadd.f32 %v1464, %v1535
        %v1537 = vpop.f32.mrb[0].mxu0
        %1538 = vdwg.mxu0
        %v1539 = vsel %vm586, %v1449, 0
        %v1541 = vsel %vm586, %v1456, 0
        %1543 = vmatprep.subr.mxu0 0.0
        %1544 = vmatpush1.xpose.msra.mxu0 %v1541
        %1545 = vmatprep.subr.mxu0 0.0
        %1546 = vmatpush1.xpose.msra.mxu0 0.0
        %1547 = vmatprep.subr.mxu0 0.0
        %1548 = vmatpush1.xpose.msra.mxu0 0.0
        %1549 = vmatprep.subr.mxu0 0.0
        %1550 = vmatpush1.xpose.msra.mxu0 0.0
        %1551 = vmatprep.subr.mxu0 0.0
        %1552 = vmatpush1.xpose.msra.mxu0 0.0
        %1553 = vmatprep.subr.mxu0 0.0
        %1554 = vmatpush1.xpose.msra.mxu0 0.0
        %1555 = vmatprep.subr.mxu0 0.0
        %1556 = vmatpush1.xpose.msra.mxu0 0.0
        %1557 = vmatprep.subr.mxu0 0.0
        %1558 = vmatpush1.xpose.msra.mxu0 0.0
        %1559 = vmatprep.subr.mxu0 0.0
        %1560 = vmatpush1.xpose.msra.mxu0 0.0
        %1561 = vmatprep.subr.mxu0 0.0
        %1562 = vmatpush1.xpose.msra.mxu0 0.0
        %1563 = vmatprep.subr.mxu0 0.0
        %1564 = vmatpush1.xpose.msra.mxu0 0.0
        %1565 = vmatprep.subr.mxu0 0.0
        %1566 = vmatpush1.xpose.msra.mxu0 0.0
        %1567 = vmatprep.subr.mxu0 0.0
        %1568 = vmatpush1.xpose.msra.mxu0 0.0
        %1569 = vmatprep.subr.mxu0 0.0
        %1570 = vmatpush1.xpose.msra.mxu0 0.0
        %1571 = vmatprep.subr.mxu0 0.0
        %1572 = vmatpush1.xpose.msra.mxu0 0.0
        %1573 = vmatprep.subr.mxu0 0.0
        %1574 = vmatpush1.xpose.msra.mxu0 0.0
        %1575 = vmatprep.subr.mxu0 0.0
        %1576 = vmatpush1.xpose.msra.mxu0 0.0
        %1577 = vmatprep.subr.mxu0 0.0
        %1578 = vmatpush1.xpose.msra.mxu0 0.0
        %1579 = vmatprep.subr.mxu0 0.0
        %1580 = vmatpush1.xpose.msra.mxu0 0.0
        %1581 = vmatprep.subr.mxu0 0.0
        %1582 = vmatpush1.xpose.msra.mxu0 0.0
        %1583 = vmatprep.subr.mxu0 0.0
        %1584 = vmatpush1.xpose.msra.mxu0 0.0
        %1585 = vmatprep.subr.mxu0 0.0
        %1586 = vmatpush1.xpose.msra.mxu0 0.0
        %1587 = vmatprep.subr.mxu0 0.0
        %1588 = vmatpush1.xpose.msra.mxu0 0.0
        %1589 = vmatprep.subr.mxu0 0.0
        %1590 = vmatpush1.xpose.msra.mxu0 0.0
        %1591 = vmatprep.subr.mxu0 0.0
        %1592 = vmatpush1.xpose.msra.mxu0 0.0
        %1593 = vmatprep.subr.mxu0 0.0
        %1594 = vmatpush1.xpose.msra.mxu0 0.0
        %1595 = vmatprep.subr.mxu0 0.0
        %1596 = vmatpush1.xpose.msra.mxu0 0.0
        %1597 = vmatprep.subr.mxu0 0.0
        %1598 = vmatpush1.xpose.msra.mxu0 0.0
        %1599 = vmatprep.subr.mxu0 0.0
        %1600 = vmatpush1.xpose.msra.mxu0 0.0
        %1601 = vmatprep.subr.mxu0 0.0
        %1602 = vmatpush1.xpose.msra.mxu0 0.0
        %1603 = vmatprep.subr.mxu0 0.0
        %1604 = vmatpush1.xpose.msra.mxu0 0.0
        %1605 = vmatprep.subr.mxu0 0.0
        %1606 = vmatpush1.xpose.msra.mxu0 0.0
        %1607 = vmatprep.mubr.f32.mxu0 0.0
        %1608 = vmatmul.mubr.f32.gmra.mrb[0].mxu0 %v1539
        %v1609 = vpop.f32.mrb[0].mxu0
        %v1610 = vadd.f32 %v1464, %v1609
        %v1611 = vpop.f32.mrb[0].mxu0
        %1612 = vdwg.mxu0
        %v1613 = vsel %vm586, %v1451, 0
        %v1615 = vsel %vm586, %v1458, 0
        %1617 = vmatprep.subr.mxu0 0.0
        %1618 = vmatpush1.xpose.msra.mxu0 %v1615
        %1619 = vmatprep.subr.mxu0 0.0
        %1620 = vmatpush1.xpose.msra.mxu0 0.0
        %1621 = vmatprep.subr.mxu0 0.0
        %1622 = vmatpush1.xpose.msra.mxu0 0.0
        %1623 = vmatprep.subr.mxu0 0.0
        %1624 = vmatpush1.xpose.msra.mxu0 0.0
        %1625 = vmatprep.subr.mxu0 0.0
        %1626 = vmatpush1.xpose.msra.mxu0 0.0
        %1627 = vmatprep.subr.mxu0 0.0
        %1628 = vmatpush1.xpose.msra.mxu0 0.0
        %1629 = vmatprep.subr.mxu0 0.0
        %1630 = vmatpush1.xpose.msra.mxu0 0.0
        %1631 = vmatprep.subr.mxu0 0.0
        %1632 = vmatpush1.xpose.msra.mxu0 0.0
        %1633 = vmatprep.subr.mxu0 0.0
        %1634 = vmatpush1.xpose.msra.mxu0 0.0
        %1635 = vmatprep.subr.mxu0 0.0
        %1636 = vmatpush1.xpose.msra.mxu0 0.0
        %1637 = vmatprep.subr.mxu0 0.0
        %1638 = vmatpush1.xpose.msra.mxu0 0.0
        %1639 = vmatprep.subr.mxu0 0.0
        %1640 = vmatpush1.xpose.msra.mxu0 0.0
        %1641 = vmatprep.subr.mxu0 0.0
        %1642 = vmatpush1.xpose.msra.mxu0 0.0
        %1643 = vmatprep.subr.mxu0 0.0
        %1644 = vmatpush1.xpose.msra.mxu0 0.0
        %1645 = vmatprep.subr.mxu0 0.0
        %1646 = vmatpush1.xpose.msra.mxu0 0.0
        %1647 = vmatprep.subr.mxu0 0.0
        %1648 = vmatpush1.xpose.msra.mxu0 0.0
        %1649 = vmatprep.subr.mxu0 0.0
        %1650 = vmatpush1.xpose.msra.mxu0 0.0
        %1651 = vmatprep.subr.mxu0 0.0
        %1652 = vmatpush1.xpose.msra.mxu0 0.0
        %1653 = vmatprep.subr.mxu0 0.0
        %1654 = vmatpush1.xpose.msra.mxu0 0.0
        %1655 = vmatprep.subr.mxu0 0.0
        %1656 = vmatpush1.xpose.msra.mxu0 0.0
        %1657 = vmatprep.subr.mxu0 0.0
        %1658 = vmatpush1.xpose.msra.mxu0 0.0
        %1659 = vmatprep.subr.mxu0 0.0
        %1660 = vmatpush1.xpose.msra.mxu0 0.0
        %1661 = vmatprep.subr.mxu0 0.0
        %1662 = vmatpush1.xpose.msra.mxu0 0.0
        %1663 = vmatprep.subr.mxu0 0.0
        %1664 = vmatpush1.xpose.msra.mxu0 0.0
        %1665 = vmatprep.subr.mxu0 0.0
        %1666 = vmatpush1.xpose.msra.mxu0 0.0
        %1667 = vmatprep.subr.mxu0 0.0
        %1668 = vmatpush1.xpose.msra.mxu0 0.0
        %1669 = vmatprep.subr.mxu0 0.0
        %1670 = vmatpush1.xpose.msra.mxu0 0.0
        %1671 = vmatprep.subr.mxu0 0.0
        %1672 = vmatpush1.xpose.msra.mxu0 0.0
        %1673 = vmatprep.subr.mxu0 0.0
        %1674 = vmatpush1.xpose.msra.mxu0 0.0
        %1675 = vmatprep.subr.mxu0 0.0
        %1676 = vmatpush1.xpose.msra.mxu0 0.0
        %1677 = vmatprep.subr.mxu0 0.0
        %1678 = vmatpush1.xpose.msra.mxu0 0.0
        %1679 = vmatprep.subr.mxu0 0.0
        %1680 = vmatpush1.xpose.msra.mxu0 0.0
        %1681 = vmatprep.mubr.f32.mxu0 0.0
        %1682 = vmatmul.mubr.f32.gmra.mrb[0].mxu0 %v1613
        %v1683 = vpop.f32.mrb[0].mxu0
        %v1684 = vadd.f32 %v1464, %v1683
        %v1685 = vpop.f32.mrb[0].mxu0
        %1686 = vdwg.mxu0
        %v1687 = vsel %vm586, %v1453, 0
        %v1689 = vsel %vm586, %v1460, 0
        %1691 = vmatprep.subr.mxu0 0.0
        %1692 = vmatpush1.xpose.msra.mxu0 %v1689
        %1693 = vmatprep.subr.mxu0 0.0
        %1694 = vmatpush1.xpose.msra.mxu0 0.0
        %1695 = vmatprep.subr.mxu0 0.0
        %1696 = vmatpush1.xpose.msra.mxu0 0.0
        %1697 = vmatprep.subr.mxu0 0.0
        %1698 = vmatpush1.xpose.msra.mxu0 0.0
        %1699 = vmatprep.subr.mxu0 0.0
        %1700 = vmatpush1.xpose.msra.mxu0 0.0
        %1701 = vmatprep.subr.mxu0 0.0
        %1702 = vmatpush1.xpose.msra.mxu0 0.0
        %1703 = vmatprep.subr.mxu0 0.0
        %1704 = vmatpush1.xpose.msra.mxu0 0.0
        %1705 = vmatprep.subr.mxu0 0.0
        %1706 = vmatpush1.xpose.msra.mxu0 0.0
        %1707 = vmatprep.subr.mxu0 0.0
        %1708 = vmatpush1.xpose.msra.mxu0 0.0
        %1709 = vmatprep.subr.mxu0 0.0
        %1710 = vmatpush1.xpose.msra.mxu0 0.0
        %1711 = vmatprep.subr.mxu0 0.0
        %1712 = vmatpush1.xpose.msra.mxu0 0.0
        %1713 = vmatprep.subr.mxu0 0.0
        %1714 = vmatpush1.xpose.msra.mxu0 0.0
        %1715 = vmatprep.subr.mxu0 0.0
        %1716 = vmatpush1.xpose.msra.mxu0 0.0
        %1717 = vmatprep.subr.mxu0 0.0
        %1718 = vmatpush1.xpose.msra.mxu0 0.0
        %1719 = vmatprep.subr.mxu0 0.0
        %1720 = vmatpush1.xpose.msra.mxu0 0.0
        %1721 = vmatprep.subr.mxu0 0.0
        %1722 = vmatpush1.xpose.msra.mxu0 0.0
        %1723 = vmatprep.subr.mxu0 0.0
        %1724 = vmatpush1.xpose.msra.mxu0 0.0
        %1725 = vmatprep.subr.mxu0 0.0
        %1726 = vmatpush1.xpose.msra.mxu0 0.0
        %1727 = vmatprep.subr.mxu0 0.0
        %1728 = vmatpush1.xpose.msra.mxu0 0.0
        %1729 = vmatprep.subr.mxu0 0.0
        %1730 = vmatpush1.xpose.msra.mxu0 0.0
        %1731 = vmatprep.subr.mxu0 0.0
        %1732 = vmatpush1.xpose.msra.mxu0 0.0
        %1733 = vmatprep.subr.mxu0 0.0
        %1734 = vmatpush1.xpose.msra.mxu0 0.0
        %1735 = vmatprep.subr.mxu0 0.0
        %1736 = vmatpush1.xpose.msra.mxu0 0.0
        %1737 = vmatprep.subr.mxu0 0.0
        %1738 = vmatpush1.xpose.msra.mxu0 0.0
        %1739 = vmatprep.subr.mxu0 0.0
        %1740 = vmatpush1.xpose.msra.mxu0 0.0
        %1741 = vmatprep.subr.mxu0 0.0
        %1742 = vmatpush1.xpose.msra.mxu0 0.0
        %1743 = vmatprep.subr.mxu0 0.0
        %1744 = vmatpush1.xpose.msra.mxu0 0.0
        %1745 = vmatprep.subr.mxu0 0.0
        %1746 = vmatpush1.xpose.msra.mxu0 0.0
        %1747 = vmatprep.subr.mxu0 0.0
        %1748 = vmatpush1.xpose.msra.mxu0 0.0
        %1749 = vmatprep.subr.mxu0 0.0
        %1750 = vmatpush1.xpose.msra.mxu0 0.0
        %1751 = vmatprep.subr.mxu0 0.0
        %1752 = vmatpush1.xpose.msra.mxu0 0.0
        %1753 = vmatprep.subr.mxu0 0.0
        %1754 = vmatpush1.xpose.msra.mxu0 0.0
        %1755 = vmatprep.mubr.f32.mxu0 0.0
        %1756 = vmatmul.mubr.f32.gmra.mrb[0].mxu0 %v1687
        %v1757 = vpop.f32.mrb[0].mxu0
        %v1758 = vadd.f32 %v1464, %v1757
        %v1759 = vpop.f32.mrb[0].mxu0
        %1760 = vdwg.mxu0
        %v1761 = vsel %vm586, %v1536, -inf
        %1762 = vmax.xlane.f32.xlu0 %v1761
        %v1763 = vpop.xlane.xlu0 %1762
        %v1764 = vsel %vm586, %v1610, -inf
        %1765 = vmax.xlane.f32.xlu0 %v1764
        %v1766 = vpop.xlane.xlu0 %1765
        %v1767 = vsel %vm586, %v1684, -inf
        %1768 = vmax.xlane.f32.xlu0 %v1767
        %v1769 = vpop.xlane.xlu0 %1768
        %v1770 = vsel %vm586, %v1758, -inf
        %1771 = vmax.xlane.f32.xlu0 %v1770
        %v1772 = vpop.xlane.xlu0 %1771
        %v1773 = vsub.f32 %v1536, %v1763
        %v1774 = vsub.f32 %v1610, %v1766
        %v1775 = vsub.f32 %v1684, %v1769
        %v1776 = vsub.f32 %v1758, %v1772
        %v1777 = vmul.f32 %v1773, 1.442695
        %v1778 = vpow.pop %v1777
        %v1779 = vmul.f32 %v1774, 1.442695
        %v1780 = vpow.pop %v1779
        %v1781 = vmul.f32 %v1775, 1.442695
        %v1782 = vpow.pop %v1781
        %v1783 = vmul.f32 %v1776, 1.442695
        %v1784 = vpow.pop %v1783
        %v1785 = vsel %vm586, %v1778, 0.0
        %1786 = vadd.xlane.f32.xlu0 %v1785
        %v1787 = vpop.xlane.xlu0 %1786
        %v1788 = vsel %vm586, %v1780, 0.0
        %1789 = vadd.xlane.f32.xlu0 %v1788
        %v1790 = vpop.xlane.xlu0 %1789
        %v1791 = vsel %vm586, %v1782, 0.0
        %1792 = vadd.xlane.f32.xlu0 %v1791
        %v1793 = vpop.xlane.xlu0 %1792
        %v1794 = vsel %vm586, %v1784, 0.0
        %1795 = vadd.xlane.f32.xlu0 %v1794
        %v1796 = vpop.xlane.xlu0 %1795
        %v1797 = vrcp.pop %v1787
        %v1798 = vrcp.pop %v1790
        %v1799 = vrcp.pop %v1793
        %v1800 = vrcp.pop %v1796
        %v1801 = vmul.f32 %v1778, %v1797
        %v1802 = vmul.f32 %v1780, %v1798
        %v1803 = vmul.f32 %v1782, %v1799
        %v1804 = vmul.f32 %v1784, %v1800
        %1805 = vrot.lane.b32.xlu0 %v1442, 96
        %v1806 = vpop.permute.xlu0 %1805
        %v1809 = vsel %vm586, %v1801, 0
        %1811 = vmatprep.subr.mxu0 0.0
        %1812 = vmatpush1.msra.mxu0 %v1806
        %1813 = vmatprep.subr.mxu0 0.0
        %1814 = vmatpush1.msra.mxu0 0.0
        %1815 = vmatprep.subr.mxu0 0.0
        %1816 = vmatpush1.msra.mxu0 0.0
        %1817 = vmatprep.subr.mxu0 0.0
        %1818 = vmatpush1.msra.mxu0 0.0
        %1819 = vmatprep.subr.mxu0 0.0
        %1820 = vmatpush1.msra.mxu0 0.0
        %1821 = vmatprep.subr.mxu0 0.0
        %1822 = vmatpush1.msra.mxu0 0.0
        %1823 = vmatprep.subr.mxu0 0.0
        %1824 = vmatpush1.msra.mxu0 0.0
        %1825 = vmatprep.subr.mxu0 0.0
        %1826 = vmatpush1.msra.mxu0 0.0
        %1827 = vmatprep.subr.mxu0 0.0
        %1828 = vmatpush1.msra.mxu0 0.0
        %1829 = vmatprep.subr.mxu0 0.0
        %1830 = vmatpush1.msra.mxu0 0.0
        %1831 = vmatprep.subr.mxu0 0.0
        %1832 = vmatpush1.msra.mxu0 0.0
        %1833 = vmatprep.subr.mxu0 0.0
        %1834 = vmatpush1.msra.mxu0 0.0
        %1835 = vmatprep.subr.mxu0 0.0
        %1836 = vmatpush1.msra.mxu0 0.0
        %1837 = vmatprep.subr.mxu0 0.0
        %1838 = vmatpush1.msra.mxu0 0.0
        %1839 = vmatprep.subr.mxu0 0.0
        %1840 = vmatpush1.msra.mxu0 0.0
        %1841 = vmatprep.subr.mxu0 0.0
        %1842 = vmatpush1.msra.mxu0 0.0
        %1843 = vmatprep.subr.mxu0 0.0
        %1844 = vmatpush1.msra.mxu0 0.0
        %1845 = vmatprep.subr.mxu0 0.0
        %1846 = vmatpush1.msra.mxu0 0.0
        %1847 = vmatprep.subr.mxu0 0.0
        %1848 = vmatpush1.msra.mxu0 0.0
        %1849 = vmatprep.subr.mxu0 0.0
        %1850 = vmatpush1.msra.mxu0 0.0
        %1851 = vmatprep.subr.mxu0 0.0
        %1852 = vmatpush1.msra.mxu0 0.0
        %1853 = vmatprep.subr.mxu0 0.0
        %1854 = vmatpush1.msra.mxu0 0.0
        %1855 = vmatprep.subr.mxu0 0.0
        %1856 = vmatpush1.msra.mxu0 0.0
        %1857 = vmatprep.subr.mxu0 0.0
        %1858 = vmatpush1.msra.mxu0 0.0
        %1859 = vmatprep.subr.mxu0 0.0
        %1860 = vmatpush1.msra.mxu0 0.0
        %1861 = vmatprep.subr.mxu0 0.0
        %1862 = vmatpush1.msra.mxu0 0.0
        %1863 = vmatprep.subr.mxu0 0.0
        %1864 = vmatpush1.msra.mxu0 0.0
        %1865 = vmatprep.subr.mxu0 0.0
        %1866 = vmatpush1.msra.mxu0 0.0
        %1867 = vmatprep.subr.mxu0 0.0
        %1868 = vmatpush1.msra.mxu0 0.0
        %1869 = vmatprep.subr.mxu0 0.0
        %1870 = vmatpush1.msra.mxu0 0.0
        %1871 = vmatprep.subr.mxu0 0.0
        %1872 = vmatpush1.msra.mxu0 0.0
        %1873 = vmatprep.subr.mxu0 0.0
        %1874 = vmatpush1.msra.mxu0 0.0
        %1875 = vmatprep.mubr.f32.mxu0 0.0
        %1876 = vmatmul.mubr.f32.gmra.mrb[0].mxu0 %v1809
        %v1877 = vpop.f32.mrb[0].mxu0
        %v1878 = vadd.f32 0.0, %v1877
        %v1879 = vpop.f32.mrb[0].mxu0
        %1880 = vdwg.mxu0
        %1881 = vrot.lane.b32.xlu0 %v1456, 96
        %v1882 = vpop.permute.xlu0 %1881
        %v1885 = vsel %vm586, %v1802, 0
        %1887 = vmatprep.subr.mxu0 0.0
        %1888 = vmatpush1.msra.mxu0 %v1882
        %1889 = vmatprep.subr.mxu0 0.0
        %1890 = vmatpush1.msra.mxu0 0.0
        %1891 = vmatprep.subr.mxu0 0.0
        %1892 = vmatpush1.msra.mxu0 0.0
        %1893 = vmatprep.subr.mxu0 0.0
        %1894 = vmatpush1.msra.mxu0 0.0
        %1895 = vmatprep.subr.mxu0 0.0
        %1896 = vmatpush1.msra.mxu0 0.0
        %1897 = vmatprep.subr.mxu0 0.0
        %1898 = vmatpush1.msra.mxu0 0.0
        %1899 = vmatprep.subr.mxu0 0.0
        %1900 = vmatpush1.msra.mxu0 0.0
        %1901 = vmatprep.subr.mxu0 0.0
        %1902 = vmatpush1.msra.mxu0 0.0
        %1903 = vmatprep.subr.mxu0 0.0
        %1904 = vmatpush1.msra.mxu0 0.0
        %1905 = vmatprep.subr.mxu0 0.0
        %1906 = vmatpush1.msra.mxu0 0.0
        %1907 = vmatprep.subr.mxu0 0.0
        %1908 = vmatpush1.msra.mxu0 0.0
        %1909 = vmatprep.subr.mxu0 0.0
        %1910 = vmatpush1.msra.mxu0 0.0
        %1911 = vmatprep.subr.mxu0 0.0
        %1912 = vmatpush1.msra.mxu0 0.0
        %1913 = vmatprep.subr.mxu0 0.0
        %1914 = vmatpush1.msra.mxu0 0.0
        %1915 = vmatprep.subr.mxu0 0.0
        %1916 = vmatpush1.msra.mxu0 0.0
        %1917 = vmatprep.subr.mxu0 0.0
        %1918 = vmatpush1.msra.mxu0 0.0
        %1919 = vmatprep.subr.mxu0 0.0
        %1920 = vmatpush1.msra.mxu0 0.0
        %1921 = vmatprep.subr.mxu0 0.0
        %1922 = vmatpush1.msra.mxu0 0.0
        %1923 = vmatprep.subr.mxu0 0.0
        %1924 = vmatpush1.msra.mxu0 0.0
        %1925 = vmatprep.subr.mxu0 0.0
        %1926 = vmatpush1.msra.mxu0 0.0
        %1927 = vmatprep.subr.mxu0 0.0
        %1928 = vmatpush1.msra.mxu0 0.0
        %1929 = vmatprep.subr.mxu0 0.0
        %1930 = vmatpush1.msra.mxu0 0.0
        %1931 = vmatprep.subr.mxu0 0.0
        %1932 = vmatpush1.msra.mxu0 0.0
        %1933 = vmatprep.subr.mxu0 0.0
        %1934 = vmatpush1.msra.mxu0 0.0
        %1935 = vmatprep.subr.mxu0 0.0
        %1936 = vmatpush1.msra.mxu0 0.0
        %1937 = vmatprep.subr.mxu0 0.0
        %1938 = vmatpush1.msra.mxu0 0.0
        %1939 = vmatprep.subr.mxu0 0.0
        %1940 = vmatpush1.msra.mxu0 0.0
        %1941 = vmatprep.subr.mxu0 0.0
        %1942 = vmatpush1.msra.mxu0 0.0
        %1943 = vmatprep.subr.mxu0 0.0
        %1944 = vmatpush1.msra.mxu0 0.0
        %1945 = vmatprep.subr.mxu0 0.0
        %1946 = vmatpush1.msra.mxu0 0.0
        %1947 = vmatprep.subr.mxu0 0.0
        %1948 = vmatpush1.msra.mxu0 0.0
        %1949 = vmatprep.subr.mxu0 0.0
        %1950 = vmatpush1.msra.mxu0 0.0
        %1951 = vmatprep.mubr.f32.mxu0 0.0
        %1952 = vmatmul.mubr.f32.gmra.mrb[0].mxu0 %v1885
        %v1953 = vpop.f32.mrb[0].mxu0
        %v1954 = vadd.f32 0.0, %v1953
        %v1955 = vpop.f32.mrb[0].mxu0
        %1956 = vdwg.mxu0
        %1957 = vrot.lane.b32.xlu0 %v1458, 96
        %v1958 = vpop.permute.xlu0 %1957
        %v1961 = vsel %vm586, %v1803, 0
        %1963 = vmatprep.subr.mxu0 0.0
        %1964 = vmatpush1.msra.mxu0 %v1958
        %1965 = vmatprep.subr.mxu0 0.0
        %1966 = vmatpush1.msra.mxu0 0.0
        %1967 = vmatprep.subr.mxu0 0.0
        %1968 = vmatpush1.msra.mxu0 0.0
        %1969 = vmatprep.subr.mxu0 0.0
        %1970 = vmatpush1.msra.mxu0 0.0
        %1971 = vmatprep.subr.mxu0 0.0
        %1972 = vmatpush1.msra.mxu0 0.0
        %1973 = vmatprep.subr.mxu0 0.0
        %1974 = vmatpush1.msra.mxu0 0.0
        %1975 = vmatprep.subr.mxu0 0.0
        %1976 = vmatpush1.msra.mxu0 0.0
        %1977 = vmatprep.subr.mxu0 0.0
        %1978 = vmatpush1.msra.mxu0 0.0
        %1979 = vmatprep.subr.mxu0 0.0
        %1980 = vmatpush1.msra.mxu0 0.0
        %1981 = vmatprep.subr.mxu0 0.0
        %1982 = vmatpush1.msra.mxu0 0.0
        %1983 = vmatprep.subr.mxu0 0.0
        %1984 = vmatpush1.msra.mxu0 0.0
        %1985 = vmatprep.subr.mxu0 0.0
        %1986 = vmatpush1.msra.mxu0 0.0
        %1987 = vmatprep.subr.mxu0 0.0
        %1988 = vmatpush1.msra.mxu0 0.0
        %1989 = vmatprep.subr.mxu0 0.0
        %1990 = vmatpush1.msra.mxu0 0.0
        %1991 = vmatprep.subr.mxu0 0.0
        %1992 = vmatpush1.msra.mxu0 0.0
        %1993 = vmatprep.subr.mxu0 0.0
        %1994 = vmatpush1.msra.mxu0 0.0
        %1995 = vmatprep.subr.mxu0 0.0
        %1996 = vmatpush1.msra.mxu0 0.0
        %1997 = vmatprep.subr.mxu0 0.0
        %1998 = vmatpush1.msra.mxu0 0.0
        %1999 = vmatprep.subr.mxu0 0.0
        %2000 = vmatpush1.msra.mxu0 0.0
        %2001 = vmatprep.subr.mxu0 0.0
        %2002 = vmatpush1.msra.mxu0 0.0
        %2003 = vmatprep.subr.mxu0 0.0
        %2004 = vmatpush1.msra.mxu0 0.0
        %2005 = vmatprep.subr.mxu0 0.0
        %2006 = vmatpush1.msra.mxu0 0.0
        %2007 = vmatprep.subr.mxu0 0.0
        %2008 = vmatpush1.msra.mxu0 0.0
        %2009 = vmatprep.subr.mxu0 0.0
        %2010 = vmatpush1.msra.mxu0 0.0
        %2011 = vmatprep.subr.mxu0 0.0
        %2012 = vmatpush1.msra.mxu0 0.0
        %2013 = vmatprep.subr.mxu0 0.0
        %2014 = vmatpush1.msra.mxu0 0.0
        %2015 = vmatprep.subr.mxu0 0.0
        %2016 = vmatpush1.msra.mxu0 0.0
        %2017 = vmatprep.subr.mxu0 0.0
        %2018 = vmatpush1.msra.mxu0 0.0
        %2019 = vmatprep.subr.mxu0 0.0
        %2020 = vmatpush1.msra.mxu0 0.0
        %2021 = vmatprep.subr.mxu0 0.0
        %2022 = vmatpush1.msra.mxu0 0.0
        %2023 = vmatprep.subr.mxu0 0.0
        %2024 = vmatpush1.msra.mxu0 0.0
        %2025 = vmatprep.subr.mxu0 0.0
        %2026 = vmatpush1.msra.mxu0 0.0
        %2027 = vmatprep.mubr.f32.mxu0 0.0
        %2028 = vmatmul.mubr.f32.gmra.mrb[0].mxu0 %v1961
        %v2029 = vpop.f32.mrb[0].mxu0
        %v2030 = vadd.f32 0.0, %v2029
        %v2031 = vpop.f32.mrb[0].mxu0
        %2032 = vdwg.mxu0
        %2033 = vrot.lane.b32.xlu0 %v1460, 96
        %v2034 = vpop.permute.xlu0 %2033
        %v2037 = vsel %vm586, %v1804, 0
        %2039 = vmatprep.subr.mxu0 0.0
        %2040 = vmatpush1.msra.mxu0 %v2034
        %2041 = vmatprep.subr.mxu0 0.0
        %2042 = vmatpush1.msra.mxu0 0.0
        %2043 = vmatprep.subr.mxu0 0.0
        %2044 = vmatpush1.msra.mxu0 0.0
        %2045 = vmatprep.subr.mxu0 0.0
        %2046 = vmatpush1.msra.mxu0 0.0
        %2047 = vmatprep.subr.mxu0 0.0
        %2048 = vmatpush1.msra.mxu0 0.0
        %2049 = vmatprep.subr.mxu0 0.0
        %2050 = vmatpush1.msra.mxu0 0.0
        %2051 = vmatprep.subr.mxu0 0.0
        %2052 = vmatpush1.msra.mxu0 0.0
        %2053 = vmatprep.subr.mxu0 0.0
        %2054 = vmatpush1.msra.mxu0 0.0
        %2055 = vmatprep.subr.mxu0 0.0
        %2056 = vmatpush1.msra.mxu0 0.0
        %2057 = vmatprep.subr.mxu0 0.0
        %2058 = vmatpush1.msra.mxu0 0.0
        %2059 = vmatprep.subr.mxu0 0.0
        %2060 = vmatpush1.msra.mxu0 0.0
        %2061 = vmatprep.subr.mxu0 0.0
        %2062 = vmatpush1.msra.mxu0 0.0
        %2063 = vmatprep.subr.mxu0 0.0
        %2064 = vmatpush1.msra.mxu0 0.0
        %2065 = vmatprep.subr.mxu0 0.0
        %2066 = vmatpush1.msra.mxu0 0.0
        %2067 = vmatprep.subr.mxu0 0.0
        %2068 = vmatpush1.msra.mxu0 0.0
        %2069 = vmatprep.subr.mxu0 0.0
        %2070 = vmatpush1.msra.mxu0 0.0
        %2071 = vmatprep.subr.mxu0 0.0
        %2072 = vmatpush1.msra.mxu0 0.0
        %2073 = vmatprep.subr.mxu0 0.0
        %2074 = vmatpush1.msra.mxu0 0.0
        %2075 = vmatprep.subr.mxu0 0.0
        %2076 = vmatpush1.msra.mxu0 0.0
        %2077 = vmatprep.subr.mxu0 0.0
        %2078 = vmatpush1.msra.mxu0 0.0
        %2079 = vmatprep.subr.mxu0 0.0
        %2080 = vmatpush1.msra.mxu0 0.0
        %2081 = vmatprep.subr.mxu0 0.0
        %2082 = vmatpush1.msra.mxu0 0.0
        %2083 = vmatprep.subr.mxu0 0.0
        %2084 = vmatpush1.msra.mxu0 0.0
        %2085 = vmatprep.subr.mxu0 0.0
        %2086 = vmatpush1.msra.mxu0 0.0
        %2087 = vmatprep.subr.mxu0 0.0
        %2088 = vmatpush1.msra.mxu0 0.0
        %2089 = vmatprep.subr.mxu0 0.0
        %2090 = vmatpush1.msra.mxu0 0.0
        %2091 = vmatprep.subr.mxu0 0.0
        %2092 = vmatpush1.msra.mxu0 0.0
        %2093 = vmatprep.subr.mxu0 0.0
        %2094 = vmatpush1.msra.mxu0 0.0
        %2095 = vmatprep.subr.mxu0 0.0
        %2096 = vmatpush1.msra.mxu0 0.0
        %2097 = vmatprep.subr.mxu0 0.0
        %2098 = vmatpush1.msra.mxu0 0.0
        %2099 = vmatprep.subr.mxu0 0.0
        %2100 = vmatpush1.msra.mxu0 0.0
        %2101 = vmatprep.subr.mxu0 0.0
        %2102 = vmatpush1.msra.mxu0 0.0
        %2103 = vmatprep.mubr.f32.mxu0 0.0
        %2104 = vmatmul.mubr.f32.gmra.mrb[0].mxu0 %v2037
        %v2105 = vpop.f32.mrb[0].mxu0
        %v2106 = vadd.f32 0.0, %v2105
        %v2107 = vpop.f32.mrb[0].mxu0
        %2108 = vdwg.mxu0
        %2110 = vrot.lane.b32.xlu0 %v1954, 8
        %v2111 = vpop.permute.xlu0 %2110
        %2114 = vrot.lane.b32.xlu0 %v2030, 16
        %v2115 = vpop.permute.xlu0 %2114
        %2118 = vrot.lane.b32.xlu0 %v2106, 24
        %v2119 = vpop.permute.xlu0 %2118
        %v2121 = vsel %vm586, %v1878, %v2111
        %v2122 = vsel %vm1250, %v2121, %v2115
        %v2123 = vsel %vm1252, %v2122, %v2119
        %v2124 = vpack.c.bf16 %v2123, %v2123
        %v2125 = vld [vmem:[%s8] sm:$0xf]
        %v2126 = vld [vmem:[%s8 + $0x4] sm:$0xf]
        %v2127 = vld [vmem:[%s8 + $0x8] sm:$0xf]
        %v2128 = vld [vmem:[%s8 + $0xc] sm:$0xf]
        %v2133 = vunpack.c.l.b16 %v2125
        %v2134 = vunpack.c.l.b16 %v2126
        %v2135 = vunpack.c.l.b16 %v2127
        %v2136 = vunpack.c.l.b16 %v2128
        %v2137 = vpack.c.b16 %v2134, %v2133
        %v2138 = vpack.c.b16 %v2136, %v2135
        %v2142 = vsel %vm503, %v2124, 0
        %2144 = vmatprep.subr.bf16.mxu0 0
        %2145 = vmatpush1.bf16.msra.mxu0 %v2137
        %2146 = vmatprep.subr.bf16.mxu0 0
        %2147 = vmatpush1.bf16.msra.mxu0 %v2138
        %2148 = vmatprep.subr.bf16.mxu0 0
        %2149 = vmatpush1.bf16.msra.mxu0 0
        %2150 = vmatprep.subr.bf16.mxu0 0
        %2151 = vmatpush1.bf16.msra.mxu0 0
        %2152 = vmatprep.subr.bf16.mxu0 0
        %2153 = vmatpush1.bf16.msra.mxu0 0
        %2154 = vmatprep.subr.bf16.mxu0 0
        %2155 = vmatpush1.bf16.msra.mxu0 0
        %2156 = vmatprep.subr.bf16.mxu0 0
        %2157 = vmatpush1.bf16.msra.mxu0 0
        %2158 = vmatprep.subr.bf16.mxu0 0
        %2159 = vmatpush1.bf16.msra.mxu0 0
        %2160 = vmatprep.subr.bf16.mxu0 0
        %2161 = vmatpush1.bf16.msra.mxu0 0
        %2162 = vmatprep.subr.bf16.mxu0 0
        %2163 = vmatpush1.bf16.msra.mxu0 0
        %2164 = vmatprep.subr.bf16.mxu0 0
        %2165 = vmatpush1.bf16.msra.mxu0 0
        %2166 = vmatprep.subr.bf16.mxu0 0
        %2167 = vmatpush1.bf16.msra.mxu0 0
        %2168 = vmatprep.subr.bf16.mxu0 0
        %2169 = vmatpush1.bf16.msra.mxu0 0
        %2170 = vmatprep.subr.bf16.mxu0 0
        %2171 = vmatpush1.bf16.msra.mxu0 0
        %2172 = vmatprep.subr.bf16.mxu0 0
        %2173 = vmatpush1.bf16.msra.mxu0 0
        %2174 = vmatprep.subr.bf16.mxu0 0
        %2175 = vmatpush1.bf16.msra.mxu0 0
        %2176 = vmatprep.mubr.bf16.mxu0 0
        %2177 = vmatmul.mubr.bf16.gmra.mrb[0].mxu0 %v2142
        %v2178 = vpop.f32.mrb[0].mxu0
        %v2179 = vadd.f32 0.0, %v2178
        %v2180 = vpop.f32.mrb[0].mxu0
        %v2181 = vpop.f32.mrb[0].mxu0
        %v2182 = vpop.f32.mrb[0].mxu0
        %2183 = vdwg.mxu0
        %v2184 = vadd.f32 %v1314, %v2179
        %v2185 = vmul.f32 %v2184, %v2184
        %v2186 = vsel %vm503, %v2185, 0.0
        %2187 = vadd.xlane.f32.xlu0 %v2186
        %v2188 = vpop.xlane.xlu0 %2187
        %v2189 = vmul.f32 %v2188, %v507
        %v2190 = vadd.f32 %v2189, 1e-06
        %v2191 = vrsqrt.pop %v2190
        %v2192 = vmul.f32 %v2184, %v2191
        %v2193 = vlaneseq
        %v2194 = vshrl.u32 %v2193, 7
        %v2195 = vsub.s32 2, %v2194
        %v2196 = vrot.slane %v501, %v2195
        %v2197 = vmul.f32 %v2192, %v2196
        %v2198 = vpack.c.bf16 %v2197, %v2197
        %v2199 = vld [vmem:[%s9] sm:$0xf]
        %v2200 = vld [vmem:[%s9 + $0x4] sm:$0xf]
        %v2201 = vld [vmem:[%s9 + $0x8] sm:$0xf]
        %v2202 = vld [vmem:[%s9 + $0xc] sm:$0xf]
        %v2207 = vunpack.c.l.b16 %v2199
        %v2208 = vunpack.c.l.b16 %v2200
        %v2209 = vunpack.c.l.b16 %v2201
        %v2210 = vunpack.c.l.b16 %v2202
        %v2211 = vpack.c.b16 %v2208, %v2207
        %v2212 = vpack.c.b16 %v2210, %v2209
        %v2216 = vsel %vm503, %v2198, 0
        %2218 = vmatprep.subr.bf16.mxu0 0
        %2219 = vmatpush1.bf16.msra.mxu0 %v2211
        %2220 = vmatprep.subr.bf16.mxu0 0
        %2221 = vmatpush1.bf16.msra.mxu0 %v2212
        %2222 = vmatprep.subr.bf16.mxu0 0
        %2223 = vmatpush1.bf16.msra.mxu0 0
        %2224 = vmatprep.subr.bf16.mxu0 0
        %2225 = vmatpush1.bf16.msra.mxu0 0
        %2226 = vmatprep.subr.bf16.mxu0 0
        %2227 = vmatpush1.bf16.msra.mxu0 0
        %2228 = vmatprep.subr.bf16.mxu0 0
        %2229 = vmatpush1.bf16.msra.mxu0 0
        %2230 = vmatprep.subr.bf16.mxu0 0
        %2231 = vmatpush1.bf16.msra.mxu0 0
        %2232 = vmatprep.subr.bf16.mxu0 0
        %2233 = vmatpush1.bf16.msra.mxu0 0
        %2234 = vmatprep.subr.bf16.mxu0 0
        %2235 = vmatpush1.bf16.msra.mxu0 0
        %2236 = vmatprep.subr.bf16.mxu0 0
        %2237 = vmatpush1.bf16.msra.mxu0 0
        %2238 = vmatprep.subr.bf16.mxu0 0
        %2239 = vmatpush1.bf16.msra.mxu0 0
        %2240 = vmatprep.subr.bf16.mxu0 0
        %2241 = vmatpush1.bf16.msra.mxu0 0
        %2242 = vmatprep.subr.bf16.mxu0 0
        %2243 = vmatpush1.bf16.msra.mxu0 0
        %2244 = vmatprep.subr.bf16.mxu0 0
        %2245 = vmatpush1.bf16.msra.mxu0 0
        %2246 = vmatprep.subr.bf16.mxu0 0
        %2247 = vmatpush1.bf16.msra.mxu0 0
        %2248 = vmatprep.subr.bf16.mxu0 0
        %2249 = vmatpush1.bf16.msra.mxu0 0
        %2250 = vmatprep.mubr.bf16.mxu0 0
        %2251 = vmatmul.mubr.bf16.gmra.mrb[0].mxu0 %v2216
        %v2252 = vpop.f32.mrb[0].mxu0
        %v2253 = vadd.f32 0.0, %v2252
        %v2254 = vpop.f32.mrb[0].mxu0
        %v2255 = vpop.f32.mrb[0].mxu0
        %v2256 = vpop.f32.mrb[0].mxu0
        %2257 = vdwg.mxu0
        %v2258 = vmax.f32 %v2253, 0.0
        %v2259 = vpack.c.bf16 %v2258, %v2258
        %v2260 = vld [vmem:[%s10] sm:$0xf]
        %v2261 = vld [vmem:[%s10 + $0x4] sm:$0xf]
        %v2262 = vld [vmem:[%s10 + $0x8] sm:$0xf]
        %v2263 = vld [vmem:[%s10 + $0xc] sm:$0xf]
        %v2264 = vld [vmem:[%s10 + $0x10] sm:$0xf]
        %v2265 = vld [vmem:[%s10 + $0x14] sm:$0xf]
        %v2266 = vld [vmem:[%s10 + $0x18] sm:$0xf]
        %v2267 = vld [vmem:[%s10 + $0x1c] sm:$0xf]
        %v2276 = vunpack.c.l.b16 %v2260
        %v2277 = vunpack.c.l.b16 %v2261
        %v2278 = vunpack.c.l.b16 %v2262
        %v2279 = vunpack.c.l.b16 %v2263
        %v2280 = vunpack.c.l.b16 %v2264
        %v2281 = vunpack.c.l.b16 %v2265
        %v2282 = vunpack.c.l.b16 %v2266
        %v2283 = vunpack.c.l.b16 %v2267
        %v2284 = vpack.c.b16 %v2277, %v2276
        %v2285 = vpack.c.b16 %v2279, %v2278
        %v2286 = vpack.c.b16 %v2281, %v2280
        %v2287 = vpack.c.b16 %v2283, %v2282
        %vm2292 = vcmask 523264
        %v2294 = vsel %vm2292, %v2259, 0
        %2296 = vmatprep.subr.bf16.mxu0 0
        %2297 = vmatpush1.bf16.msra.mxu0 %v2284
        %2298 = vmatprep.subr.bf16.mxu0 0
        %2299 = vmatpush1.bf16.msra.mxu0 %v2285
        %2300 = vmatprep.subr.bf16.mxu0 0
        %2301 = vmatpush1.bf16.msra.mxu0 %v2286
        %2302 = vmatprep.subr.bf16.mxu0 0
        %2303 = vmatpush1.bf16.msra.mxu0 %v2287
        %2304 = vmatprep.subr.bf16.mxu0 0
        %2305 = vmatpush1.bf16.msra.mxu0 0
        %2306 = vmatprep.subr.bf16.mxu0 0
        %2307 = vmatpush1.bf16.msra.mxu0 0
        %2308 = vmatprep.subr.bf16.mxu0 0
        %2309 = vmatpush1.bf16.msra.mxu0 0
        %2310 = vmatprep.subr.bf16.mxu0 0
        %2311 = vmatpush1.bf16.msra.mxu0 0
        %2312 = vmatprep.subr.bf16.mxu0 0
        %2313 = vmatpush1.bf16.msra.mxu0 0
        %2314 = vmatprep.subr.bf16.mxu0 0
        %2315 = vmatpush1.bf16.msra.mxu0 0
        %2316 = vmatprep.subr.bf16.mxu0 0
        %2317 = vmatpush1.bf16.msra.mxu0 0
        %2318 = vmatprep.subr.bf16.mxu0 0
        %2319 = vmatpush1.bf16.msra.mxu0 0
        %2320 = vmatprep.subr.bf16.mxu0 0
        %2321 = vmatpush1.bf16.msra.mxu0 0
        %2322 = vmatprep.subr.bf16.mxu0 0
        %2323 = vmatpush1.bf16.msra.mxu0 0
        %2324 = vmatprep.subr.bf16.mxu0 0
        %2325 = vmatpush1.bf16.msra.mxu0 0
        %2326 = vmatprep.subr.bf16.mxu0 0
        %2327 = vmatpush1.bf16.msra.mxu0 0
        %2328 = vmatprep.mubr.bf16.mxu0 0
        %2329 = vmatmul.mubr.bf16.gmra.mrb[0].mxu0 %v2294
        %v2330 = vpop.f32.mrb[0].mxu0
        %v2331 = vadd.f32 0.0, %v2330
        %v2332 = vpop.f32.mrb[0].mxu0
        %v2333 = vpop.f32.mrb[0].mxu0
        %v2334 = vpop.f32.mrb[0].mxu0
        %2335 = vdwg.mxu0
        %v2336 = vadd.f32 %v2184, %v2331
        %2338 = vrot.lane.b32.xlu0 %v1442, 64
        %v2339 = vpop.permute.xlu0 %2338
        %v2341 = vsel %vm2292, %v585, %v2339
        %vm2342 = vcmask 785408
        %v2343 = vsel %vm2342, %v2341, %v2339
        %2344 = vst [vmem:[%s478] sm:$0xff] %v2343
        %s2345 = scalar_lea.vmem %s3, 4
        %v2346 = vld [vmem:[%s2345] sm:$0x7]
        %v2347 = vmul.f32 %v2336, %v2336
        %v2348 = vsel %vm503, %v2347, 0.0
        %2349 = vadd.xlane.f32.xlu0 %v2348
        %v2350 = vpop.xlane.xlu0 %2349
        %v2351 = vmul.f32 %v2350, %v507
        %v2352 = vadd.f32 %v2351, 1e-06
        %v2353 = vrsqrt.pop %v2352
        %v2354 = vmul.f32 %v2336, %v2353
        %v2355 = vlaneseq
        %v2356 = vshrl.u32 %v2355, 7
        %v2357 = vsub.s32 0, %v2356
        %v2358 = vrot.slane %v2346, %v2357
        %v2359 = vmul.f32 %v2354, %v2358
        %v2360 = vpack.c.bf16 %v2359, %v2359
        %s2361 = scalar_lea.vmem %s4, 16
        %v2362 = vld [vmem:[%s2361] sm:$0xf]
        %v2363 = vld [vmem:[%s2361 + $0x4] sm:$0xf]
        %v2364 = vld [vmem:[%s2361 + $0x8] sm:$0xf]
        %v2365 = vld [vmem:[%s2361 + $0xc] sm:$0xf]
        %v2370 = vunpack.c.l.b16 %v2362
        %v2371 = vunpack.c.l.b16 %v2363
        %v2372 = vunpack.c.l.b16 %v2364
        %v2373 = vunpack.c.l.b16 %v2365
        %v2374 = vpack.c.b16 %v2371, %v2370
        %v2375 = vpack.c.b16 %v2373, %v2372
        %v2379 = vsel %vm503, %v2360, 0
        %2381 = vmatprep.subr.bf16.mxu0 0
        %2382 = vmatpush1.bf16.msra.mxu0 %v2374
        %2383 = vmatprep.subr.bf16.mxu0 0
        %2384 = vmatpush1.bf16.msra.mxu0 %v2375
        %2385 = vmatprep.subr.bf16.mxu0 0
        %2386 = vmatpush1.bf16.msra.mxu0 0
        %2387 = vmatprep.subr.bf16.mxu0 0
        %2388 = vmatpush1.bf16.msra.mxu0 0
        %2389 = vmatprep.subr.bf16.mxu0 0
        %2390 = vmatpush1.bf16.msra.mxu0 0
        %2391 = vmatprep.subr.bf16.mxu0 0
        %2392 = vmatpush1.bf16.msra.mxu0 0
        %2393 = vmatprep.subr.bf16.mxu0 0
        %2394 = vmatpush1.bf16.msra.mxu0 0
        %2395 = vmatprep.subr.bf16.mxu0 0
        %2396 = vmatpush1.bf16.msra.mxu0 0
        %2397 = vmatprep.subr.bf16.mxu0 0
        %2398 = vmatpush1.bf16.msra.mxu0 0
        %2399 = vmatprep.subr.bf16.mxu0 0
        %2400 = vmatpush1.bf16.msra.mxu0 0
        %2401 = vmatprep.subr.bf16.mxu0 0
        %2402 = vmatpush1.bf16.msra.mxu0 0
        %2403 = vmatprep.subr.bf16.mxu0 0
        %2404 = vmatpush1.bf16.msra.mxu0 0
        %2405 = vmatprep.subr.bf16.mxu0 0
        %2406 = vmatpush1.bf16.msra.mxu0 0
        %2407 = vmatprep.subr.bf16.mxu0 0
        %2408 = vmatpush1.bf16.msra.mxu0 0
        %2409 = vmatprep.subr.bf16.mxu0 0
        %2410 = vmatpush1.bf16.msra.mxu0 0
        %2411 = vmatprep.subr.bf16.mxu0 0
        %2412 = vmatpush1.bf16.msra.mxu0 0
        %2413 = vmatprep.mubr.bf16.mxu0 0
        %2414 = vmatmul.mubr.bf16.gmra.mrb[0].mxu0 %v2379
        %v2415 = vpop.f32.mrb[0].mxu0
        %v2416 = vadd.f32 0.0, %v2415
        %v2417 = vpop.f32.mrb[0].mxu0
        %v2418 = vpop.f32.mrb[0].mxu0
        %v2419 = vpop.f32.mrb[0].mxu0
        %2420 = vdwg.mxu0
        %2422 = vrot.lane.b32.xlu0 %v2416, 120
        %v2423 = vpop.permute.xlu0 %2422
        %2424 = vrot.lane.b32.xlu0 %v2416, 112
        %v2425 = vpop.permute.xlu0 %2424
        %2426 = vrot.lane.b32.xlu0 %v2416, 104
        %v2427 = vpop.permute.xlu0 %2426
        %2428 = vrot.lane.b32.xlu0 %v2416, 96
        %v2429 = vpop.permute.xlu0 %2428
        %v2430 = vsel %vm586, %v2416, 0
        %v2432 = vsel %vm586, %v2429, 0
        %2434 = vmatprep.subr.mxu0 0.0
        %2435 = vmatpush1.xpose.msra.mxu0 %v2432
        %2436 = vmatprep.subr.mxu0 0.0
        %2437 = vmatpush1.xpose.msra.mxu0 0.0
        %2438 = vmatprep.subr.mxu0 0.0
        %2439 = vmatpush1.xpose.msra.mxu0 0.0
        %2440 = vmatprep.subr.mxu0 0.0
        %2441 = vmatpush1.xpose.msra.mxu0 0.0
        %2442 = vmatprep.subr.mxu0 0.0
        %2443 = vmatpush1.xpose.msra.mxu0 0.0
        %2444 = vmatprep.subr.mxu0 0.0
        %2445 = vmatpush1.xpose.msra.mxu0 0.0
        %2446 = vmatprep.subr.mxu0 0.0
        %2447 = vmatpush1.xpose.msra.mxu0 0.0
        %2448 = vmatprep.subr.mxu0 0.0
        %2449 = vmatpush1.xpose.msra.mxu0 0.0
        %2450 = vmatprep.subr.mxu0 0.0
        %2451 = vmatpush1.xpose.msra.mxu0 0.0
        %2452 = vmatprep.subr.mxu0 0.0
        %2453 = vmatpush1.xpose.msra.mxu0 0.0
        %2454 = vmatprep.subr.mxu0 0.0
        %2455 = vmatpush1.xpose.msra.mxu0 0.0
        %2456 = vmatprep.subr.mxu0 0.0
        %2457 = vmatpush1.xpose.msra.mxu0 0.0
        %2458 = vmatprep.subr.mxu0 0.0
        %2459 = vmatpush1.xpose.msra.mxu0 0.0
        %2460 = vmatprep.subr.mxu0 0.0
        %2461 = vmatpush1.xpose.msra.mxu0 0.0
        %2462 = vmatprep.subr.mxu0 0.0
        %2463 = vmatpush1.xpose.msra.mxu0 0.0
        %2464 = vmatprep.subr.mxu0 0.0
        %2465 = vmatpush1.xpose.msra.mxu0 0.0
        %2466 = vmatprep.subr.mxu0 0.0
        %2467 = vmatpush1.xpose.msra.mxu0 0.0
        %2468 = vmatprep.subr.mxu0 0.0
        %2469 = vmatpush1.xpose.msra.mxu0 0.0
        %2470 = vmatprep.subr.mxu0 0.0
        %2471 = vmatpush1.xpose.msra.mxu0 0.0
        %2472 = vmatprep.subr.mxu0 0.0
        %2473 = vmatpush1.xpose.msra.mxu0 0.0
        %2474 = vmatprep.subr.mxu0 0.0
        %2475 = vmatpush1.xpose.msra.mxu0 0.0
        %2476 = vmatprep.subr.mxu0 0.0
        %2477 = vmatpush1.xpose.msra.mxu0 0.0
        %2478 = vmatprep.subr.mxu0 0.0
        %2479 = vmatpush1.xpose.msra.mxu0 0.0
        %2480 = vmatprep.subr.mxu0 0.0
        %2481 = vmatpush1.xpose.msra.mxu0 0.0
        %2482 = vmatprep.subr.mxu0 0.0
        %2483 = vmatpush1.xpose.msra.mxu0 0.0
        %2484 = vmatprep.subr.mxu0 0.0
        %2485 = vmatpush1.xpose.msra.mxu0 0.0
        %2486 = vmatprep.subr.mxu0 0.0
        %2487 = vmatpush1.xpose.msra.mxu0 0.0
        %2488 = vmatprep.subr.mxu0 0.0
        %2489 = vmatpush1.xpose.msra.mxu0 0.0
        %2490 = vmatprep.subr.mxu0 0.0
        %2491 = vmatpush1.xpose.msra.mxu0 0.0
        %2492 = vmatprep.subr.mxu0 0.0
        %2493 = vmatpush1.xpose.msra.mxu0 0.0
        %2494 = vmatprep.subr.mxu0 0.0
        %2495 = vmatpush1.xpose.msra.mxu0 0.0
        %2496 = vmatprep.subr.mxu0 0.0
        %2497 = vmatpush1.xpose.msra.mxu0 0.0
        %2498 = vmatprep.mubr.f32.mxu0 0.0
        %2499 = vmatmul.mubr.f32.gmra.mrb[0].mxu0 %v2430
        %v2500 = vpop.f32.mrb[0].mxu0
        %v2501 = vadd.f32 %v495, %v2500
        %v2502 = vpop.f32.mrb[0].mxu0
        %2503 = vdwg.mxu0
        %2504 = vrot.lane.b32.xlu0 %v2423, 96
        %v2505 = vpop.permute.xlu0 %2504
        %v2506 = vsel %vm586, %v2423, 0
        %v2508 = vsel %vm586, %v2505, 0
        %2510 = vmatprep.subr.mxu0 0.0
        %2511 = vmatpush1.xpose.msra.mxu0 %v2508
        %2512 = vmatprep.subr.mxu0 0.0
        %2513 = vmatpush1.xpose.msra.mxu0 0.0
        %2514 = vmatprep.subr.mxu0 0.0
        %2515 = vmatpush1.xpose.msra.mxu0 0.0
        %2516 = vmatprep.subr.mxu0 0.0
        %2517 = vmatpush1.xpose.msra.mxu0 0.0
        %2518 = vmatprep.subr.mxu0 0.0
        %2519 = vmatpush1.xpose.msra.mxu0 0.0
        %2520 = vmatprep.subr.mxu0 0.0
        %2521 = vmatpush1.xpose.msra.mxu0 0.0
        %2522 = vmatprep.subr.mxu0 0.0
        %2523 = vmatpush1.xpose.msra.mxu0 0.0
        %2524 = vmatprep.subr.mxu0 0.0
        %2525 = vmatpush1.xpose.msra.mxu0 0.0
        %2526 = vmatprep.subr.mxu0 0.0
        %2527 = vmatpush1.xpose.msra.mxu0 0.0
        %2528 = vmatprep.subr.mxu0 0.0
        %2529 = vmatpush1.xpose.msra.mxu0 0.0
        %2530 = vmatprep.subr.mxu0 0.0
        %2531 = vmatpush1.xpose.msra.mxu0 0.0
        %2532 = vmatprep.subr.mxu0 0.0
        %2533 = vmatpush1.xpose.msra.mxu0 0.0
        %2534 = vmatprep.subr.mxu0 0.0
        %2535 = vmatpush1.xpose.msra.mxu0 0.0
        %2536 = vmatprep.subr.mxu0 0.0
        %2537 = vmatpush1.xpose.msra.mxu0 0.0
        %2538 = vmatprep.subr.mxu0 0.0
        %2539 = vmatpush1.xpose.msra.mxu0 0.0
        %2540 = vmatprep.subr.mxu0 0.0
        %2541 = vmatpush1.xpose.msra.mxu0 0.0
        %2542 = vmatprep.subr.mxu0 0.0
        %2543 = vmatpush1.xpose.msra.mxu0 0.0
        %2544 = vmatprep.subr.mxu0 0.0
        %2545 = vmatpush1.xpose.msra.mxu0 0.0
        %2546 = vmatprep.subr.mxu0 0.0
        %2547 = vmatpush1.xpose.msra.mxu0 0.0
        %2548 = vmatprep.subr.mxu0 0.0
        %2549 = vmatpush1.xpose.msra.mxu0 0.0
        %2550 = vmatprep.subr.mxu0 0.0
        %2551 = vmatpush1.xpose.msra.mxu0 0.0
        %2552 = vmatprep.subr.mxu0 0.0
        %2553 = vmatpush1.xpose.msra.mxu0 0.0
        %2554 = vmatprep.subr.mxu0 0.0
        %2555 = vmatpush1.xpose.msra.mxu0 0.0
        %2556 = vmatprep.subr.mxu0 0.0
        %2557 = vmatpush1.xpose.msra.mxu0 0.0
        %2558 = vmatprep.subr.mxu0 0.0
        %2559 = vmatpush1.xpose.msra.mxu0 0.0
        %2560 = vmatprep.subr.mxu0 0.0
        %2561 = vmatpush1.xpose.msra.mxu0 0.0
        %2562 = vmatprep.subr.mxu0 0.0
        %2563 = vmatpush1.xpose.msra.mxu0 0.0
        %2564 = vmatprep.subr.mxu0 0.0
        %2565 = vmatpush1.xpose.msra.mxu0 0.0
        %2566 = vmatprep.subr.mxu0 0.0
        %2567 = vmatpush1.xpose.msra.mxu0 0.0
        %2568 = vmatprep.subr.mxu0 0.0
        %2569 = vmatpush1.xpose.msra.mxu0 0.0
        %2570 = vmatprep.subr.mxu0 0.0
        %2571 = vmatpush1.xpose.msra.mxu0 0.0
        %2572 = vmatprep.subr.mxu0 0.0
        %2573 = vmatpush1.xpose.msra.mxu0 0.0
        %2574 = vmatprep.mubr.f32.mxu0 0.0
        %2575 = vmatmul.mubr.f32.gmra.mrb[0].mxu0 %v2506
        %v2576 = vpop.f32.mrb[0].mxu0
        %v2577 = vadd.f32 %v495, %v2576
        %v2578 = vpop.f32.mrb[0].mxu0
        %2579 = vdwg.mxu0
        %2580 = vrot.lane.b32.xlu0 %v2425, 96
        %v2581 = vpop.permute.xlu0 %2580
        %v2582 = vsel %vm586, %v2425, 0
        %v2584 = vsel %vm586, %v2581, 0
        %2586 = vmatprep.subr.mxu0 0.0
        %2587 = vmatpush1.xpose.msra.mxu0 %v2584
        %2588 = vmatprep.subr.mxu0 0.0
        %2589 = vmatpush1.xpose.msra.mxu0 0.0
        %2590 = vmatprep.subr.mxu0 0.0
        %2591 = vmatpush1.xpose.msra.mxu0 0.0
        %2592 = vmatprep.subr.mxu0 0.0
        %2593 = vmatpush1.xpose.msra.mxu0 0.0
        %2594 = vmatprep.subr.mxu0 0.0
        %2595 = vmatpush1.xpose.msra.mxu0 0.0
        %2596 = vmatprep.subr.mxu0 0.0
        %2597 = vmatpush1.xpose.msra.mxu0 0.0
        %2598 = vmatprep.subr.mxu0 0.0
        %2599 = vmatpush1.xpose.msra.mxu0 0.0
        %2600 = vmatprep.subr.mxu0 0.0
        %2601 = vmatpush1.xpose.msra.mxu0 0.0
        %2602 = vmatprep.subr.mxu0 0.0
        %2603 = vmatpush1.xpose.msra.mxu0 0.0
        %2604 = vmatprep.subr.mxu0 0.0
        %2605 = vmatpush1.xpose.msra.mxu0 0.0
        %2606 = vmatprep.subr.mxu0 0.0
        %2607 = vmatpush1.xpose.msra.mxu0 0.0
        %2608 = vmatprep.subr.mxu0 0.0
        %2609 = vmatpush1.xpose.msra.mxu0 0.0
        %2610 = vmatprep.subr.mxu0 0.0
        %2611 = vmatpush1.xpose.msra.mxu0 0.0
        %2612 = vmatprep.subr.mxu0 0.0
        %2613 = vmatpush1.xpose.msra.mxu0 0.0
        %2614 = vmatprep.subr.mxu0 0.0
        %2615 = vmatpush1.xpose.msra.mxu0 0.0
        %2616 = vmatprep.subr.mxu0 0.0
        %2617 = vmatpush1.xpose.msra.mxu0 0.0
        %2618 = vmatprep.subr.mxu0 0.0
        %2619 = vmatpush1.xpose.msra.mxu0 0.0
        %2620 = vmatprep.subr.mxu0 0.0
        %2621 = vmatpush1.xpose.msra.mxu0 0.0
        %2622 = vmatprep.subr.mxu0 0.0
        %2623 = vmatpush1.xpose.msra.mxu0 0.0
        %2624 = vmatprep.subr.mxu0 0.0
        %2625 = vmatpush1.xpose.msra.mxu0 0.0
        %2626 = vmatprep.subr.mxu0 0.0
        %2627 = vmatpush1.xpose.msra.mxu0 0.0
        %2628 = vmatprep.subr.mxu0 0.0
        %2629 = vmatpush1.xpose.msra.mxu0 0.0
        %2630 = vmatprep.subr.mxu0 0.0
        %2631 = vmatpush1.xpose.msra.mxu0 0.0
        %2632 = vmatprep.subr.mxu0 0.0
        %2633 = vmatpush1.xpose.msra.mxu0 0.0
        %2634 = vmatprep.subr.mxu0 0.0
        %2635 = vmatpush1.xpose.msra.mxu0 0.0
        %2636 = vmatprep.subr.mxu0 0.0
        %2637 = vmatpush1.xpose.msra.mxu0 0.0
        %2638 = vmatprep.subr.mxu0 0.0
        %2639 = vmatpush1.xpose.msra.mxu0 0.0
        %2640 = vmatprep.subr.mxu0 0.0
        %2641 = vmatpush1.xpose.msra.mxu0 0.0
        %2642 = vmatprep.subr.mxu0 0.0
        %2643 = vmatpush1.xpose.msra.mxu0 0.0
        %2644 = vmatprep.subr.mxu0 0.0
        %2645 = vmatpush1.xpose.msra.mxu0 0.0
        %2646 = vmatprep.subr.mxu0 0.0
        %2647 = vmatpush1.xpose.msra.mxu0 0.0
        %2648 = vmatprep.subr.mxu0 0.0
        %2649 = vmatpush1.xpose.msra.mxu0 0.0
        %2650 = vmatprep.mubr.f32.mxu0 0.0
        %2651 = vmatmul.mubr.f32.gmra.mrb[0].mxu0 %v2582
        %v2652 = vpop.f32.mrb[0].mxu0
        %v2653 = vadd.f32 %v495, %v2652
        %v2654 = vpop.f32.mrb[0].mxu0
        %2655 = vdwg.mxu0
        %2656 = vrot.lane.b32.xlu0 %v2427, 96
        %v2657 = vpop.permute.xlu0 %2656
        %v2658 = vsel %vm586, %v2427, 0
        %v2660 = vsel %vm586, %v2657, 0
        %2662 = vmatprep.subr.mxu0 0.0
        %2663 = vmatpush1.xpose.msra.mxu0 %v2660
        %2664 = vmatprep.subr.mxu0 0.0
        %2665 = vmatpush1.xpose.msra.mxu0 0.0
        %2666 = vmatprep.subr.mxu0 0.0
        %2667 = vmatpush1.xpose.msra.mxu0 0.0
        %2668 = vmatprep.subr.mxu0 0.0
        %2669 = vmatpush1.xpose.msra.mxu0 0.0
        %2670 = vmatprep.subr.mxu0 0.0
        %2671 = vmatpush1.xpose.msra.mxu0 0.0
        %2672 = vmatprep.subr.mxu0 0.0
        %2673 = vmatpush1.xpose.msra.mxu0 0.0
        %2674 = vmatprep.subr.mxu0 0.0
        %2675 = vmatpush1.xpose.msra.mxu0 0.0
        %2676 = vmatprep.subr.mxu0 0.0
        %2677 = vmatpush1.xpose.msra.mxu0 0.0
        %2678 = vmatprep.subr.mxu0 0.0
        %2679 = vmatpush1.xpose.msra.mxu0 0.0
        %2680 = vmatprep.subr.mxu0 0.0
        %2681 = vmatpush1.xpose.msra.mxu0 0.0
        %2682 = vmatprep.subr.mxu0 0.0
        %2683 = vmatpush1.xpose.msra.mxu0 0.0
        %2684 = vmatprep.subr.mxu0 0.0
        %2685 = vmatpush1.xpose.msra.mxu0 0.0
        %2686 = vmatprep.subr.mxu0 0.0
        %2687 = vmatpush1.xpose.msra.mxu0 0.0
        %2688 = vmatprep.subr.mxu0 0.0
        %2689 = vmatpush1.xpose.msra.mxu0 0.0
        %2690 = vmatprep.subr.mxu0 0.0
        %2691 = vmatpush1.xpose.msra.mxu0 0.0
        %2692 = vmatprep.subr.mxu0 0.0
        %2693 = vmatpush1.xpose.msra.mxu0 0.0
        %2694 = vmatprep.subr.mxu0 0.0
        %2695 = vmatpush1.xpose.msra.mxu0 0.0
        %2696 = vmatprep.subr.mxu0 0.0
        %2697 = vmatpush1.xpose.msra.mxu0 0.0
        %2698 = vmatprep.subr.mxu0 0.0
        %2699 = vmatpush1.xpose.msra.mxu0 0.0
        %2700 = vmatprep.subr.mxu0 0.0
        %2701 = vmatpush1.xpose.msra.mxu0 0.0
        %2702 = vmatprep.subr.mxu0 0.0
        %2703 = vmatpush1.xpose.msra.mxu0 0.0
        %2704 = vmatprep.subr.mxu0 0.0
        %2705 = vmatpush1.xpose.msra.mxu0 0.0
        %2706 = vmatprep.subr.mxu0 0.0
        %2707 = vmatpush1.xpose.msra.mxu0 0.0
        %2708 = vmatprep.subr.mxu0 0.0
        %2709 = vmatpush1.xpose.msra.mxu0 0.0
        %2710 = vmatprep.subr.mxu0 0.0
        %2711 = vmatpush1.xpose.msra.mxu0 0.0
        %2712 = vmatprep.subr.mxu0 0.0
        %2713 = vmatpush1.xpose.msra.mxu0 0.0
        %2714 = vmatprep.subr.mxu0 0.0
        %2715 = vmatpush1.xpose.msra.mxu0 0.0
        %2716 = vmatprep.subr.mxu0 0.0
        %2717 = vmatpush1.xpose.msra.mxu0 0.0
        %2718 = vmatprep.subr.mxu0 0.0
        %2719 = vmatpush1.xpose.msra.mxu0 0.0
        %2720 = vmatprep.subr.mxu0 0.0
        %2721 = vmatpush1.xpose.msra.mxu0 0.0
        %2722 = vmatprep.subr.mxu0 0.0
        %2723 = vmatpush1.xpose.msra.mxu0 0.0
        %2724 = vmatprep.subr.mxu0 0.0
        %2725 = vmatpush1.xpose.msra.mxu0 0.0
        %2726 = vmatprep.mubr.f32.mxu0 0.0
        %2727 = vmatmul.mubr.f32.gmra.mrb[0].mxu0 %v2658
        %v2728 = vpop.f32.mrb[0].mxu0
        %v2729 = vadd.f32 %v495, %v2728
        %v2730 = vpop.f32.mrb[0].mxu0
        %2731 = vdwg.mxu0
        %v2732 = vsel %vm586, %v2501, -inf
        %2733 = vmax.xlane.f32.xlu0 %v2732
        %v2734 = vpop.xlane.xlu0 %2733
        %v2735 = vsel %vm586, %v2577, -inf
        %2736 = vmax.xlane.f32.xlu0 %v2735
        %v2737 = vpop.xlane.xlu0 %2736
        %v2738 = vsel %vm586, %v2653, -inf
        %2739 = vmax.xlane.f32.xlu0 %v2738
        %v2740 = vpop.xlane.xlu0 %2739
        %v2741 = vsel %vm586, %v2729, -inf
        %2742 = vmax.xlane.f32.xlu0 %v2741
        %v2743 = vpop.xlane.xlu0 %2742
        %v2744 = vsub.f32 %v2501, %v2734
        %v2745 = vsub.f32 %v2577, %v2737
        %v2746 = vsub.f32 %v2653, %v2740
        %v2747 = vsub.f32 %v2729, %v2743
        %v2748 = vmul.f32 %v2744, 1.442695
        %v2749 = vpow.pop %v2748
        %v2750 = vmul.f32 %v2745, 1.442695
        %v2751 = vpow.pop %v2750
        %v2752 = vmul.f32 %v2746, 1.442695
        %v2753 = vpow.pop %v2752
        %v2754 = vmul.f32 %v2747, 1.442695
        %v2755 = vpow.pop %v2754
        %v2756 = vsel %vm586, %v2749, 0.0
        %2757 = vadd.xlane.f32.xlu0 %v2756
        %v2758 = vpop.xlane.xlu0 %2757
        %v2759 = vsel %vm586, %v2751, 0.0
        %2760 = vadd.xlane.f32.xlu0 %v2759
        %v2761 = vpop.xlane.xlu0 %2760
        %v2762 = vsel %vm586, %v2753, 0.0
        %2763 = vadd.xlane.f32.xlu0 %v2762
        %v2764 = vpop.xlane.xlu0 %2763
        %v2765 = vsel %vm586, %v2755, 0.0
        %2766 = vadd.xlane.f32.xlu0 %v2765
        %v2767 = vpop.xlane.xlu0 %2766
        %v2768 = vrcp.pop %v2758
        %v2769 = vrcp.pop %v2761
        %v2770 = vrcp.pop %v2764
        %v2771 = vrcp.pop %v2767
        %v2772 = vmul.f32 %v2749, %v2768
        %v2773 = vmul.f32 %v2751, %v2769
        %v2774 = vmul.f32 %v2753, %v2770
        %v2775 = vmul.f32 %v2755, %v2771
        %2776 = vrot.lane.b32.xlu0 %v2416, 64
        %v2777 = vpop.permute.xlu0 %2776
        %v2780 = vsel %vm586, %v2772, 0
        %2782 = vmatprep.subr.mxu0 0.0
        %2783 = vmatpush1.msra.mxu0 %v2777
        %2784 = vmatprep.subr.mxu0 0.0
        %2785 = vmatpush1.msra.mxu0 0.0
        %2786 = vmatprep.subr.mxu0 0.0
        %2787 = vmatpush1.msra.mxu0 0.0
        %2788 = vmatprep.subr.mxu0 0.0
        %2789 = vmatpush1.msra.mxu0 0.0
        %2790 = vmatprep.subr.mxu0 0.0
        %2791 = vmatpush1.msra.mxu0 0.0
        %2792 = vmatprep.subr.mxu0 0.0
        %2793 = vmatpush1.msra.mxu0 0.0
        %2794 = vmatprep.subr.mxu0 0.0
        %2795 = vmatpush1.msra.mxu0 0.0
        %2796 = vmatprep.subr.mxu0 0.0
        %2797 = vmatpush1.msra.mxu0 0.0
        %2798 = vmatprep.subr.mxu0 0.0
        %2799 = vmatpush1.msra.mxu0 0.0
        %2800 = vmatprep.subr.mxu0 0.0
        %2801 = vmatpush1.msra.mxu0 0.0
        %2802 = vmatprep.subr.mxu0 0.0
        %2803 = vmatpush1.msra.mxu0 0.0
        %2804 = vmatprep.subr.mxu0 0.0
        %2805 = vmatpush1.msra.mxu0 0.0
        %2806 = vmatprep.subr.mxu0 0.0
        %2807 = vmatpush1.msra.mxu0 0.0
        %2808 = vmatprep.subr.mxu0 0.0
        %2809 = vmatpush1.msra.mxu0 0.0
        %2810 = vmatprep.subr.mxu0 0.0
        %2811 = vmatpush1.msra.mxu0 0.0
        %2812 = vmatprep.subr.mxu0 0.0
        %2813 = vmatpush1.msra.mxu0 0.0
        %2814 = vmatprep.subr.mxu0 0.0
        %2815 = vmatpush1.msra.mxu0 0.0
        %2816 = vmatprep.subr.mxu0 0.0
        %2817 = vmatpush1.msra.mxu0 0.0
        %2818 = vmatprep.subr.mxu0 0.0
        %2819 = vmatpush1.msra.mxu0 0.0
        %2820 = vmatprep.subr.mxu0 0.0
        %2821 = vmatpush1.msra.mxu0 0.0
        %2822 = vmatprep.subr.mxu0 0.0
        %2823 = vmatpush1.msra.mxu0 0.0
        %2824 = vmatprep.subr.mxu0 0.0
        %2825 = vmatpush1.msra.mxu0 0.0
        %2826 = vmatprep.subr.mxu0 0.0
        %2827 = vmatpush1.msra.mxu0 0.0
        %2828 = vmatprep.subr.mxu0 0.0
        %2829 = vmatpush1.msra.mxu0 0.0
        %2830 = vmatprep.subr.mxu0 0.0
        %2831 = vmatpush1.msra.mxu0 0.0
        %2832 = vmatprep.subr.mxu0 0.0
        %2833 = vmatpush1.msra.mxu0 0.0
        %2834 = vmatprep.subr.mxu0 0.0
        %2835 = vmatpush1.msra.mxu0 0.0
        %2836 = vmatprep.subr.mxu0 0.0
        %2837 = vmatpush1.msra.mxu0 0.0
        %2838 = vmatprep.subr.mxu0 0.0
        %2839 = vmatpush1.msra.mxu0 0.0
        %2840 = vmatprep.subr.mxu0 0.0
        %2841 = vmatpush1.msra.mxu0 0.0
        %2842 = vmatprep.subr.mxu0 0.0
        %2843 = vmatpush1.msra.mxu0 0.0
        %2844 = vmatprep.subr.mxu0 0.0
        %2845 = vmatpush1.msra.mxu0 0.0
        %2846 = vmatprep.mubr.f32.mxu0 0.0
        %2847 = vmatmul.mubr.f32.gmra.mrb[0].mxu0 %v2780
        %v2848 = vpop.f32.mrb[0].mxu0
        %v2849 = vadd.f32 0.0, %v2848
        %v2850 = vpop.f32.mrb[0].mxu0
        %2851 = vdwg.mxu0
        %2852 = vrot.lane.b32.xlu0 %v2423, 64
        %v2853 = vpop.permute.xlu0 %2852
        %v2856 = vsel %vm586, %v2773, 0
        %2858 = vmatprep.subr.mxu0 0.0
        %2859 = vmatpush1.msra.mxu0 %v2853
        %2860 = vmatprep.subr.mxu0 0.0
        %2861 = vmatpush1.msra.mxu0 0.0
        %2862 = vmatprep.subr.mxu0 0.0
        %2863 = vmatpush1.msra.mxu0 0.0
        %2864 = vmatprep.subr.mxu0 0.0
        %2865 = vmatpush1.msra.mxu0 0.0
        %2866 = vmatprep.subr.mxu0 0.0
        %2867 = vmatpush1.msra.mxu0 0.0
        %2868 = vmatprep.subr.mxu0 0.0
        %2869 = vmatpush1.msra.mxu0 0.0
        %2870 = vmatprep.subr.mxu0 0.0
        %2871 = vmatpush1.msra.mxu0 0.0
        %2872 = vmatprep.subr.mxu0 0.0
        %2873 = vmatpush1.msra.mxu0 0.0
        %2874 = vmatprep.subr.mxu0 0.0
        %2875 = vmatpush1.msra.mxu0 0.0
        %2876 = vmatprep.subr.mxu0 0.0
        %2877 = vmatpush1.msra.mxu0 0.0
        %2878 = vmatprep.subr.mxu0 0.0
        %2879 = vmatpush1.msra.mxu0 0.0
        %2880 = vmatprep.subr.mxu0 0.0
        %2881 = vmatpush1.msra.mxu0 0.0
        %2882 = vmatprep.subr.mxu0 0.0
        %2883 = vmatpush1.msra.mxu0 0.0
        %2884 = vmatprep.subr.mxu0 0.0
        %2885 = vmatpush1.msra.mxu0 0.0
        %2886 = vmatprep.subr.mxu0 0.0
        %2887 = vmatpush1.msra.mxu0 0.0
        %2888 = vmatprep.subr.mxu0 0.0
        %2889 = vmatpush1.msra.mxu0 0.0
        %2890 = vmatprep.subr.mxu0 0.0
        %2891 = vmatpush1.msra.mxu0 0.0
        %2892 = vmatprep.subr.mxu0 0.0
        %2893 = vmatpush1.msra.mxu0 0.0
        %2894 = vmatprep.subr.mxu0 0.0
        %2895 = vmatpush1.msra.mxu0 0.0
        %2896 = vmatprep.subr.mxu0 0.0
        %2897 = vmatpush1.msra.mxu0 0.0
        %2898 = vmatprep.subr.mxu0 0.0
        %2899 = vmatpush1.msra.mxu0 0.0
        %2900 = vmatprep.subr.mxu0 0.0
        %2901 = vmatpush1.msra.mxu0 0.0
        %2902 = vmatprep.subr.mxu0 0.0
        %2903 = vmatpush1.msra.mxu0 0.0
        %2904 = vmatprep.subr.mxu0 0.0
        %2905 = vmatpush1.msra.mxu0 0.0
        %2906 = vmatprep.subr.mxu0 0.0
        %2907 = vmatpush1.msra.mxu0 0.0
        %2908 = vmatprep.subr.mxu0 0.0
        %2909 = vmatpush1.msra.mxu0 0.0
        %2910 = vmatprep.subr.mxu0 0.0
        %2911 = vmatpush1.msra.mxu0 0.0
        %2912 = vmatprep.subr.mxu0 0.0
        %2913 = vmatpush1.msra.mxu0 0.0
        %2914 = vmatprep.subr.mxu0 0.0
        %2915 = vmatpush1.msra.mxu0 0.0
        %2916 = vmatprep.subr.mxu0 0.0
        %2917 = vmatpush1.msra.mxu0 0.0
        %2918 = vmatprep.subr.mxu0 0.0
        %2919 = vmatpush1.msra.mxu0 0.0
        %2920 = vmatprep.subr.mxu0 0.0
        %2921 = vmatpush1.msra.mxu0 0.0
        %2922 = vmatprep.mubr.f32.mxu0 0.0
        %2923 = vmatmul.mubr.f32.gmra.mrb[0].mxu0 %v2856
        %v2924 = vpop.f32.mrb[0].mxu0
        %v2925 = vadd.f32 0.0, %v2924
        %v2926 = vpop.f32.mrb[0].mxu0
        %2927 = vdwg.mxu0
        %2928 = vrot.lane.b32.xlu0 %v2425, 64
        %v2929 = vpop.permute.xlu0 %2928
        %v2932 = vsel %vm586, %v2774, 0
        %2934 = vmatprep.subr.mxu0 0.0
        %2935 = vmatpush1.msra.mxu0 %v2929
        %2936 = vmatprep.subr.mxu0 0.0
        %2937 = vmatpush1.msra.mxu0 0.0
        %2938 = vmatprep.subr.mxu0 0.0
        %2939 = vmatpush1.msra.mxu0 0.0
        %2940 = vmatprep.subr.mxu0 0.0
        %2941 = vmatpush1.msra.mxu0 0.0
        %2942 = vmatprep.subr.mxu0 0.0
        %2943 = vmatpush1.msra.mxu0 0.0
        %2944 = vmatprep.subr.mxu0 0.0
        %2945 = vmatpush1.msra.mxu0 0.0
        %2946 = vmatprep.subr.mxu0 0.0
        %2947 = vmatpush1.msra.mxu0 0.0
        %2948 = vmatprep.subr.mxu0 0.0
        %2949 = vmatpush1.msra.mxu0 0.0
        %2950 = vmatprep.subr.mxu0 0.0
        %2951 = vmatpush1.msra.mxu0 0.0
        %2952 = vmatprep.subr.mxu0 0.0
        %2953 = vmatpush1.msra.mxu0 0.0
        %2954 = vmatprep.subr.mxu0 0.0
        %2955 = vmatpush1.msra.mxu0 0.0
        %2956 = vmatprep.subr.mxu0 0.0
        %2957 = vmatpush1.msra.mxu0 0.0
        %2958 = vmatprep.subr.mxu0 0.0
        %2959 = vmatpush1.msra.mxu0 0.0
        %2960 = vmatprep.subr.mxu0 0.0
        %2961 = vmatpush1.msra.mxu0 0.0
        %2962 = vmatprep.subr.mxu0 0.0
        %2963 = vmatpush1.msra.mxu0 0.0
        %2964 = vmatprep.subr.mxu0 0.0
        %2965 = vmatpush1.msra.mxu0 0.0
        %2966 = vmatprep.subr.mxu0 0.0
        %2967 = vmatpush1.msra.mxu0 0.0
        %2968 = vmatprep.subr.mxu0 0.0
        %2969 = vmatpush1.msra.mxu0 0.0
        %2970 = vmatprep.subr.mxu0 0.0
        %2971 = vmatpush1.msra.mxu0 0.0
        %2972 = vmatprep.subr.mxu0 0.0
        %2973 = vmatpush1.msra.mxu0 0.0
        %2974 = vmatprep.subr.mxu0 0.0
        %2975 = vmatpush1.msra.mxu0 0.0
        %2976 = vmatprep.subr.mxu0 0.0
        %2977 = vmatpush1.msra.mxu0 0.0
        %2978 = vmatprep.subr.mxu0 0.0
        %2979 = vmatpush1.msra.mxu0 0.0
        %2980 = vmatprep.subr.mxu0 0.0
        %2981 = vmatpush1.msra.mxu0 0.0
        %2982 = vmatprep.subr.mxu0 0.0
        %2983 = vmatpush1.msra.mxu0 0.0
        %2984 = vmatprep.subr.mxu0 0.0
        %2985 = vmatpush1.msra.mxu0 0.0
        %2986 = vmatprep.subr.mxu0 0.0
        %2987 = vmatpush1.msra.mxu0 0.0
        %2988 = vmatprep.subr.mxu0 0.0
        %2989 = vmatpush1.msra.mxu0 0.0
        %2990 = vmatprep.subr.mxu0 0.0
        %2991 = vmatpush1.msra.mxu0 0.0
        %2992 = vmatprep.subr.mxu0 0.0
        %2993 = vmatpush1.msra.mxu0 0.0
        %2994 = vmatprep.subr.mxu0 0.0
        %2995 = vmatpush1.msra.mxu0 0.0
        %2996 = vmatprep.subr.mxu0 0.0
        %2997 = vmatpush1.msra.mxu0 0.0
        %2998 = vmatprep.mubr.f32.mxu0 0.0
        %2999 = vmatmul.mubr.f32.gmra.mrb[0].mxu0 %v2932
        %v3000 = vpop.f32.mrb[0].mxu0
        %v3001 = vadd.f32 0.0, %v3000
        %v3002 = vpop.f32.mrb[0].mxu0
        %3003 = vdwg.mxu0
        %3004 = vrot.lane.b32.xlu0 %v2427, 64
        %v3005 = vpop.permute.xlu0 %3004
        %v3008 = vsel %vm586, %v2775, 0
        %3010 = vmatprep.subr.mxu0 0.0
        %3011 = vmatpush1.msra.mxu0 %v3005
        %3012 = vmatprep.subr.mxu0 0.0
        %3013 = vmatpush1.msra.mxu0 0.0
        %3014 = vmatprep.subr.mxu0 0.0
        %3015 = vmatpush1.msra.mxu0 0.0
        %3016 = vmatprep.subr.mxu0 0.0
        %3017 = vmatpush1.msra.mxu0 0.0
        %3018 = vmatprep.subr.mxu0 0.0
        %3019 = vmatpush1.msra.mxu0 0.0
        %3020 = vmatprep.subr.mxu0 0.0
        %3021 = vmatpush1.msra.mxu0 0.0
        %3022 = vmatprep.subr.mxu0 0.0
        %3023 = vmatpush1.msra.mxu0 0.0
        %3024 = vmatprep.subr.mxu0 0.0
        %3025 = vmatpush1.msra.mxu0 0.0
        %3026 = vmatprep.subr.mxu0 0.0
        %3027 = vmatpush1.msra.mxu0 0.0
        %3028 = vmatprep.subr.mxu0 0.0
        %3029 = vmatpush1.msra.mxu0 0.0
        %3030 = vmatprep.subr.mxu0 0.0
        %3031 = vmatpush1.msra.mxu0 0.0
        %3032 = vmatprep.subr.mxu0 0.0
        %3033 = vmatpush1.msra.mxu0 0.0
        %3034 = vmatprep.subr.mxu0 0.0
        %3035 = vmatpush1.msra.mxu0 0.0
        %3036 = vmatprep.subr.mxu0 0.0
        %3037 = vmatpush1.msra.mxu0 0.0
        %3038 = vmatprep.subr.mxu0 0.0
        %3039 = vmatpush1.msra.mxu0 0.0
        %3040 = vmatprep.subr.mxu0 0.0
        %3041 = vmatpush1.msra.mxu0 0.0
        %3042 = vmatprep.subr.mxu0 0.0
        %3043 = vmatpush1.msra.mxu0 0.0
        %3044 = vmatprep.subr.mxu0 0.0
        %3045 = vmatpush1.msra.mxu0 0.0
        %3046 = vmatprep.subr.mxu0 0.0
        %3047 = vmatpush1.msra.mxu0 0.0
        %3048 = vmatprep.subr.mxu0 0.0
        %3049 = vmatpush1.msra.mxu0 0.0
        %3050 = vmatprep.subr.mxu0 0.0
        %3051 = vmatpush1.msra.mxu0 0.0
        %3052 = vmatprep.subr.mxu0 0.0
        %3053 = vmatpush1.msra.mxu0 0.0
        %3054 = vmatprep.subr.mxu0 0.0
        %3055 = vmatpush1.msra.mxu0 0.0
        %3056 = vmatprep.subr.mxu0 0.0
        %3057 = vmatpush1.msra.mxu0 0.0
        %3058 = vmatprep.subr.mxu0 0.0
        %3059 = vmatpush1.msra.mxu0 0.0
        %3060 = vmatprep.subr.mxu0 0.0
        %3061 = vmatpush1.msra.mxu0 0.0
        %3062 = vmatprep.subr.mxu0 0.0
        %3063 = vmatpush1.msra.mxu0 0.0
        %3064 = vmatprep.subr.mxu0 0.0
        %3065 = vmatpush1.msra.mxu0 0.0
        %3066 = vmatprep.subr.mxu0 0.0
        %3067 = vmatpush1.msra.mxu0 0.0
        %3068 = vmatprep.subr.mxu0 0.0
        %3069 = vmatpush1.msra.mxu0 0.0
        %3070 = vmatprep.subr.mxu0 0.0
        %3071 = vmatpush1.msra.mxu0 0.0
        %3072 = vmatprep.subr.mxu0 0.0
        %3073 = vmatpush1.msra.mxu0 0.0
        %3074 = vmatprep.mubr.f32.mxu0 0.0
        %3075 = vmatmul.mubr.f32.gmra.mrb[0].mxu0 %v3008
        %v3076 = vpop.f32.mrb[0].mxu0
        %v3077 = vadd.f32 0.0, %v3076
        %v3078 = vpop.f32.mrb[0].mxu0
        %3079 = vdwg.mxu0
        %3081 = vrot.lane.b32.xlu0 %v2925, 8
        %v3082 = vpop.permute.xlu0 %3081
        %3085 = vrot.lane.b32.xlu0 %v3001, 16
        %v3086 = vpop.permute.xlu0 %3085
        %3089 = vrot.lane.b32.xlu0 %v3077, 24
        %v3090 = vpop.permute.xlu0 %3089
        %v3092 = vsel %vm586, %v2849, %v3082
        %v3093 = vsel %vm1250, %v3092, %v3086
        %v3094 = vsel %vm1252, %v3093, %v3090
        %v3095 = vpack.c.bf16 %v3094, %v3094
        %s3096 = scalar_lea.vmem %s5, 16
        %v3097 = vld [vmem:[%s3096] sm:$0xf]
        %v3098 = vld [vmem:[%s3096 + $0x4] sm:$0xf]
        %v3099 = vld [vmem:[%s3096 + $0x8] sm:$0xf]
        %v3100 = vld [vmem:[%s3096 + $0xc] sm:$0xf]
        %v3105 = vunpack.c.l.b16 %v3097
        %v3106 = vunpack.c.l.b16 %v3098
        %v3107 = vunpack.c.l.b16 %v3099
        %v3108 = vunpack.c.l.b16 %v3100
        %v3109 = vpack.c.b16 %v3106, %v3105
        %v3110 = vpack.c.b16 %v3108, %v3107
        %v3114 = vsel %vm503, %v3095, 0
        %3116 = vmatprep.subr.bf16.mxu0 0
        %3117 = vmatpush1.bf16.msra.mxu0 %v3109
        %3118 = vmatprep.subr.bf16.mxu0 0
        %3119 = vmatpush1.bf16.msra.mxu0 %v3110
        %3120 = vmatprep.subr.bf16.mxu0 0
        %3121 = vmatpush1.bf16.msra.mxu0 0
        %3122 = vmatprep.subr.bf16.mxu0 0
        %3123 = vmatpush1.bf16.msra.mxu0 0
        %3124 = vmatprep.subr.bf16.mxu0 0
        %3125 = vmatpush1.bf16.msra.mxu0 0
        %3126 = vmatprep.subr.bf16.mxu0 0
        %3127 = vmatpush1.bf16.msra.mxu0 0
        %3128 = vmatprep.subr.bf16.mxu0 0
        %3129 = vmatpush1.bf16.msra.mxu0 0
        %3130 = vmatprep.subr.bf16.mxu0 0
        %3131 = vmatpush1.bf16.msra.mxu0 0
        %3132 = vmatprep.subr.bf16.mxu0 0
        %3133 = vmatpush1.bf16.msra.mxu0 0
        %3134 = vmatprep.subr.bf16.mxu0 0
        %3135 = vmatpush1.bf16.msra.mxu0 0
        %3136 = vmatprep.subr.bf16.mxu0 0
        %3137 = vmatpush1.bf16.msra.mxu0 0
        %3138 = vmatprep.subr.bf16.mxu0 0
        %3139 = vmatpush1.bf16.msra.mxu0 0
        %3140 = vmatprep.subr.bf16.mxu0 0
        %3141 = vmatpush1.bf16.msra.mxu0 0
        %3142 = vmatprep.subr.bf16.mxu0 0
        %3143 = vmatpush1.bf16.msra.mxu0 0
        %3144 = vmatprep.subr.bf16.mxu0 0
        %3145 = vmatpush1.bf16.msra.mxu0 0
        %3146 = vmatprep.subr.bf16.mxu0 0
        %3147 = vmatpush1.bf16.msra.mxu0 0
        %3148 = vmatprep.mubr.bf16.mxu0 0
        %3149 = vmatmul.mubr.bf16.gmra.mrb[0].mxu0 %v3114
        %v3150 = vpop.f32.mrb[0].mxu0
        %v3151 = vadd.f32 0.0, %v3150
        %v3152 = vpop.f32.mrb[0].mxu0
        %v3153 = vpop.f32.mrb[0].mxu0
        %v3154 = vpop.f32.mrb[0].mxu0
        %3155 = vdwg.mxu0
        %v3156 = vadd.f32 %v2336, %v3151
        %v3157 = vmul.f32 %v3156, %v3156
        %v3158 = vsel %vm503, %v3157, 0.0
        %3159 = vadd.xlane.f32.xlu0 %v3158
        %v3160 = vpop.xlane.xlu0 %3159
        %v3161 = vmul.f32 %v3160, %v507
        %v3162 = vadd.f32 %v3161, 1e-06
        %v3163 = vrsqrt.pop %v3162
        %v3164 = vmul.f32 %v3156, %v3163
        %v3165 = vlaneseq
        %v3166 = vshrl.u32 %v3165, 7
        %v3167 = vsub.s32 1, %v3166
        %v3168 = vrot.slane %v2346, %v3167
        %v3169 = vmul.f32 %v3164, %v3168
        %v3170 = vpack.c.bf16 %v3169, %v3169
        %s3171 = scalar_lea.vmem %s6, 16
        %v3172 = vld [vmem:[%s3171] sm:$0xf]
        %v3173 = vld [vmem:[%s3171 + $0x4] sm:$0xf]
        %v3174 = vld [vmem:[%s3171 + $0x8] sm:$0xf]
        %v3175 = vld [vmem:[%s3171 + $0xc] sm:$0xf]
        %v3180 = vunpack.c.l.b16 %v3172
        %v3181 = vunpack.c.l.b16 %v3173
        %v3182 = vunpack.c.l.b16 %v3174
        %v3183 = vunpack.c.l.b16 %v3175
        %v3184 = vpack.c.b16 %v3181, %v3180
        %v3185 = vpack.c.b16 %v3183, %v3182
        %v3189 = vsel %vm503, %v3170, 0
        %3191 = vmatprep.subr.bf16.mxu0 0
        %3192 = vmatpush1.bf16.msra.mxu0 %v3184
        %3193 = vmatprep.subr.bf16.mxu0 0
        %3194 = vmatpush1.bf16.msra.mxu0 %v3185
        %3195 = vmatprep.subr.bf16.mxu0 0
        %3196 = vmatpush1.bf16.msra.mxu0 0
        %3197 = vmatprep.subr.bf16.mxu0 0
        %3198 = vmatpush1.bf16.msra.mxu0 0
        %3199 = vmatprep.subr.bf16.mxu0 0
        %3200 = vmatpush1.bf16.msra.mxu0 0
        %3201 = vmatprep.subr.bf16.mxu0 0
        %3202 = vmatpush1.bf16.msra.mxu0 0
        %3203 = vmatprep.subr.bf16.mxu0 0
        %3204 = vmatpush1.bf16.msra.mxu0 0
        %3205 = vmatprep.subr.bf16.mxu0 0
        %3206 = vmatpush1.bf16.msra.mxu0 0
        %3207 = vmatprep.subr.bf16.mxu0 0
        %3208 = vmatpush1.bf16.msra.mxu0 0
        %3209 = vmatprep.subr.bf16.mxu0 0
        %3210 = vmatpush1.bf16.msra.mxu0 0
        %3211 = vmatprep.subr.bf16.mxu0 0
        %3212 = vmatpush1.bf16.msra.mxu0 0
        %3213 = vmatprep.subr.bf16.mxu0 0
        %3214 = vmatpush1.bf16.msra.mxu0 0
        %3215 = vmatprep.subr.bf16.mxu0 0
        %3216 = vmatpush1.bf16.msra.mxu0 0
        %3217 = vmatprep.subr.bf16.mxu0 0
        %3218 = vmatpush1.bf16.msra.mxu0 0
        %3219 = vmatprep.subr.bf16.mxu0 0
        %3220 = vmatpush1.bf16.msra.mxu0 0
        %3221 = vmatprep.subr.bf16.mxu0 0
        %3222 = vmatpush1.bf16.msra.mxu0 0
        %3223 = vmatprep.mubr.bf16.mxu0 0
        %3224 = vmatmul.mubr.bf16.gmra.mrb[0].mxu0 %v3189
        %v3225 = vpop.f32.mrb[0].mxu0
        %v3226 = vadd.f32 0.0, %v3225
        %v3227 = vpop.f32.mrb[0].mxu0
        %v3228 = vpop.f32.mrb[0].mxu0
        %v3229 = vpop.f32.mrb[0].mxu0
        %3230 = vdwg.mxu0
        %s3231 = scalar_lea.vmem %s7, 16
        %v3232 = vld [vmem:[%s3231] sm:$0xf]
        %v3233 = vld [vmem:[%s3231 + $0x4] sm:$0xf]
        %v3234 = vld [vmem:[%s3231 + $0x8] sm:$0xf]
        %v3235 = vld [vmem:[%s3231 + $0xc] sm:$0xf]
        %v3240 = vunpack.c.l.b16 %v3232
        %v3241 = vunpack.c.l.b16 %v3233
        %v3242 = vunpack.c.l.b16 %v3234
        %v3243 = vunpack.c.l.b16 %v3235
        %v3244 = vpack.c.b16 %v3241, %v3240
        %v3245 = vpack.c.b16 %v3243, %v3242
        %3248 = vmatprep.subr.bf16.mxu0 0
        %3249 = vmatpush1.bf16.msra.mxu0 %v3244
        %3250 = vmatprep.subr.bf16.mxu0 0
        %3251 = vmatpush1.bf16.msra.mxu0 %v3245
        %3252 = vmatprep.subr.bf16.mxu0 0
        %3253 = vmatpush1.bf16.msra.mxu0 0
        %3254 = vmatprep.subr.bf16.mxu0 0
        %3255 = vmatpush1.bf16.msra.mxu0 0
        %3256 = vmatprep.subr.bf16.mxu0 0
        %3257 = vmatpush1.bf16.msra.mxu0 0
        %3258 = vmatprep.subr.bf16.mxu0 0
        %3259 = vmatpush1.bf16.msra.mxu0 0
        %3260 = vmatprep.subr.bf16.mxu0 0
        %3261 = vmatpush1.bf16.msra.mxu0 0
        %3262 = vmatprep.subr.bf16.mxu0 0
        %3263 = vmatpush1.bf16.msra.mxu0 0
        %3264 = vmatprep.subr.bf16.mxu0 0
        %3265 = vmatpush1.bf16.msra.mxu0 0
        %3266 = vmatprep.subr.bf16.mxu0 0
        %3267 = vmatpush1.bf16.msra.mxu0 0
        %3268 = vmatprep.subr.bf16.mxu0 0
        %3269 = vmatpush1.bf16.msra.mxu0 0
        %3270 = vmatprep.subr.bf16.mxu0 0
        %3271 = vmatpush1.bf16.msra.mxu0 0
        %3272 = vmatprep.subr.bf16.mxu0 0
        %3273 = vmatpush1.bf16.msra.mxu0 0
        %3274 = vmatprep.subr.bf16.mxu0 0
        %3275 = vmatpush1.bf16.msra.mxu0 0
        %3276 = vmatprep.subr.bf16.mxu0 0
        %3277 = vmatpush1.bf16.msra.mxu0 0
        %3278 = vmatprep.subr.bf16.mxu0 0
        %3279 = vmatpush1.bf16.msra.mxu0 0
        %3280 = vmatprep.mubr.bf16.mxu0 0
        %3281 = vmatmul.mubr.bf16.gmra.mrb[0].mxu0 %v1405
        %v3282 = vpop.f32.mrb[0].mxu0
        %v3283 = vadd.f32 0.0, %v3282
        %v3284 = vpop.f32.mrb[0].mxu0
        %v3285 = vpop.f32.mrb[0].mxu0
        %v3286 = vpop.f32.mrb[0].mxu0
        %3287 = vdwg.mxu0
        %3289 = vrot.lane.b32.xlu0 %v3226, 120
        %v3290 = vpop.permute.xlu0 %3289
        %3291 = vrot.lane.b32.xlu0 %v3226, 112
        %v3292 = vpop.permute.xlu0 %3291
        %3293 = vrot.lane.b32.xlu0 %v3226, 104
        %v3294 = vpop.permute.xlu0 %3293
        %3296 = vrot.lane.b32.xlu0 %v3283, 120
        %v3297 = vpop.permute.xlu0 %3296
        %3298 = vrot.lane.b32.xlu0 %v3283, 112
        %v3299 = vpop.permute.xlu0 %3298
        %3300 = vrot.lane.b32.xlu0 %v3283, 104
        %v3301 = vpop.permute.xlu0 %3300
        %v3302 = vsel %vm586, %v3226, 0
        %v3304 = vsel %vm586, %v3283, 0
        %3306 = vmatprep.subr.mxu0 0.0
        %3307 = vmatpush1.xpose.msra.mxu0 %v3304
        %3308 = vmatprep.subr.mxu0 0.0
        %3309 = vmatpush1.xpose.msra.mxu0 0.0
        %3310 = vmatprep.subr.mxu0 0.0
        %3311 = vmatpush1.xpose.msra.mxu0 0.0
        %3312 = vmatprep.subr.mxu0 0.0
        %3313 = vmatpush1.xpose.msra.mxu0 0.0
        %3314 = vmatprep.subr.mxu0 0.0
        %3315 = vmatpush1.xpose.msra.mxu0 0.0
        %3316 = vmatprep.subr.mxu0 0.0
        %3317 = vmatpush1.xpose.msra.mxu0 0.0
        %3318 = vmatprep.subr.mxu0 0.0
        %3319 = vmatpush1.xpose.msra.mxu0 0.0
        %3320 = vmatprep.subr.mxu0 0.0
        %3321 = vmatpush1.xpose.msra.mxu0 0.0
        %3322 = vmatprep.subr.mxu0 0.0
        %3323 = vmatpush1.xpose.msra.mxu0 0.0
        %3324 = vmatprep.subr.mxu0 0.0
        %3325 = vmatpush1.xpose.msra.mxu0 0.0
        %3326 = vmatprep.subr.mxu0 0.0
        %3327 = vmatpush1.xpose.msra.mxu0 0.0
        %3328 = vmatprep.subr.mxu0 0.0
        %3329 = vmatpush1.xpose.msra.mxu0 0.0
        %3330 = vmatprep.subr.mxu0 0.0
        %3331 = vmatpush1.xpose.msra.mxu0 0.0
        %3332 = vmatprep.subr.mxu0 0.0
        %3333 = vmatpush1.xpose.msra.mxu0 0.0
        %3334 = vmatprep.subr.mxu0 0.0
        %3335 = vmatpush1.xpose.msra.mxu0 0.0
        %3336 = vmatprep.subr.mxu0 0.0
        %3337 = vmatpush1.xpose.msra.mxu0 0.0
        %3338 = vmatprep.subr.mxu0 0.0
        %3339 = vmatpush1.xpose.msra.mxu0 0.0
        %3340 = vmatprep.subr.mxu0 0.0
        %3341 = vmatpush1.xpose.msra.mxu0 0.0
        %3342 = vmatprep.subr.mxu0 0.0
        %3343 = vmatpush1.xpose.msra.mxu0 0.0
        %3344 = vmatprep.subr.mxu0 0.0
        %3345 = vmatpush1.xpose.msra.mxu0 0.0
        %3346 = vmatprep.subr.mxu0 0.0
        %3347 = vmatpush1.xpose.msra.mxu0 0.0
        %3348 = vmatprep.subr.mxu0 0.0
        %3349 = vmatpush1.xpose.msra.mxu0 0.0
        %3350 = vmatprep.subr.mxu0 0.0
        %3351 = vmatpush1.xpose.msra.mxu0 0.0
        %3352 = vmatprep.subr.mxu0 0.0
        %3353 = vmatpush1.xpose.msra.mxu0 0.0
        %3354 = vmatprep.subr.mxu0 0.0
        %3355 = vmatpush1.xpose.msra.mxu0 0.0
        %3356 = vmatprep.subr.mxu0 0.0
        %3357 = vmatpush1.xpose.msra.mxu0 0.0
        %3358 = vmatprep.subr.mxu0 0.0
        %3359 = vmatpush1.xpose.msra.mxu0 0.0
        %3360 = vmatprep.subr.mxu0 0.0
        %3361 = vmatpush1.xpose.msra.mxu0 0.0
        %3362 = vmatprep.subr.mxu0 0.0
        %3363 = vmatpush1.xpose.msra.mxu0 0.0
        %3364 = vmatprep.subr.mxu0 0.0
        %3365 = vmatpush1.xpose.msra.mxu0 0.0
        %3366 = vmatprep.subr.mxu0 0.0
        %3367 = vmatpush1.xpose.msra.mxu0 0.0
        %3368 = vmatprep.subr.mxu0 0.0
        %3369 = vmatpush1.xpose.msra.mxu0 0.0
        %3370 = vmatprep.mubr.f32.mxu0 0.0
        %3371 = vmatmul.mubr.f32.gmra.mrb[0].mxu0 %v3302
        %v3372 = vpop.f32.mrb[0].mxu0
        %v3373 = vadd.f32 %v1464, %v3372
        %v3374 = vpop.f32.mrb[0].mxu0
        %3375 = vdwg.mxu0
        %v3376 = vsel %vm586, %v3290, 0
        %v3378 = vsel %vm586, %v3297, 0
        %3380 = vmatprep.subr.mxu0 0.0
        %3381 = vmatpush1.xpose.msra.mxu0 %v3378
        %3382 = vmatprep.subr.mxu0 0.0
        %3383 = vmatpush1.xpose.msra.mxu0 0.0
        %3384 = vmatprep.subr.mxu0 0.0
        %3385 = vmatpush1.xpose.msra.mxu0 0.0
        %3386 = vmatprep.subr.mxu0 0.0
        %3387 = vmatpush1.xpose.msra.mxu0 0.0
        %3388 = vmatprep.subr.mxu0 0.0
        %3389 = vmatpush1.xpose.msra.mxu0 0.0
        %3390 = vmatprep.subr.mxu0 0.0
        %3391 = vmatpush1.xpose.msra.mxu0 0.0
        %3392 = vmatprep.subr.mxu0 0.0
        %3393 = vmatpush1.xpose.msra.mxu0 0.0
        %3394 = vmatprep.subr.mxu0 0.0
        %3395 = vmatpush1.xpose.msra.mxu0 0.0
        %3396 = vmatprep.subr.mxu0 0.0
        %3397 = vmatpush1.xpose.msra.mxu0 0.0
        %3398 = vmatprep.subr.mxu0 0.0
        %3399 = vmatpush1.xpose.msra.mxu0 0.0
        %3400 = vmatprep.subr.mxu0 0.0
        %3401 = vmatpush1.xpose.msra.mxu0 0.0
        %3402 = vmatprep.subr.mxu0 0.0
        %3403 = vmatpush1.xpose.msra.mxu0 0.0
        %3404 = vmatprep.subr.mxu0 0.0
        %3405 = vmatpush1.xpose.msra.mxu0 0.0
        %3406 = vmatprep.subr.mxu0 0.0
        %3407 = vmatpush1.xpose.msra.mxu0 0.0
        %3408 = vmatprep.subr.mxu0 0.0
        %3409 = vmatpush1.xpose.msra.mxu0 0.0
        %3410 = vmatprep.subr.mxu0 0.0
        %3411 = vmatpush1.xpose.msra.mxu0 0.0
        %3412 = vmatprep.subr.mxu0 0.0
        %3413 = vmatpush1.xpose.msra.mxu0 0.0
        %3414 = vmatprep.subr.mxu0 0.0
        %3415 = vmatpush1.xpose.msra.mxu0 0.0
        %3416 = vmatprep.subr.mxu0 0.0
        %3417 = vmatpush1.xpose.msra.mxu0 0.0
        %3418 = vmatprep.subr.mxu0 0.0
        %3419 = vmatpush1.xpose.msra.mxu0 0.0
        %3420 = vmatprep.subr.mxu0 0.0
        %3421 = vmatpush1.xpose.msra.mxu0 0.0
        %3422 = vmatprep.subr.mxu0 0.0
        %3423 = vmatpush1.xpose.msra.mxu0 0.0
        %3424 = vmatprep.subr.mxu0 0.0
        %3425 = vmatpush1.xpose.msra.mxu0 0.0
        %3426 = vmatprep.subr.mxu0 0.0
        %3427 = vmatpush1.xpose.msra.mxu0 0.0
        %3428 = vmatprep.subr.mxu0 0.0
        %3429 = vmatpush1.xpose.msra.mxu0 0.0
        %3430 = vmatprep.subr.mxu0 0.0
        %3431 = vmatpush1.xpose.msra.mxu0 0.0
        %3432 = vmatprep.subr.mxu0 0.0
        %3433 = vmatpush1.xpose.msra.mxu0 0.0
        %3434 = vmatprep.subr.mxu0 0.0
        %3435 = vmatpush1.xpose.msra.mxu0 0.0
        %3436 = vmatprep.subr.mxu0 0.0
        %3437 = vmatpush1.xpose.msra.mxu0 0.0
        %3438 = vmatprep.subr.mxu0 0.0
        %3439 = vmatpush1.xpose.msra.mxu0 0.0
        %3440 = vmatprep.subr.mxu0 0.0
        %3441 = vmatpush1.xpose.msra.mxu0 0.0
        %3442 = vmatprep.subr.mxu0 0.0
        %3443 = vmatpush1.xpose.msra.mxu0 0.0
        %3444 = vmatprep.mubr.f32.mxu0 0.0
        %3445 = vmatmul.mubr.f32.gmra.mrb[0].mxu0 %v3376
        %v3446 = vpop.f32.mrb[0].mxu0
        %v3447 = vadd.f32 %v1464, %v3446
        %v3448 = vpop.f32.mrb[0].mxu0
        %3449 = vdwg.mxu0
        %v3450 = vsel %vm586, %v3292, 0
        %v3452 = vsel %vm586, %v3299, 0
        %3454 = vmatprep.subr.mxu0 0.0
        %3455 = vmatpush1.xpose.msra.mxu0 %v3452
        %3456 = vmatprep.subr.mxu0 0.0
        %3457 = vmatpush1.xpose.msra.mxu0 0.0
        %3458 = vmatprep.subr.mxu0 0.0
        %3459 = vmatpush1.xpose.msra.mxu0 0.0
        %3460 = vmatprep.subr.mxu0 0.0
        %3461 = vmatpush1.xpose.msra.mxu0 0.0
        %3462 = vmatprep.subr.mxu0 0.0
        %3463 = vmatpush1.xpose.msra.mxu0 0.0
        %3464 = vmatprep.subr.mxu0 0.0
        %3465 = vmatpush1.xpose.msra.mxu0 0.0
        %3466 = vmatprep.subr.mxu0 0.0
        %3467 = vmatpush1.xpose.msra.mxu0 0.0
        %3468 = vmatprep.subr.mxu0 0.0
        %3469 = vmatpush1.xpose.msra.mxu0 0.0
        %3470 = vmatprep.subr.mxu0 0.0
        %3471 = vmatpush1.xpose.msra.mxu0 0.0
        %3472 = vmatprep.subr.mxu0 0.0
        %3473 = vmatpush1.xpose.msra.mxu0 0.0
        %3474 = vmatprep.subr.mxu0 0.0
        %3475 = vmatpush1.xpose.msra.mxu0 0.0
        %3476 = vmatprep.subr.mxu0 0.0
        %3477 = vmatpush1.xpose.msra.mxu0 0.0
        %3478 = vmatprep.subr.mxu0 0.0
        %3479 = vmatpush1.xpose.msra.mxu0 0.0
        %3480 = vmatprep.subr.mxu0 0.0
        %3481 = vmatpush1.xpose.msra.mxu0 0.0
        %3482 = vmatprep.subr.mxu0 0.0
        %3483 = vmatpush1.xpose.msra.mxu0 0.0
        %3484 = vmatprep.subr.mxu0 0.0
        %3485 = vmatpush1.xpose.msra.mxu0 0.0
        %3486 = vmatprep.subr.mxu0 0.0
        %3487 = vmatpush1.xpose.msra.mxu0 0.0
        %3488 = vmatprep.subr.mxu0 0.0
        %3489 = vmatpush1.xpose.msra.mxu0 0.0
        %3490 = vmatprep.subr.mxu0 0.0
        %3491 = vmatpush1.xpose.msra.mxu0 0.0
        %3492 = vmatprep.subr.mxu0 0.0
        %3493 = vmatpush1.xpose.msra.mxu0 0.0
        %3494 = vmatprep.subr.mxu0 0.0
        %3495 = vmatpush1.xpose.msra.mxu0 0.0
        %3496 = vmatprep.subr.mxu0 0.0
        %3497 = vmatpush1.xpose.msra.mxu0 0.0
        %3498 = vmatprep.subr.mxu0 0.0
        %3499 = vmatpush1.xpose.msra.mxu0 0.0
        %3500 = vmatprep.subr.mxu0 0.0
        %3501 = vmatpush1.xpose.msra.mxu0 0.0
        %3502 = vmatprep.subr.mxu0 0.0
        %3503 = vmatpush1.xpose.msra.mxu0 0.0
        %3504 = vmatprep.subr.mxu0 0.0
        %3505 = vmatpush1.xpose.msra.mxu0 0.0
        %3506 = vmatprep.subr.mxu0 0.0
        %3507 = vmatpush1.xpose.msra.mxu0 0.0
        %3508 = vmatprep.subr.mxu0 0.0
        %3509 = vmatpush1.xpose.msra.mxu0 0.0
        %3510 = vmatprep.subr.mxu0 0.0
        %3511 = vmatpush1.xpose.msra.mxu0 0.0
        %3512 = vmatprep.subr.mxu0 0.0
        %3513 = vmatpush1.xpose.msra.mxu0 0.0
        %3514 = vmatprep.subr.mxu0 0.0
        %3515 = vmatpush1.xpose.msra.mxu0 0.0
        %3516 = vmatprep.subr.mxu0 0.0
        %3517 = vmatpush1.xpose.msra.mxu0 0.0
        %3518 = vmatprep.mubr.f32.mxu0 0.0
        %3519 = vmatmul.mubr.f32.gmra.mrb[0].mxu0 %v3450
        %v3520 = vpop.f32.mrb[0].mxu0
        %v3521 = vadd.f32 %v1464, %v3520
        %v3522 = vpop.f32.mrb[0].mxu0
        %3523 = vdwg.mxu0
        %v3524 = vsel %vm586, %v3294, 0
        %v3526 = vsel %vm586, %v3301, 0
        %3528 = vmatprep.subr.mxu0 0.0
        %3529 = vmatpush1.xpose.msra.mxu0 %v3526
        %3530 = vmatprep.subr.mxu0 0.0
        %3531 = vmatpush1.xpose.msra.mxu0 0.0
        %3532 = vmatprep.subr.mxu0 0.0
        %3533 = vmatpush1.xpose.msra.mxu0 0.0
        %3534 = vmatprep.subr.mxu0 0.0
        %3535 = vmatpush1.xpose.msra.mxu0 0.0
        %3536 = vmatprep.subr.mxu0 0.0
        %3537 = vmatpush1.xpose.msra.mxu0 0.0
        %3538 = vmatprep.subr.mxu0 0.0
        %3539 = vmatpush1.xpose.msra.mxu0 0.0
        %3540 = vmatprep.subr.mxu0 0.0
        %3541 = vmatpush1.xpose.msra.mxu0 0.0
        %3542 = vmatprep.subr.mxu0 0.0
        %3543 = vmatpush1.xpose.msra.mxu0 0.0
        %3544 = vmatprep.subr.mxu0 0.0
        %3545 = vmatpush1.xpose.msra.mxu0 0.0
        %3546 = vmatprep.subr.mxu0 0.0
        %3547 = vmatpush1.xpose.msra.mxu0 0.0
        %3548 = vmatprep.subr.mxu0 0.0
        %3549 = vmatpush1.xpose.msra.mxu0 0.0
        %3550 = vmatprep.subr.mxu0 0.0
        %3551 = vmatpush1.xpose.msra.mxu0 0.0
        %3552 = vmatprep.subr.mxu0 0.0
        %3553 = vmatpush1.xpose.msra.mxu0 0.0
        %3554 = vmatprep.subr.mxu0 0.0
        %3555 = vmatpush1.xpose.msra.mxu0 0.0
        %3556 = vmatprep.subr.mxu0 0.0
        %3557 = vmatpush1.xpose.msra.mxu0 0.0
        %3558 = vmatprep.subr.mxu0 0.0
        %3559 = vmatpush1.xpose.msra.mxu0 0.0
        %3560 = vmatprep.subr.mxu0 0.0
        %3561 = vmatpush1.xpose.msra.mxu0 0.0
        %3562 = vmatprep.subr.mxu0 0.0
        %3563 = vmatpush1.xpose.msra.mxu0 0.0
        %3564 = vmatprep.subr.mxu0 0.0
        %3565 = vmatpush1.xpose.msra.mxu0 0.0
        %3566 = vmatprep.subr.mxu0 0.0
        %3567 = vmatpush1.xpose.msra.mxu0 0.0
        %3568 = vmatprep.subr.mxu0 0.0
        %3569 = vmatpush1.xpose.msra.mxu0 0.0
        %3570 = vmatprep.subr.mxu0 0.0
        %3571 = vmatpush1.xpose.msra.mxu0 0.0
        %3572 = vmatprep.subr.mxu0 0.0
        %3573 = vmatpush1.xpose.msra.mxu0 0.0
        %3574 = vmatprep.subr.mxu0 0.0
        %3575 = vmatpush1.xpose.msra.mxu0 0.0
        %3576 = vmatprep.subr.mxu0 0.0
        %3577 = vmatpush1.xpose.msra.mxu0 0.0
        %3578 = vmatprep.subr.mxu0 0.0
        %3579 = vmatpush1.xpose.msra.mxu0 0.0
        %3580 = vmatprep.subr.mxu0 0.0
        %3581 = vmatpush1.xpose.msra.mxu0 0.0
        %3582 = vmatprep.subr.mxu0 0.0
        %3583 = vmatpush1.xpose.msra.mxu0 0.0
        %3584 = vmatprep.subr.mxu0 0.0
        %3585 = vmatpush1.xpose.msra.mxu0 0.0
        %3586 = vmatprep.subr.mxu0 0.0
        %3587 = vmatpush1.xpose.msra.mxu0 0.0
        %3588 = vmatprep.subr.mxu0 0.0
        %3589 = vmatpush1.xpose.msra.mxu0 0.0
        %3590 = vmatprep.subr.mxu0 0.0
        %3591 = vmatpush1.xpose.msra.mxu0 0.0
        %3592 = vmatprep.mubr.f32.mxu0 0.0
        %3593 = vmatmul.mubr.f32.gmra.mrb[0].mxu0 %v3524
        %v3594 = vpop.f32.mrb[0].mxu0
        %v3595 = vadd.f32 %v1464, %v3594
        %v3596 = vpop.f32.mrb[0].mxu0
        %3597 = vdwg.mxu0
        %v3598 = vsel %vm586, %v3373, -inf
        %3599 = vmax.xlane.f32.xlu0 %v3598
        %v3600 = vpop.xlane.xlu0 %3599
        %v3601 = vsel %vm586, %v3447, -inf
        %3602 = vmax.xlane.f32.xlu0 %v3601
        %v3603 = vpop.xlane.xlu0 %3602
        %v3604 = vsel %vm586, %v3521, -inf
        %3605 = vmax.xlane.f32.xlu0 %v3604
        %v3606 = vpop.xlane.xlu0 %3605
        %v3607 = vsel %vm586, %v3595, -inf
        %3608 = vmax.xlane.f32.xlu0 %v3607
        %v3609 = vpop.xlane.xlu0 %3608
        %v3610 = vsub.f32 %v3373, %v3600
        %v3611 = vsub.f32 %v3447, %v3603
        %v3612 = vsub.f32 %v3521, %v3606
        %v3613 = vsub.f32 %v3595, %v3609
        %v3614 = vmul.f32 %v3610, 1.442695
        %v3615 = vpow.pop %v3614
        %v3616 = vmul.f32 %v3611, 1.442695
        %v3617 = vpow.pop %v3616
        %v3618 = vmul.f32 %v3612, 1.442695
        %v3619 = vpow.pop %v3618
        %v3620 = vmul.f32 %v3613, 1.442695
        %v3621 = vpow.pop %v3620
        %v3622 = vsel %vm586, %v3615, 0.0
        %3623 = vadd.xlane.f32.xlu0 %v3622
        %v3624 = vpop.xlane.xlu0 %3623
        %v3625 = vsel %vm586, %v3617, 0.0
        %3626 = vadd.xlane.f32.xlu0 %v3625
        %v3627 = vpop.xlane.xlu0 %3626
        %v3628 = vsel %vm586, %v3619, 0.0
        %3629 = vadd.xlane.f32.xlu0 %v3628
        %v3630 = vpop.xlane.xlu0 %3629
        %v3631 = vsel %vm586, %v3621, 0.0
        %3632 = vadd.xlane.f32.xlu0 %v3631
        %v3633 = vpop.xlane.xlu0 %3632
        %v3634 = vrcp.pop %v3624
        %v3635 = vrcp.pop %v3627
        %v3636 = vrcp.pop %v3630
        %v3637 = vrcp.pop %v3633
        %v3638 = vmul.f32 %v3615, %v3634
        %v3639 = vmul.f32 %v3617, %v3635
        %v3640 = vmul.f32 %v3619, %v3636
        %v3641 = vmul.f32 %v3621, %v3637
        %3642 = vrot.lane.b32.xlu0 %v3283, 96
        %v3643 = vpop.permute.xlu0 %3642
        %v3646 = vsel %vm586, %v3638, 0
        %3648 = vmatprep.subr.mxu0 0.0
        %3649 = vmatpush1.msra.mxu0 %v3643
        %3650 = vmatprep.subr.mxu0 0.0
        %3651 = vmatpush1.msra.mxu0 0.0
        %3652 = vmatprep.subr.mxu0 0.0
        %3653 = vmatpush1.msra.mxu0 0.0
        %3654 = vmatprep.subr.mxu0 0.0
        %3655 = vmatpush1.msra.mxu0 0.0
        %3656 = vmatprep.subr.mxu0 0.0
        %3657 = vmatpush1.msra.mxu0 0.0
        %3658 = vmatprep.subr.mxu0 0.0
        %3659 = vmatpush1.msra.mxu0 0.0
        %3660 = vmatprep.subr.mxu0 0.0
        %3661 = vmatpush1.msra.mxu0 0.0
        %3662 = vmatprep.subr.mxu0 0.0
        %3663 = vmatpush1.msra.mxu0 0.0
        %3664 = vmatprep.subr.mxu0 0.0
        %3665 = vmatpush1.msra.mxu0 0.0
        %3666 = vmatprep.subr.mxu0 0.0
        %3667 = vmatpush1.msra.mxu0 0.0
        %3668 = vmatprep.subr.mxu0 0.0
        %3669 = vmatpush1.msra.mxu0 0.0
        %3670 = vmatprep.subr.mxu0 0.0
        %3671 = vmatpush1.msra.mxu0 0.0
        %3672 = vmatprep.subr.mxu0 0.0
        %3673 = vmatpush1.msra.mxu0 0.0
        %3674 = vmatprep.subr.mxu0 0.0
        %3675 = vmatpush1.msra.mxu0 0.0
        %3676 = vmatprep.subr.mxu0 0.0
        %3677 = vmatpush1.msra.mxu0 0.0
        %3678 = vmatprep.subr.mxu0 0.0
        %3679 = vmatpush1.msra.mxu0 0.0
        %3680 = vmatprep.subr.mxu0 0.0
        %3681 = vmatpush1.msra.mxu0 0.0
        %3682 = vmatprep.subr.mxu0 0.0
        %3683 = vmatpush1.msra.mxu0 0.0
        %3684 = vmatprep.subr.mxu0 0.0
        %3685 = vmatpush1.msra.mxu0 0.0
        %3686 = vmatprep.subr.mxu0 0.0
        %3687 = vmatpush1.msra.mxu0 0.0
        %3688 = vmatprep.subr.mxu0 0.0
        %3689 = vmatpush1.msra.mxu0 0.0
        %3690 = vmatprep.subr.mxu0 0.0
        %3691 = vmatpush1.msra.mxu0 0.0
        %3692 = vmatprep.subr.mxu0 0.0
        %3693 = vmatpush1.msra.mxu0 0.0
        %3694 = vmatprep.subr.mxu0 0.0
        %3695 = vmatpush1.msra.mxu0 0.0
        %3696 = vmatprep.subr.mxu0 0.0
        %3697 = vmatpush1.msra.mxu0 0.0
        %3698 = vmatprep.subr.mxu0 0.0
        %3699 = vmatpush1.msra.mxu0 0.0
        %3700 = vmatprep.subr.mxu0 0.0
        %3701 = vmatpush1.msra.mxu0 0.0
        %3702 = vmatprep.subr.mxu0 0.0
        %3703 = vmatpush1.msra.mxu0 0.0
        %3704 = vmatprep.subr.mxu0 0.0
        %3705 = vmatpush1.msra.mxu0 0.0
        %3706 = vmatprep.subr.mxu0 0.0
        %3707 = vmatpush1.msra.mxu0 0.0
        %3708 = vmatprep.subr.mxu0 0.0
        %3709 = vmatpush1.msra.mxu0 0.0
        %3710 = vmatprep.subr.mxu0 0.0
        %3711 = vmatpush1.msra.mxu0 0.0
        %3712 = vmatprep.mubr.f32.mxu0 0.0
        %3713 = vmatmul.mubr.f32.gmra.mrb[0].mxu0 %v3646
        %v3714 = vpop.f32.mrb[0].mxu0
        %v3715 = vadd.f32 0.0, %v3714
        %v3716 = vpop.f32.mrb[0].mxu0
        %3717 = vdwg.mxu0
        %3718 = vrot.lane.b32.xlu0 %v3297, 96
        %v3719 = vpop.permute.xlu0 %3718
        %v3722 = vsel %vm586, %v3639, 0
        %3724 = vmatprep.subr.mxu0 0.0
        %3725 = vmatpush1.msra.mxu0 %v3719
        %3726 = vmatprep.subr.mxu0 0.0
        %3727 = vmatpush1.msra.mxu0 0.0
        %3728 = vmatprep.subr.mxu0 0.0
        %3729 = vmatpush1.msra.mxu0 0.0
        %3730 = vmatprep.subr.mxu0 0.0
        %3731 = vmatpush1.msra.mxu0 0.0
        %3732 = vmatprep.subr.mxu0 0.0
        %3733 = vmatpush1.msra.mxu0 0.0
        %3734 = vmatprep.subr.mxu0 0.0
        %3735 = vmatpush1.msra.mxu0 0.0
        %3736 = vmatprep.subr.mxu0 0.0
        %3737 = vmatpush1.msra.mxu0 0.0
        %3738 = vmatprep.subr.mxu0 0.0
        %3739 = vmatpush1.msra.mxu0 0.0
        %3740 = vmatprep.subr.mxu0 0.0
        %3741 = vmatpush1.msra.mxu0 0.0
        %3742 = vmatprep.subr.mxu0 0.0
        %3743 = vmatpush1.msra.mxu0 0.0
        %3744 = vmatprep.subr.mxu0 0.0
        %3745 = vmatpush1.msra.mxu0 0.0
        %3746 = vmatprep.subr.mxu0 0.0
        %3747 = vmatpush1.msra.mxu0 0.0
        %3748 = vmatprep.subr.mxu0 0.0
        %3749 = vmatpush1.msra.mxu0 0.0
        %3750 = vmatprep.subr.mxu0 0.0
        %3751 = vmatpush1.msra.mxu0 0.0
        %3752 = vmatprep.subr.mxu0 0.0
        %3753 = vmatpush1.msra.mxu0 0.0
        %3754 = vmatprep.subr.mxu0 0.0
        %3755 = vmatpush1.msra.mxu0 0.0
        %3756 = vmatprep.subr.mxu0 0.0
        %3757 = vmatpush1.msra.mxu0 0.0
        %3758 = vmatprep.subr.mxu0 0.0
        %3759 = vmatpush1.msra.mxu0 0.0
        %3760 = vmatprep.subr.mxu0 0.0
        %3761 = vmatpush1.msra.mxu0 0.0
        %3762 = vmatprep.subr.mxu0 0.0
        %3763 = vmatpush1.msra.mxu0 0.0
        %3764 = vmatprep.subr.mxu0 0.0
        %3765 = vmatpush1.msra.mxu0 0.0
        %3766 = vmatprep.subr.mxu0 0.0
        %3767 = vmatpush1.msra.mxu0 0.0
        %3768 = vmatprep.subr.mxu0 0.0
        %3769 = vmatpush1.msra.mxu0 0.0
        %3770 = vmatprep.subr.mxu0 0.0
        %3771 = vmatpush1.msra.mxu0 0.0
        %3772 = vmatprep.subr.mxu0 0.0
        %3773 = vmatpush1.msra.mxu0 0.0
        %3774 = vmatprep.subr.mxu0 0.0
        %3775 = vmatpush1.msra.mxu0 0.0
        %3776 = vmatprep.subr.mxu0 0.0
        %3777 = vmatpush1.msra.mxu0 0.0
        %3778 = vmatprep.subr.mxu0 0.0
        %3779 = vmatpush1.msra.mxu0 0.0
        %3780 = vmatprep.subr.mxu0 0.0
        %3781 = vmatpush1.msra.mxu0 0.0
        %3782 = vmatprep.subr.mxu0 0.0
        %3783 = vmatpush1.msra.mxu0 0.0
        %3784 = vmatprep.subr.mxu0 0.0
        %3785 = vmatpush1.msra.mxu0 0.0
        %3786 = vmatprep.subr.mxu0 0.0
        %3787 = vmatpush1.msra.mxu0 0.0
        %3788 = vmatprep.mubr.f32.mxu0 0.0
        %3789 = vmatmul.mubr.f32.gmra.mrb[0].mxu0 %v3722
        %v3790 = vpop.f32.mrb[0].mxu0
        %v3791 = vadd.f32 0.0, %v3790
        %v3792 = vpop.f32.mrb[0].mxu0
        %3793 = vdwg.mxu0
        %3794 = vrot.lane.b32.xlu0 %v3299, 96
        %v3795 = vpop.permute.xlu0 %3794
        %v3798 = vsel %vm586, %v3640, 0
        %3800 = vmatprep.subr.mxu0 0.0
        %3801 = vmatpush1.msra.mxu0 %v3795
        %3802 = vmatprep.subr.mxu0 0.0
        %3803 = vmatpush1.msra.mxu0 0.0
        %3804 = vmatprep.subr.mxu0 0.0
        %3805 = vmatpush1.msra.mxu0 0.0
        %3806 = vmatprep.subr.mxu0 0.0
        %3807 = vmatpush1.msra.mxu0 0.0
        %3808 = vmatprep.subr.mxu0 0.0
        %3809 = vmatpush1.msra.mxu0 0.0
        %3810 = vmatprep.subr.mxu0 0.0
        %3811 = vmatpush1.msra.mxu0 0.0
        %3812 = vmatprep.subr.mxu0 0.0
        %3813 = vmatpush1.msra.mxu0 0.0
        %3814 = vmatprep.subr.mxu0 0.0
        %3815 = vmatpush1.msra.mxu0 0.0
        %3816 = vmatprep.subr.mxu0 0.0
        %3817 = vmatpush1.msra.mxu0 0.0
        %3818 = vmatprep.subr.mxu0 0.0
        %3819 = vmatpush1.msra.mxu0 0.0
        %3820 = vmatprep.subr.mxu0 0.0
        %3821 = vmatpush1.msra.mxu0 0.0
        %3822 = vmatprep.subr.mxu0 0.0
        %3823 = vmatpush1.msra.mxu0 0.0
        %3824 = vmatprep.subr.mxu0 0.0
        %3825 = vmatpush1.msra.mxu0 0.0
        %3826 = vmatprep.subr.mxu0 0.0
        %3827 = vmatpush1.msra.mxu0 0.0
        %3828 = vmatprep.subr.mxu0 0.0
        %3829 = vmatpush1.msra.mxu0 0.0
        %3830 = vmatprep.subr.mxu0 0.0
        %3831 = vmatpush1.msra.mxu0 0.0
        %3832 = vmatprep.subr.mxu0 0.0
        %3833 = vmatpush1.msra.mxu0 0.0
        %3834 = vmatprep.subr.mxu0 0.0
        %3835 = vmatpush1.msra.mxu0 0.0
        %3836 = vmatprep.subr.mxu0 0.0
        %3837 = vmatpush1.msra.mxu0 0.0
        %3838 = vmatprep.subr.mxu0 0.0
        %3839 = vmatpush1.msra.mxu0 0.0
        %3840 = vmatprep.subr.mxu0 0.0
        %3841 = vmatpush1.msra.mxu0 0.0
        %3842 = vmatprep.subr.mxu0 0.0
        %3843 = vmatpush1.msra.mxu0 0.0
        %3844 = vmatprep.subr.mxu0 0.0
        %3845 = vmatpush1.msra.mxu0 0.0
        %3846 = vmatprep.subr.mxu0 0.0
        %3847 = vmatpush1.msra.mxu0 0.0
        %3848 = vmatprep.subr.mxu0 0.0
        %3849 = vmatpush1.msra.mxu0 0.0
        %3850 = vmatprep.subr.mxu0 0.0
        %3851 = vmatpush1.msra.mxu0 0.0
        %3852 = vmatprep.subr.mxu0 0.0
        %3853 = vmatpush1.msra.mxu0 0.0
        %3854 = vmatprep.subr.mxu0 0.0
        %3855 = vmatpush1.msra.mxu0 0.0
        %3856 = vmatprep.subr.mxu0 0.0
        %3857 = vmatpush1.msra.mxu0 0.0
        %3858 = vmatprep.subr.mxu0 0.0
        %3859 = vmatpush1.msra.mxu0 0.0
        %3860 = vmatprep.subr.mxu0 0.0
        %3861 = vmatpush1.msra.mxu0 0.0
        %3862 = vmatprep.subr.mxu0 0.0
        %3863 = vmatpush1.msra.mxu0 0.0
        %3864 = vmatprep.mubr.f32.mxu0 0.0
        %3865 = vmatmul.mubr.f32.gmra.mrb[0].mxu0 %v3798
        %v3866 = vpop.f32.mrb[0].mxu0
        %v3867 = vadd.f32 0.0, %v3866
        %v3868 = vpop.f32.mrb[0].mxu0
        %3869 = vdwg.mxu0
        %3870 = vrot.lane.b32.xlu0 %v3301, 96
        %v3871 = vpop.permute.xlu0 %3870
        %v3874 = vsel %vm586, %v3641, 0
        %3876 = vmatprep.subr.mxu0 0.0
        %3877 = vmatpush1.msra.mxu0 %v3871
        %3878 = vmatprep.subr.mxu0 0.0
        %3879 = vmatpush1.msra.mxu0 0.0
        %3880 = vmatprep.subr.mxu0 0.0
        %3881 = vmatpush1.msra.mxu0 0.0
        %3882 = vmatprep.subr.mxu0 0.0
        %3883 = vmatpush1.msra.mxu0 0.0
        %3884 = vmatprep.subr.mxu0 0.0
        %3885 = vmatpush1.msra.mxu0 0.0
        %3886 = vmatprep.subr.mxu0 0.0
        %3887 = vmatpush1.msra.mxu0 0.0
        %3888 = vmatprep.subr.mxu0 0.0
        %3889 = vmatpush1.msra.mxu0 0.0
        %3890 = vmatprep.subr.mxu0 0.0
        %3891 = vmatpush1.msra.mxu0 0.0
        %3892 = vmatprep.subr.mxu0 0.0
        %3893 = vmatpush1.msra.mxu0 0.0
        %3894 = vmatprep.subr.mxu0 0.0
        %3895 = vmatpush1.msra.mxu0 0.0
        %3896 = vmatprep.subr.mxu0 0.0
        %3897 = vmatpush1.msra.mxu0 0.0
        %3898 = vmatprep.subr.mxu0 0.0
        %3899 = vmatpush1.msra.mxu0 0.0
        %3900 = vmatprep.subr.mxu0 0.0
        %3901 = vmatpush1.msra.mxu0 0.0
        %3902 = vmatprep.subr.mxu0 0.0
        %3903 = vmatpush1.msra.mxu0 0.0
        %3904 = vmatprep.subr.mxu0 0.0
        %3905 = vmatpush1.msra.mxu0 0.0
        %3906 = vmatprep.subr.mxu0 0.0
        %3907 = vmatpush1.msra.mxu0 0.0
        %3908 = vmatprep.subr.mxu0 0.0
        %3909 = vmatpush1.msra.mxu0 0.0
        %3910 = vmatprep.subr.mxu0 0.0
        %3911 = vmatpush1.msra.mxu0 0.0
        %3912 = vmatprep.subr.mxu0 0.0
        %3913 = vmatpush1.msra.mxu0 0.0
        %3914 = vmatprep.subr.mxu0 0.0
        %3915 = vmatpush1.msra.mxu0 0.0
        %3916 = vmatprep.subr.mxu0 0.0
        %3917 = vmatpush1.msra.mxu0 0.0
        %3918 = vmatprep.subr.mxu0 0.0
        %3919 = vmatpush1.msra.mxu0 0.0
        %3920 = vmatprep.subr.mxu0 0.0
        %3921 = vmatpush1.msra.mxu0 0.0
        %3922 = vmatprep.subr.mxu0 0.0
        %3923 = vmatpush1.msra.mxu0 0.0
        %3924 = vmatprep.subr.mxu0 0.0
        %3925 = vmatpush1.msra.mxu0 0.0
        %3926 = vmatprep.subr.mxu0 0.0
        %3927 = vmatpush1.msra.mxu0 0.0
        %3928 = vmatprep.subr.mxu0 0.0
        %3929 = vmatpush1.msra.mxu0 0.0
        %3930 = vmatprep.subr.mxu0 0.0
        %3931 = vmatpush1.msra.mxu0 0.0
        %3932 = vmatprep.subr.mxu0 0.0
        %3933 = vmatpush1.msra.mxu0 0.0
        %3934 = vmatprep.subr.mxu0 0.0
        %3935 = vmatpush1.msra.mxu0 0.0
        %3936 = vmatprep.subr.mxu0 0.0
        %3937 = vmatpush1.msra.mxu0 0.0
        %3938 = vmatprep.subr.mxu0 0.0
        %3939 = vmatpush1.msra.mxu0 0.0
        %3940 = vmatprep.mubr.f32.mxu0 0.0
        %3941 = vmatmul.mubr.f32.gmra.mrb[0].mxu0 %v3874
        %v3942 = vpop.f32.mrb[0].mxu0
        %v3943 = vadd.f32 0.0, %v3942
        %v3944 = vpop.f32.mrb[0].mxu0
        %3945 = vdwg.mxu0
        %3947 = vrot.lane.b32.xlu0 %v3791, 8
        %v3948 = vpop.permute.xlu0 %3947
        %3951 = vrot.lane.b32.xlu0 %v3867, 16
        %v3952 = vpop.permute.xlu0 %3951
        %3955 = vrot.lane.b32.xlu0 %v3943, 24
        %v3956 = vpop.permute.xlu0 %3955
        %v3958 = vsel %vm586, %v3715, %v3948
        %v3959 = vsel %vm1250, %v3958, %v3952
        %v3960 = vsel %vm1252, %v3959, %v3956
        %v3961 = vpack.c.bf16 %v3960, %v3960
        %s3962 = scalar_lea.vmem %s8, 16
        %v3963 = vld [vmem:[%s3962] sm:$0xf]
        %v3964 = vld [vmem:[%s3962 + $0x4] sm:$0xf]
        %v3965 = vld [vmem:[%s3962 + $0x8] sm:$0xf]
        %v3966 = vld [vmem:[%s3962 + $0xc] sm:$0xf]
        %v3971 = vunpack.c.l.b16 %v3963
        %v3972 = vunpack.c.l.b16 %v3964
        %v3973 = vunpack.c.l.b16 %v3965
        %v3974 = vunpack.c.l.b16 %v3966
        %v3975 = vpack.c.b16 %v3972, %v3971
        %v3976 = vpack.c.b16 %v3974, %v3973
        %v3980 = vsel %vm503, %v3961, 0
        %3982 = vmatprep.subr.bf16.mxu0 0
        %3983 = vmatpush1.bf16.msra.mxu0 %v3975
        %3984 = vmatprep.subr.bf16.mxu0 0
        %3985 = vmatpush1.bf16.msra.mxu0 %v3976
        %3986 = vmatprep.subr.bf16.mxu0 0
        %3987 = vmatpush1.bf16.msra.mxu0 0
        %3988 = vmatprep.subr.bf16.mxu0 0
        %3989 = vmatpush1.bf16.msra.mxu0 0
        %3990 = vmatprep.subr.bf16.mxu0 0
        %3991 = vmatpush1.bf16.msra.mxu0 0
        %3992 = vmatprep.subr.bf16.mxu0 0
        %3993 = vmatpush1.bf16.msra.mxu0 0
        %3994 = vmatprep.subr.bf16.mxu0 0
        %3995 = vmatpush1.bf16.msra.mxu0 0
        %3996 = vmatprep.subr.bf16.mxu0 0
        %3997 = vmatpush1.bf16.msra.mxu0 0
        %3998 = vmatprep.subr.bf16.mxu0 0
        %3999 = vmatpush1.bf16.msra.mxu0 0
        %4000 = vmatprep.subr.bf16.mxu0 0
        %4001 = vmatpush1.bf16.msra.mxu0 0
        %4002 = vmatprep.subr.bf16.mxu0 0
        %4003 = vmatpush1.bf16.msra.mxu0 0
        %4004 = vmatprep.subr.bf16.mxu0 0
        %4005 = vmatpush1.bf16.msra.mxu0 0
        %4006 = vmatprep.subr.bf16.mxu0 0
        %4007 = vmatpush1.bf16.msra.mxu0 0
        %4008 = vmatprep.subr.bf16.mxu0 0
        %4009 = vmatpush1.bf16.msra.mxu0 0
        %4010 = vmatprep.subr.bf16.mxu0 0
        %4011 = vmatpush1.bf16.msra.mxu0 0
        %4012 = vmatprep.subr.bf16.mxu0 0
        %4013 = vmatpush1.bf16.msra.mxu0 0
        %4014 = vmatprep.mubr.bf16.mxu0 0
        %4015 = vmatmul.mubr.bf16.gmra.mrb[0].mxu0 %v3980
        %v4016 = vpop.f32.mrb[0].mxu0
        %v4017 = vadd.f32 0.0, %v4016
        %v4018 = vpop.f32.mrb[0].mxu0
        %v4019 = vpop.f32.mrb[0].mxu0
        %v4020 = vpop.f32.mrb[0].mxu0
        %4021 = vdwg.mxu0
        %v4022 = vadd.f32 %v3156, %v4017
        %v4023 = vmul.f32 %v4022, %v4022
        %v4024 = vsel %vm503, %v4023, 0.0
        %4025 = vadd.xlane.f32.xlu0 %v4024
        %v4026 = vpop.xlane.xlu0 %4025
        %v4027 = vmul.f32 %v4026, %v507
        %v4028 = vadd.f32 %v4027, 1e-06
        %v4029 = vrsqrt.pop %v4028
        %v4030 = vmul.f32 %v4022, %v4029
        %v4031 = vlaneseq
        %v4032 = vshrl.u32 %v4031, 7
        %v4033 = vsub.s32 2, %v4032
        %v4034 = vrot.slane %v2346, %v4033
        %v4035 = vmul.f32 %v4030, %v4034
        %v4036 = vpack.c.bf16 %v4035, %v4035
        %s4037 = scalar_lea.vmem %s9, 16
        %v4038 = vld [vmem:[%s4037] sm:$0xf]
        %v4039 = vld [vmem:[%s4037 + $0x4] sm:$0xf]
        %v4040 = vld [vmem:[%s4037 + $0x8] sm:$0xf]
        %v4041 = vld [vmem:[%s4037 + $0xc] sm:$0xf]
        %v4046 = vunpack.c.l.b16 %v4038
        %v4047 = vunpack.c.l.b16 %v4039
        %v4048 = vunpack.c.l.b16 %v4040
        %v4049 = vunpack.c.l.b16 %v4041
        %v4050 = vpack.c.b16 %v4047, %v4046
        %v4051 = vpack.c.b16 %v4049, %v4048
        %v4055 = vsel %vm503, %v4036, 0
        %4057 = vmatprep.subr.bf16.mxu0 0
        %4058 = vmatpush1.bf16.msra.mxu0 %v4050
        %4059 = vmatprep.subr.bf16.mxu0 0
        %4060 = vmatpush1.bf16.msra.mxu0 %v4051
        %4061 = vmatprep.subr.bf16.mxu0 0
        %4062 = vmatpush1.bf16.msra.mxu0 0
        %4063 = vmatprep.subr.bf16.mxu0 0
        %4064 = vmatpush1.bf16.msra.mxu0 0
        %4065 = vmatprep.subr.bf16.mxu0 0
        %4066 = vmatpush1.bf16.msra.mxu0 0
        %4067 = vmatprep.subr.bf16.mxu0 0
        %4068 = vmatpush1.bf16.msra.mxu0 0
        %4069 = vmatprep.subr.bf16.mxu0 0
        %4070 = vmatpush1.bf16.msra.mxu0 0
        %4071 = vmatprep.subr.bf16.mxu0 0
        %4072 = vmatpush1.bf16.msra.mxu0 0
        %4073 = vmatprep.subr.bf16.mxu0 0
        %4074 = vmatpush1.bf16.msra.mxu0 0
        %4075 = vmatprep.subr.bf16.mxu0 0
        %4076 = vmatpush1.bf16.msra.mxu0 0
        %4077 = vmatprep.subr.bf16.mxu0 0
        %4078 = vmatpush1.bf16.msra.mxu0 0
        %4079 = vmatprep.subr.bf16.mxu0 0
        %4080 = vmatpush1.bf16.msra.mxu0 0
        %4081 = vmatprep.subr.bf16.mxu0 0
        %4082 = vmatpush1.bf16.msra.mxu0 0
        %4083 = vmatprep.subr.bf16.mxu0 0
        %4084 = vmatpush1.bf16.msra.mxu0 0
        %4085 = vmatprep.subr.bf16.mxu0 0
        %4086 = vmatpush1.bf16.msra.mxu0 0
        %4087 = vmatprep.subr.bf16.mxu0 0
        %4088 = vmatpush1.bf16.msra.mxu0 0
        %4089 = vmatprep.mubr.bf16.mxu0 0
        %4090 = vmatmul.mubr.bf16.gmra.mrb[0].mxu0 %v4055
        %v4091 = vpop.f32.mrb[0].mxu0
        %v4092 = vadd.f32 0.0, %v4091
        %v4093 = vpop.f32.mrb[0].mxu0
        %v4094 = vpop.f32.mrb[0].mxu0
        %v4095 = vpop.f32.mrb[0].mxu0
        %4096 = vdwg.mxu0
        %v4097 = vmax.f32 %v4092, 0.0
        %v4098 = vpack.c.bf16 %v4097, %v4097
        %s4099 = scalar_lea.vmem %s10, 32
        %v4100 = vld [vmem:[%s4099] sm:$0xf]
        %v4101 = vld [vmem:[%s4099 + $0x4] sm:$0xf]
        %v4102 = vld [vmem:[%s4099 + $0x8] sm:$0xf]
        %v4103 = vld [vmem:[%s4099 + $0xc] sm:$0xf]
        %v4104 = vld [vmem:[%s4099 + $0x10] sm:$0xf]
        %v4105 = vld [vmem:[%s4099 + $0x14] sm:$0xf]
        %v4106 = vld [vmem:[%s4099 + $0x18] sm:$0xf]
        %v4107 = vld [vmem:[%s4099 + $0x1c] sm:$0xf]
        %v4116 = vunpack.c.l.b16 %v4100
        %v4117 = vunpack.c.l.b16 %v4101
        %v4118 = vunpack.c.l.b16 %v4102
        %v4119 = vunpack.c.l.b16 %v4103
        %v4120 = vunpack.c.l.b16 %v4104
        %v4121 = vunpack.c.l.b16 %v4105
        %v4122 = vunpack.c.l.b16 %v4106
        %v4123 = vunpack.c.l.b16 %v4107
        %v4124 = vpack.c.b16 %v4117, %v4116
        %v4125 = vpack.c.b16 %v4119, %v4118
        %v4126 = vpack.c.b16 %v4121, %v4120
        %v4127 = vpack.c.b16 %v4123, %v4122
        %v4133 = vsel %vm2292, %v4098, 0
        %4135 = vmatprep.subr.bf16.mxu0 0
        %4136 = vmatpush1.bf16.msra.mxu0 %v4124
        %4137 = vmatprep.subr.bf16.mxu0 0
        %4138 = vmatpush1.bf16.msra.mxu0 %v4125
        %4139 = vmatprep.subr.bf16.mxu0 0
        %4140 = vmatpush1.bf16.msra.mxu0 %v4126
        %4141 = vmatprep.subr.bf16.mxu0 0
        %4142 = vmatpush1.bf16.msra.mxu0 %v4127
        %4143 = vmatprep.subr.bf16.mxu0 0
        %4144 = vmatpush1.bf16.msra.mxu0 0
        %4145 = vmatprep.subr.bf16.mxu0 0
        %4146 = vmatpush1.bf16.msra.mxu0 0
        %4147 = vmatprep.subr.bf16.mxu0 0
        %4148 = vmatpush1.bf16.msra.mxu0 0
        %4149 = vmatprep.subr.bf16.mxu0 0
        %4150 = vmatpush1.bf16.msra.mxu0 0
        %4151 = vmatprep.subr.bf16.mxu0 0
        %4152 = vmatpush1.bf16.msra.mxu0 0
        %4153 = vmatprep.subr.bf16.mxu0 0
        %4154 = vmatpush1.bf16.msra.mxu0 0
        %4155 = vmatprep.subr.bf16.mxu0 0
        %4156 = vmatpush1.bf16.msra.mxu0 0
        %4157 = vmatprep.subr.bf16.mxu0 0
        %4158 = vmatpush1.bf16.msra.mxu0 0
        %4159 = vmatprep.subr.bf16.mxu0 0
        %4160 = vmatpush1.bf16.msra.mxu0 0
        %4161 = vmatprep.subr.bf16.mxu0 0
        %4162 = vmatpush1.bf16.msra.mxu0 0
        %4163 = vmatprep.subr.bf16.mxu0 0
        %4164 = vmatpush1.bf16.msra.mxu0 0
        %4165 = vmatprep.subr.bf16.mxu0 0
        %4166 = vmatpush1.bf16.msra.mxu0 0
        %4167 = vmatprep.mubr.bf16.mxu0 0
        %4168 = vmatmul.mubr.bf16.gmra.mrb[0].mxu0 %v4133
        %v4169 = vpop.f32.mrb[0].mxu0
        %v4170 = vadd.f32 0.0, %v4169
        %v4171 = vpop.f32.mrb[0].mxu0
        %v4172 = vpop.f32.mrb[0].mxu0
        %v4173 = vpop.f32.mrb[0].mxu0
        %4174 = vdwg.mxu0
        %v4175 = vadd.f32 %v4022, %v4170
        %4177 = vrot.lane.b32.xlu0 %v3283, 64
        %v4178 = vpop.permute.xlu0 %4177
        %v4180 = vsel %vm2292, %v2429, %v4178
        %v4181 = vsel %vm2342, %v4180, %v4178
        %s4182 = scalar_lea.vmem %s478, 8 [#allocation4]
        %4183 = vst [vmem:[%s4182] sm:$0xff] %v4181
        %v4184 = vld [vmem:[%s11] sm:$0x1]
        %v4185 = vmul.f32 %v4175, %v4175
        %v4186 = vsel %vm503, %v4185, 0.0
        %4187 = vadd.xlane.f32.xlu0 %v4186
        %v4188 = vpop.xlane.xlu0 %4187
        %v4189 = vmul.f32 %v4188, %v507
        %v4190 = vadd.f32 %v4189, 1e-06
        %v4191 = vrsqrt.pop %v4190
        %v4192 = vmul.f32 %v4175, %v4191
        %v4194 = vlaneseq
        %v4195 = vshrl.u32 %v4194, 7
        %v4196 = vsub.s32 0, %v4195
        %v4197 = vrot.slane %v4184, %v4196
        %v4199 = vmul.f32 %v4192, %v4197
        %v4200 = vpack.c.bf16 %v4199, %v4199
        %v4201 = vld [vmem:[%s12] sm:$0xf]
        %v4202 = vld [vmem:[%s12 + $0x4] sm:$0xf]
        %v4203 = vld [vmem:[%s12 + $0x8] sm:$0xf]
        %v4204 = vld [vmem:[%s12 + $0xc] sm:$0xf]
        %v4209 = vunpack.c.l.b16 %v4201
        %v4210 = vunpack.c.l.b16 %v4202
        %v4211 = vunpack.c.l.b16 %v4203
        %v4212 = vunpack.c.l.b16 %v4204
        %v4213 = vpack.c.b16 %v4210, %v4209
        %v4214 = vpack.c.b16 %v4212, %v4211
        %v4218 = vsel %vm503, %v4200, 0
        %4220 = vmatprep.subr.bf16.mxu0 0
        %4221 = vmatpush1.bf16.msra.mxu0 %v4213
        %4222 = vmatprep.subr.bf16.mxu0 0
        %4223 = vmatpush1.bf16.msra.mxu0 %v4214
        %4224 = vmatprep.subr.bf16.mxu0 0
        %4225 = vmatpush1.bf16.msra.mxu0 0
        %4226 = vmatprep.subr.bf16.mxu0 0
        %4227 = vmatpush1.bf16.msra.mxu0 0
        %4228 = vmatprep.subr.bf16.mxu0 0
        %4229 = vmatpush1.bf16.msra.mxu0 0
        %4230 = vmatprep.subr.bf16.mxu0 0
        %4231 = vmatpush1.bf16.msra.mxu0 0
        %4232 = vmatprep.subr.bf16.mxu0 0
        %4233 = vmatpush1.bf16.msra.mxu0 0
        %4234 = vmatprep.subr.bf16.mxu0 0
        %4235 = vmatpush1.bf16.msra.mxu0 0
        %4236 = vmatprep.subr.bf16.mxu0 0
        %4237 = vmatpush1.bf16.msra.mxu0 0
        %4238 = vmatprep.subr.bf16.mxu0 0
        %4239 = vmatpush1.bf16.msra.mxu0 0
        %4240 = vmatprep.subr.bf16.mxu0 0
        %4241 = vmatpush1.bf16.msra.mxu0 0
        %4242 = vmatprep.subr.bf16.mxu0 0
        %4243 = vmatpush1.bf16.msra.mxu0 0
        %4244 = vmatprep.subr.bf16.mxu0 0
        %4245 = vmatpush1.bf16.msra.mxu0 0
        %4246 = vmatprep.subr.bf16.mxu0 0
        %4247 = vmatpush1.bf16.msra.mxu0 0
        %4248 = vmatprep.subr.bf16.mxu0 0
        %4249 = vmatpush1.bf16.msra.mxu0 0
        %4250 = vmatprep.subr.bf16.mxu0 0
        %4251 = vmatpush1.bf16.msra.mxu0 0
        %4252 = vmatprep.mubr.bf16.mxu0 0
        %4253 = vmatmul.mubr.bf16.gmra.mrb[0].mxu0 %v4218
        %v4254 = vpop.f32.mrb[0].mxu0
        %v4255 = vadd.f32 0.0, %v4254
        %v4256 = vpop.f32.mrb[0].mxu0
        %v4257 = vpop.f32.mrb[0].mxu0
        %v4258 = vpop.f32.mrb[0].mxu0
        %4259 = vdwg.mxu0
        %4260 = vst [vmem:[%s472] sm:$0xff] %v4255
        %s4261 = sand.u32 %s320, 1
        %s4262 = scalar_lea.sflag [#allocation3], %s4261
        %s4263 = sand.u32 %s320, 1
        %s4264 = smul.addr %s4263, 8
        %s4265 = scalar_lea.vmem [#allocation2], %s4264
        %s4266 = sand.u32 %s346, 1
        %s4267 = sand.u32 %s346, 1
        %s4268 = smul.addr %s4267, 16
        %s4269 = scalar_lea.vmem [#allocation4], %s4268
        // Predicated region
        $region73: #{t5_decoder_init.1} parent=71 // pred_check
          %p4270 = pneg %p330
        $region74: #{t5_decoder_init.1} parent=71 // pred_check_branch
          %4272 = sbr.rel (%p4270) target = $region76
        $region75: #{t5_decoder_init.1} parent=71 // pred_region
          %s4274 = ssub.s32 128, 128
          %4275 = vsyncadd %s4262, %s4274
          %s4276 = smul.addr %s29, 128
          %s4277 = scalar_lea.hbm %s13, %s4276
          %s4279 = sshll.u32 %s4265, 4
          %s4280 = int_to_ptr.vmem [resolvable:$true] %s4279
          %4282 = dma.vmem_to_hbm [thread:$0]  %s4280, 128, %s4277, %s4262
        $region76: #{t5_decoder_init.1} parent=71 // pred_fallthru
          _
        // Predicated region
        $region77: #{t5_decoder_init.1} parent=71 // pred_check
          %p4283 = pneg %p356
        $region78: #{t5_decoder_init.1} parent=71 // pred_check_branch
          %4285 = sbr.rel (%p4283) target = $region80
        $region79: #{t5_decoder_init.1} parent=71 // pred_region
          %s4286 = smul.addr %s29, 8
          %s4287 = scalar_lea.vmem %s14, %s4286
          // Predicated region
          $region81: #{t5_decoder_init.1} parent=79 // pred_check
            _
          $region82: #{t5_decoder_init.1} parent=79 // pred_check_branch
            %4289 = sbr.rel (0) target = $region84
          $region83: #{t5_decoder_init.1} parent=79 // pred_region
            // Predicated region
            $region85: #{t5_decoder_init.1} parent=83 // pred_check
              _
            $region86: #{t5_decoder_init.1} parent=83 // pred_check_branch
              %4291 = sbr.rel (0) target = $region88
            $region87: #{t5_decoder_init.1} parent=83 // pred_region
              // Predicated region
              $region100: #{t5_decoder_init.1} parent=87 // pred_check
                _
              $region101: #{t5_decoder_init.1} parent=87 // pred_check_branch
                %4308 = sbr.rel (0) target = $region103
              $region102: #{t5_decoder_init.1} parent=87 // pred_region
                loop: start=0, step=1, limit=1
                $region104: #{t5_decoder_init.1} parent=102 // loop_pre_header
                  _
                $region105: #{t5_decoder_init.1} parent=102 // loop_header
                  %s4310 = sphi 0, %s4314
                  %p4311 = scmp.ge.s32.totalorder %s4310, 1
                  %s4315 = sphi %s4269, %s4269
                  %s4316 = sphi %s4287, %s4287
                $region106: #{t5_decoder_init.1} parent=102 // loop_header_branch
                  %4313 = sbr.rel (%p4311) target = $region110
                $region107: #{t5_decoder_init.1} parent=102 // loop_body
                  %v4317 = vld [vmem:[%s4315] sm:$0xff]
                  %4318 = vst [vmem:[%s4316] sm:$0xff] %v4317
                  %v4319 = vld [vmem:[%s4315 + $0x8] sm:$0xff]
                  %4320 = vst [vmem:[%s4316 + $0x10] sm:$0xff] %v4319
                $region108: #{t5_decoder_init.1} parent=102 // loop_footer
                  %s4314 = sadd.s32 1, %s4310
                $region109: #{t5_decoder_init.1} parent=102 // loop_footer_branch
                  %4309 = sbr.rel target = $region105
                $region110: #{t5_decoder_init.1} parent=102 // loop_exit
                  _
              $region103: #{t5_decoder_init.1} parent=87 // pred_fallthru
                _
              // Predicated region
              $region111: #{t5_decoder_init.1} parent=87 // pred_check
                _
              $region112: #{t5_decoder_init.1} parent=87 // pred_check_branch
                %4322 = sbr.rel target = $region114
              $region113: #{t5_decoder_init.1} parent=87 // pred_region
                _
              $region114: #{t5_decoder_init.1} parent=87 // pred_fallthru
                _
            $region88: #{t5_decoder_init.1} parent=83 // pred_fallthru
              _
            // Predicated region
            $region89: #{t5_decoder_init.1} parent=83 // pred_check
              _
            $region90: #{t5_decoder_init.1} parent=83 // pred_check_branch
              %4293 = sbr.rel target = $region92
            $region91: #{t5_decoder_init.1} parent=83 // pred_region
              loop: start=0, step=1, limit=1
              $region93: #{t5_decoder_init.1} parent=91 // loop_pre_header
                _
              $region94: #{t5_decoder_init.1} parent=91 // loop_header
                %s4296 = sphi 0, %s4300
                %p4297 = scmp.ge.s32.totalorder %s4296, 1
                %s4301 = sphi %s4269, %s4269
                %s4302 = sphi %s4287, %s4287
              $region95: #{t5_decoder_init.1} parent=91 // loop_header_branch
                %4299 = sbr.rel (%p4297) target = $region99
              $region96: #{t5_decoder_init.1} parent=91 // loop_body
                %v4303 = vld [vmem:[%s4301] sm:$0xff]
                %4304 = vst [vmem:[%s4302] sm:$0xff] %v4303
                %v4305 = vld [vmem:[%s4301 + $0x8] sm:$0xff]
                %4306 = vst [vmem:[%s4302 + $0x10] sm:$0xff] %v4305
              $region97: #{t5_decoder_init.1} parent=91 // loop_footer
                %s4300 = sadd.s32 1, %s4296
              $region98: #{t5_decoder_init.1} parent=91 // loop_footer_branch
                %4295 = sbr.rel target = $region94
              $region99: #{t5_decoder_init.1} parent=91 // loop_exit
                _
            $region92: #{t5_decoder_init.1} parent=83 // pred_fallthru
              _
          $region84: #{t5_decoder_init.1} parent=79 // pred_fallthru
            _
          %4323 = vnop
        $region80: #{t5_decoder_init.1} parent=71 // pred_fallthru
          _
      $region72: #{t5_decoder_init.1} parent=5 // pred_fallthru
        _
      %p4324 = scmp.le.s32.totalorder 2, %s24
      // Predicated region
      $region115: #{t5_decoder_init.1} parent=5 // pred_check
        %p4325 = pneg %p4324
      $region116: #{t5_decoder_init.1} parent=5 // pred_check_branch
        %4327 = sbr.rel (%p4325) target = $region118
      $region117: #{t5_decoder_init.1} parent=5 // pred_region
        %s4328 = ssub.s32 %s24, 2
        // Predicated region
        $region119: #{t5_decoder_init.1} parent=117 // pred_check
          %p4329 = pneg %p336
        $region120: #{t5_decoder_init.1} parent=117 // pred_check_branch
          %4331 = sbr.rel (%p4329) target = $region122
        $region121: #{t5_decoder_init.1} parent=117 // pred_region
          %s4332 = sand.u32 %s321, 1
          %s4333 = scalar_lea.sflag [#allocation3], %s4332
          %s4334 = sand.u32 %s321, 1
          %s4335 = smul.addr %s4334, 8
          %s4336 = scalar_lea.vmem [#allocation2], %s4335
          %4337 = dma.done %s4333, 128
        $region122: #{t5_decoder_init.1} parent=117 // pred_fallthru
          _
        // Predicated region
        $region123: #{t5_decoder_init.1} parent=117 // pred_check
          %p4338 = pneg %p362
        $region124: #{t5_decoder_init.1} parent=117 // pred_check_branch
          %4340 = sbr.rel (%p4338) target = $region126
        $region125: #{t5_decoder_init.1} parent=117 // pred_region
          %s4341 = sand.u32 %s347, 1
          %s4342 = sand.u32 %s347, 1
          %s4343 = smul.addr %s4342, 16
          %s4344 = scalar_lea.vmem [#allocation4], %s4343
        $region126: #{t5_decoder_init.1} parent=117 // pred_fallthru
          _
      $region118: #{t5_decoder_init.1} parent=5 // pred_fallthru
        _
    $region6: #{t5_decoder_init.1} parent=1 // loop_footer
      %s28 = sadd.s32 1, %s24
    $region7: #{t5_decoder_init.1} parent=1 // loop_footer_branch
      %23 = sbr.rel target = $region3
    $region8: #{t5_decoder_init.1} parent=1 // loop_exit
      _
    %4345 = vsyncpa [#allocation3], 1
    %s4346 = scalar_lea.sflag [#allocation3], 1
    %4347 = vsyncpa %s4346, 1

</llo_original>
